<compile_context>
chip_gen: v7x
topology: tpu7x:2x2x1
jax: 0.10.0
libtpu: 0.0.40
codegen_flags: <defaults>
</compile_context>

<pallas_src>
import functools
import math

import jax
import jax.numpy as jnp
from jax.experimental import pallas as pl
from jax.experimental.pallas import tpu as pltpu

_N_BISECT_ITERS = 23                  # entmax_bisect: tau converged to f32 resolution
_ATTN_MATMUL_DTYPE = jnp.bfloat16     # operand dtype for scores / P@V (f32 accumulation)


def _bisect_dtype_for_backend():
    """bf16 transcendentals on v6e/v7x (packed EUP); f32 elsewhere (v5e etc.)."""
    try:
        kind = jax.devices()[0].device_kind.lower()
    except Exception:
        return jnp.float32
    if ("v6" in kind) or ("v7" in kind) or ("7x" in kind) or ("6e" in kind):
        return jnp.bfloat16
    return jnp.float32


_BISECT_DTYPE = _bisect_dtype_for_backend()


# ----------------------------- Pallas kernels -----------------------------

def _ln_linear_kernel(x_ref, g_ref, b_ref, w_ref, bias_ref, o_ref):
    """LayerNorm(x) @ w + bias  (fuses the embedding LayerNorm with adj1)."""
    x = x_ref[...]
    mu = jnp.mean(x, axis=-1, keepdims=True)
    var = jnp.mean(jnp.square(x - mu), axis=-1, keepdims=True)
    normed = (x - mu) * jax.lax.rsqrt(var + 1e-5) * g_ref[...] + b_ref[...]
    acc = jnp.dot(normed, w_ref[...], preferred_element_type=jnp.float32)
    o_ref[...] = (acc + bias_ref[...]).astype(o_ref.dtype)


def ln_linear_pallas(x, gamma, beta, w, b, *, tm=128):
    M, E = x.shape
    N = w.shape[1]
    assert M % tm == 0
    return pl.pallas_call(
        _ln_linear_kernel,
        out_shape=jax.ShapeDtypeStruct((M, N), jnp.float32),
        grid=(M // tm,),
        in_specs=[
            pl.BlockSpec((tm, E), lambda i: (i, 0)),
            pl.BlockSpec((1, E), lambda i: (0, 0)),
            pl.BlockSpec((1, E), lambda i: (0, 0)),
            pl.BlockSpec((E, N), lambda i: (0, 0)),
            pl.BlockSpec((1, N), lambda i: (0, 0)),
        ],
        out_specs=pl.BlockSpec((tm, N), lambda i: (i, 0)),
        compiler_params=pltpu.CompilerParams(dimension_semantics=("parallel",)),
    )(x, gamma.reshape(1, E), beta.reshape(1, E), w, b.reshape(1, N))


def _double_linear_kernel(x_ref, w1_ref, b1_ref, w2_ref, b2_ref, o_ref):
    """(x @ w1 + b1) @ w2 + b2  (fuses adjustment_layer2 with the vocab head)."""
    h = jnp.dot(x_ref[...], w1_ref[...], preferred_element_type=jnp.float32) + b1_ref[...]
    acc = jnp.dot(h, w2_ref[...], preferred_element_type=jnp.float32)
    o_ref[...] = (acc + b2_ref[...]).astype(o_ref.dtype)


def double_linear_pallas(x, w1, b1, w2, b2, *, tm=128):
    M, K = x.shape
    N1 = w1.shape[1]
    N2 = w2.shape[1]
    assert M % tm == 0
    return pl.pallas_call(
        _double_linear_kernel,
        out_shape=jax.ShapeDtypeStruct((M, N2), jnp.float32),
        grid=(M // tm,),
        in_specs=[
            pl.BlockSpec((tm, K), lambda i: (i, 0)),
            pl.BlockSpec((K, N1), lambda i: (0, 0)),
            pl.BlockSpec((1, N1), lambda i: (0, 0)),
            pl.BlockSpec((N1, N2), lambda i: (0, 0)),
            pl.BlockSpec((1, N2), lambda i: (0, 0)),
        ],
        out_specs=pl.BlockSpec((tm, N2), lambda i: (i, 0)),
        compiler_params=pltpu.CompilerParams(dimension_semantics=("parallel",)),
    )(x, w1, b1.reshape(1, N1), w2, b2.reshape(1, N2))


def _mix_attention_layer_kernel(alpha_ref, span_ref, xq_ref, xf_ref,
                                wq_ref, bq_ref, wkv_ref, bkv_ref,
                                lng_ref, lnb_ref, wo_ref, bo_ref,
                                o_ref, kv_scratch, head_scratch,
                                *, num_heads, n_iter, bisect_dtype):
    """One (batch, query-tile) step of a MixAdaptiveAttention layer, VMEM-resident.

    Fused q projection (lane-dense, scale pre-folded) and k/v projection of the
    full sequence -> per-head (adaptive-span mask + alpha-entmax) attention with
    scratch-backed head outputs -> LayerNorm over E -> single o_proj matmul.
    """
    xq = xq_ref[0]                                   # (tq, E) query rows
    xf = xf_ref[0]                                   # (S, E) full sequence
    tq, E = xq.shape
    S = xf.shape[0]
    H = num_heads
    D = E // H
    log_inv_s = math.log(1.0 / S)                    # entmax row length = S keys
    mm_dt = _ATTN_MATMUL_DTYPE
    bdt = bisect_dtype

    # Fused, lane-dense projections (q scale folded into wq/bq in the wrapper).
    q_all = jnp.dot(xq, wq_ref[...], preferred_element_type=jnp.float32) + bq_ref[...]
    kv_scratch[...] = (jnp.dot(xf, wkv_ref[...], preferred_element_type=jnp.float32)
                       + bkv_ref[...])               # (S, 2E): [k heads | v heads]

    q_row0 = pl.program_id(1) * tq

    for h in range(H):                               # static loop over heads (H=4)
        alpha = alpha_ref[h]                         # per-head scalars (SMEM)
        span = span_ref[h]

        q = q_all[:, h * D:(h + 1) * D]              # (tq, D)
        k = kv_scratch[:, h * D:(h + 1) * D]         # (S, D)
        v = kv_scratch[:, E + h * D:E + (h + 1) * D]

        scores = jax.lax.dot_general(
            q.astype(mm_dt), k.astype(mm_dt),
            (((1,), (1,)), ((), ())), preferred_element_type=jnp.float32)  # (tq, S)

        # adaptive-span mask: |i - j| > span_h  ->  masked_fill(-inf)
        ii = jax.lax.broadcasted_iota(jnp.int32, (tq, S), 0) + q_row0
        jj = jax.lax.broadcasted_iota(jnp.int32, (tq, S), 1)
        rel = jnp.abs(ii - jj).astype(jnp.float32)
        scores = jnp.where(rel > span, -1e30, scores)

        # --- alpha-entmax via bisection (entmax_bisect), per-head alpha ---
        am1 = alpha - 1.0
        r = 1.0 / am1
        X = scores * am1                              # f32, kept for final recompute
        max_val = jnp.max(X, axis=-1, keepdims=True)
        tau_lo0 = max_val - 1.0                       # gp(1, alpha) = 1
        dm0 = 1.0 - jnp.exp(am1 * log_inv_s)          # tau_hi - tau_lo (scalar)

        Xb = X.astype(bdt)                            # bisection stream dtype
        rb = r.astype(bdt)

        def p_fn(z, rr):  # clamp(z, min=0) ** (1/(alpha-1)), exact 0 at z <= 0
            zc = jnp.maximum(z, 0)
            pos = zc > 0
            return jnp.where(pos, jnp.exp(rr * jnp.log(jnp.where(pos, zc, 1))), 0)

        def body(_, carry):                           # carries: (tq,1)/scalar only
            tau_lo, dm, _tau_m = carry
            dm = dm * 0.5
            tau_m = tau_lo + dm
            p_m = p_fn(Xb - tau_m.astype(bdt), rb)
            s_m = jnp.sum(p_m.astype(jnp.float32), axis=-1, keepdims=True)
            tau_lo = jnp.where(s_m >= 1.0, tau_m, tau_lo)   # f_lo >= 0 -> test f_m sign
            return (tau_lo, dm, tau_m)

        _, _, tau_m = jax.lax.fori_loop(0, n_iter, body, (tau_lo0, dm0, tau_lo0))

        # recompute p once at the final midpoint in f32, then normalize.
        p = p_fn(X - tau_m, r)
        p = p * pl.reciprocal(jnp.sum(p, axis=-1, keepdims=True), approx=True)

        ho = jnp.dot(p.astype(mm_dt), v.astype(mm_dt),
                     preferred_element_type=jnp.float32)     # (tq, D)
        head_scratch[:, h * D:(h + 1) * D] = ho              # scratch-backed head out

    # LayerNorm over the concatenated head dimension E, then a single o_proj matmul.
    hf = head_scratch[...]
    mu = jnp.mean(hf, axis=-1, keepdims=True)
    var = jnp.mean(jnp.square(hf - mu), axis=-1, keepdims=True)
    normed = (hf - mu) * jax.lax.rsqrt(var + 1e-5) * lng_ref[...] + lnb_ref[...]
    out = jnp.dot(normed, wo_ref[...], preferred_element_type=jnp.float32) + bo_ref[...]
    o_ref[0] = out.astype(o_ref.dtype)


def mix_adaptive_attention_pallas(x, lp, *, num_heads, attention_window, tq=64):
    """x: (B, S, E) float32 -> (B, S, E); one fused pallas_call per layer."""
    B, S, E = x.shape
    H = num_heads
    D = E // H
    assert E % H == 0
    assert S <= attention_window    # single query/key chunk (default window = 1024)
    tq = min(tq, S)
    assert S % tq == 0 and tq % 8 == 0
    inv_sqrt_d = 1.0 / math.sqrt(D)

    # Fused projection weights prepared once per call in plain JAX (tiny tensors),
    # matching qkv.reshape(B,S,H,3D).permute(0,2,1,3).chunk(3,-1); column order per
    # head h is [h*D : (h+1)*D].  The 1/sqrt(D) score scale is folded into wq/bq.
    w = lp["w_qkv"].reshape(E, H, 3, D)
    b = lp["b_qkv"].reshape(H, 3, D)
    wq = w[:, :, 0, :].reshape(E, H * D) * inv_sqrt_d       # (E, E)
    bq = b[:, 0, :].reshape(1, H * D) * inv_sqrt_d
    wk = w[:, :, 1, :].reshape(E, H * D)
    wv = w[:, :, 2, :].reshape(E, H * D)
    wkv = jnp.concatenate([wk, wv], axis=1)                 # (E, 2E)
    bkv = jnp.concatenate([b[:, 1, :].reshape(1, H * D),
                           b[:, 2, :].reshape(1, H * D)], axis=1)
    lng = lp["ln_g"].reshape(1, E)
    lnb = lp["ln_b"].reshape(1, E)
    wo = lp["w_o"]                                          # (E, E), un-split
    bo = lp["b_o"].reshape(1, E)

    smem = pl.BlockSpec(memory_space=pltpu.MemorySpace.SMEM)
    n_qt = S // tq

    # Advisory cost: kernel is transcendental-bound (entmax bisection).
    flops = 2 * (B * n_qt) * (tq * E * E + S * E * 2 * E + H * tq * S * D * 2 + tq * E * E)
    transcendentals = B * H * (_N_BISECT_ITERS + 1) * S * S * 2
    bytes_accessed = 4 * ((B * n_qt) * (tq * E + S * E + E * E + E * 2 * E + E * E + 6 * E)
                          + B * S * E)
    cost = pl.CostEstimate(flops=int(flops), transcendentals=int(transcendentals),
                           bytes_accessed=int(bytes_accessed))

    kernel = functools.partial(_mix_attention_layer_kernel,
                               num_heads=H, n_iter=_N_BISECT_ITERS,
                               bisect_dtype=_BISECT_DTYPE)

    return pl.pallas_call(
        kernel,
        out_shape=jax.ShapeDtypeStruct((B, S, E), jnp.float32),
        grid=(B, n_qt),
        in_specs=[
            smem, smem,                                          # alpha, span
            pl.BlockSpec((1, tq, E), lambda bi, qi: (bi, qi, 0)),  # x: query rows
            pl.BlockSpec((1, S, E), lambda bi, qi: (bi, 0, 0)),    # x: full sequence
            pl.BlockSpec((E, H * D), lambda bi, qi: (0, 0)),       # wq (scaled)
            pl.BlockSpec((1, H * D), lambda bi, qi: (0, 0)),       # bq (scaled)
            pl.BlockSpec((E, 2 * H * D), lambda bi, qi: (0, 0)),   # wkv
            pl.BlockSpec((1, 2 * H * D), lambda bi, qi: (0, 0)),   # bkv
            pl.BlockSpec((1, E), lambda bi, qi: (0, 0)),           # ln gamma
            pl.BlockSpec((1, E), lambda bi, qi: (0, 0)),           # ln beta
            pl.BlockSpec((E, E), lambda bi, qi: (0, 0)),           # w_o
            pl.BlockSpec((1, E), lambda bi, qi: (0, 0)),           # b_o
        ],
        out_specs=pl.BlockSpec((1, tq, E), lambda bi, qi: (bi, qi, 0)),
        scratch_shapes=[
            pltpu.VMEM((S, 2 * E), jnp.float32),      # k/v projection of full sequence
            pltpu.VMEM((tq, E), jnp.float32),         # concatenated head outputs
        ],
        compiler_params=pltpu.CompilerParams(
            dimension_semantics=("parallel", "parallel")),
        cost_estimate=cost,
    )(lp["alpha"], lp["span"], x, x, wq, bq, wkv, bkv, lng, lnb, wo, bo)


# ----------------------------- model glue -----------------------------

def custom_longformer_forward(params, input_ids, attention_mask, *, config):
    B, S = input_ids.shape
    E = config["hidden_size"]
    lfp = params["longformer"]

    # TODO(synk): the full HuggingFace LongformerModel encoder (global/windowed
    # attention stack) is an external module not defined in the source; stand-in
    # = word embeddings + position embeddings + LayerNorm; attention_mask unused.
    del attention_mask
    tok = jnp.take(lfp["word_emb"], input_ids, axis=0)          # gather glue (plain JAX)
    emb = (tok + lfp["pos_emb"][:S][None, :, :]).reshape(B * S, E)

    # stub's final LayerNorm fused with adjustment_layer1
    x = ln_linear_pallas(emb, lfp["emb_ln_g"], lfp["emb_ln_b"],
                         params["w_adj1"], params["b_adj1"], tm=128)
    x = x.reshape(B, S, E)

    for lp in params["attention_heads"]:
        x = mix_adaptive_attention_pallas(
            x, lp,
            num_heads=config["num_attention_heads"],
            attention_window=config["attention_window"])

    # adjustment_layer2 fused with the vocab head
    logits = double_linear_pallas(x.reshape(B * S, E),
                                  params["w_adj2"], params["b_adj2"],
                                  params["w_vocab"], params["b_vocab"], tm=128)
    return logits.reshape(B, S, config["vocab_size"])


# ----------------------------- parameter init -----------------------------

def init_params(key, config):
    E = config["hidden_size"]
    H = config["num_attention_heads"]
    V = config["vocab_size"]
    L = config["num_hidden_layers"]
    P = config["max_position_embeddings"]

    keys = list(jax.random.split(key, 8 + 4 * L))
    kit = iter(keys)

    def lin(k, fan_in, fan_out):
        k1, k2 = jax.random.split(k)
        bound = 1.0 / math.sqrt(fan_in)
        w = jax.random.uniform(k1, (fan_in, fan_out), jnp.float32, -bound, bound)
        b = jax.random.uniform(k2, (fan_out,), jnp.float32, -bound, bound)
        return w, b

    params = {}
    params["longformer"] = {
        "word_emb": 0.02 * jax.random.normal(next(kit), (V, E), jnp.float32),
        "pos_emb": 0.02 * jax.random.normal(next(kit), (P, E), jnp.float32),
        "emb_ln_g": jnp.ones((E,), jnp.float32),
        "emb_ln_b": jnp.zeros((E,), jnp.float32),
    }
    params["w_adj1"], params["b_adj1"] = lin(next(kit), E, E)
    params["w_adj2"], params["b_adj2"] = lin(next(kit), E, E)
    params["w_vocab"], params["b_vocab"] = lin(next(kit), E, V)

    layers = []
    for _ in range(L):
        w_qkv, b_qkv = lin(next(kit), E, 3 * E)
        w_o, b_o = lin(next(kit), E, E)
        alpha = 1.5 + 0.05 * jax.random.normal(next(kit), (H,), jnp.float32)
        span = 100.0 + 1.0 * jax.random.normal(next(kit), (H,), jnp.float32)
        layers.append({
            "w_qkv": w_qkv, "b_qkv": b_qkv,
            "w_o": w_o, "b_o": b_o,
            "ln_g": jnp.ones((E,), jnp.float32),
            "ln_b": jnp.zeros((E,), jnp.float32),
            "alpha": alpha, "span": span,
        })
    params["attention_heads"] = layers
    return params


# ----------------------------- main -----------------------------

if __name__ == "__main__":
    config = dict(
        hidden_size=64,
        num_attention_heads=4,
        num_hidden_layers=2,
        vocab_size=128,
        max_position_embeddings=256,
        attention_window=1024,   # MixAdaptiveAttention default
    )

    key = jax.random.PRNGKey(0)
    pkey, ikey = jax.random.split(key)
    params = init_params(pkey, config)

    B, S = 2, 128
    input_ids = jax.random.randint(ikey, (B, S), 0, config["vocab_size"], dtype=jnp.int32)
    attention_mask = jnp.ones((B, S), dtype=jnp.int32)

    fwd = jax.jit(functools.partial(custom_longformer_forward, config=config))
    logits = fwd(params, input_ids, attention_mask)
    logits = jax.block_until_ready(logits)

    assert logits.shape == (B, S, config["vocab_size"])
    assert bool(jnp.all(jnp.isfinite(logits)))
    print("KERNEL_OK")
</pallas_src>

<mosaic_0001>
module attributes {stable_mosaic.version = 11 : i64} {
  func.func @_ln_linear_kernel(%arg0: i32, %arg1: memref<128x64xf32, #tpu.memory_space<vmem>>, %arg2: memref<1x64xf32, #tpu.memory_space<vmem>>, %arg3: memref<1x64xf32, #tpu.memory_space<vmem>>, %arg4: memref<64x64xf32, #tpu.memory_space<vmem>>, %arg5: memref<1x64xf32, #tpu.memory_space<vmem>>, %arg6: memref<128x64xf32, #tpu.memory_space<vmem>>) attributes {dimension_semantics = [#tpu.dimension_semantics<parallel>], iteration_bounds = array<i64: 2>, scalar_prefetch = 0 : i64, scratch_operands = 0 : i64, tpu.core_type = #tpu.core_type<tc>, window_params = [{transform_indices = @transform_0, window_bounds = array<i64: 128, 64>}, {pipeline_mode = #tpu.pipeline_mode<synchronous>, transform_indices = @transform_1, window_bounds = array<i64: 1, 64>}, {pipeline_mode = #tpu.pipeline_mode<synchronous>, transform_indices = @transform_2, window_bounds = array<i64: 1, 64>}, {pipeline_mode = #tpu.pipeline_mode<synchronous>, transform_indices = @transform_3, window_bounds = array<i64: 64, 64>}, {pipeline_mode = #tpu.pipeline_mode<synchronous>, transform_indices = @transform_4, window_bounds = array<i64: 1, 64>}, {transform_indices = @transform_5, window_bounds = array<i64: 128, 64>}]} {
    %c0 = arith.constant 0 : index
    %c0_0 = arith.constant 0 : index
    %0 = vector.load %arg1[%c0, %c0_0] : memref<128x64xf32, #tpu.memory_space<vmem>>, vector<128x64xf32>
    %cst = arith.constant dense<0.000000e+00> : vector<128xf32>
    %1 = vector.multi_reduction <add>, %0, %cst [1] : vector<128x64xf32> to vector<128xf32>
    %2 = vector.shape_cast %1 : vector<128xf32> to vector<128x1xf32>
    %cst_1 = arith.constant 6.400000e+01 : f32
    %3 = vector.broadcast %cst_1 : f32 to vector<128x1xf32>
    %4 = arith.divf %2, %3 : vector<128x1xf32>
    %5 = vector.broadcast %4 : vector<128x1xf32> to vector<128x64xf32>
    %6 = arith.subf %0, %5 : vector<128x64xf32>
    %7 = arith.mulf %6, %6 : vector<128x64xf32>
    %cst_2 = arith.constant dense<0.000000e+00> : vector<128xf32>
    %8 = vector.multi_reduction <add>, %7, %cst_2 [1] : vector<128x64xf32> to vector<128xf32>
    %9 = vector.shape_cast %8 : vector<128xf32> to vector<128x1xf32>
    %cst_3 = arith.constant 6.400000e+01 : f32
    %10 = vector.broadcast %cst_3 : f32 to vector<128x1xf32>
    %11 = arith.divf %9, %10 : vector<128x1xf32>
    %12 = vector.broadcast %4 : vector<128x1xf32> to vector<128x64xf32>
    %13 = arith.subf %0, %12 : vector<128x64xf32>
    %cst_4 = arith.constant 9.99999974E-6 : f32
    %14 = vector.broadcast %cst_4 : f32 to vector<128x1xf32>
    %15 = arith.addf %11, %14 : vector<128x1xf32>
    %16 = math.rsqrt %15 : vector<128x1xf32>
    %17 = vector.broadcast %16 : vector<128x1xf32> to vector<128x64xf32>
    %18 = arith.mulf %13, %17 : vector<128x64xf32>
    %c0_5 = arith.constant 0 : index
    %c0_6 = arith.constant 0 : index
    %19 = vector.load %arg2[%c0_5, %c0_6] : memref<1x64xf32, #tpu.memory_space<vmem>>, vector<1x64xf32>
    %20 = vector.broadcast %19 : vector<1x64xf32> to vector<128x64xf32>
    %21 = arith.mulf %18, %20 : vector<128x64xf32>
    %c0_7 = arith.constant 0 : index
    %c0_8 = arith.constant 0 : index
    %22 = vector.load %arg3[%c0_7, %c0_8] : memref<1x64xf32, #tpu.memory_space<vmem>>, vector<1x64xf32>
    %23 = vector.broadcast %22 : vector<1x64xf32> to vector<128x64xf32>
    %24 = arith.addf %21, %23 : vector<128x64xf32>
    %c0_9 = arith.constant 0 : index
    %c0_10 = arith.constant 0 : index
    %25 = vector.load %arg4[%c0_9, %c0_10] : memref<64x64xf32, #tpu.memory_space<vmem>>, vector<64x64xf32>
    %cst_11 = arith.constant dense<0.000000e+00> : vector<128x64xf32>
    %26 = tpu.matmul %24, %25, %cst_11 {dimension_numbers = #tpu.dot_dimension_numbers<[1], [0], [0], [1], [0, 0, 1, 1], [], []>} : vector<128x64xf32>, vector<64x64xf32>, vector<128x64xf32> -> vector<128x64xf32>
    %c0_12 = arith.constant 0 : index
    %c0_13 = arith.constant 0 : index
    %27 = vector.load %arg5[%c0_12, %c0_13] : memref<1x64xf32, #tpu.memory_space<vmem>>, vector<1x64xf32>
    %28 = vector.broadcast %27 : vector<1x64xf32> to vector<128x64xf32>
    %29 = arith.addf %26, %28 : vector<128x64xf32>
    %c0_14 = arith.constant 0 : index
    %c0_15 = arith.constant 0 : index
    %30 = vector.load %arg6[%c0_14, %c0_15] : memref<128x64xf32, #tpu.memory_space<vmem>>, vector<128x64xf32>
    tpu.vector_store %arg6[%c0_14, %c0_15], %29 {strides = array<i32>} : memref<128x64xf32, #tpu.memory_space<vmem>>, vector<128x64xf32>,
    return
  }
  func.func @transform_0(%arg0: i32) -> (i32, i32) {
    %c0_i32 = arith.constant 0 : i32
    %c0_i32_0 = arith.constant 0 : i32
    return %arg0, %c0_i32 : i32, i32
  }
  func.func @transform_1(%arg0: i32) -> (i32, i32) {
    %c0_i32 = arith.constant 0 : i32
    %c0_i32_0 = arith.constant 0 : i32
    %c0_i32_1 = arith.constant 0 : i32
    return %c0_i32, %c0_i32_0 : i32, i32
  }
  func.func @transform_2(%arg0: i32) -> (i32, i32) {
    %c0_i32 = arith.constant 0 : i32
    %c0_i32_0 = arith.constant 0 : i32
    %c0_i32_1 = arith.constant 0 : i32
    return %c0_i32, %c0_i32_0 : i32, i32
  }
  func.func @transform_3(%arg0: i32) -> (i32, i32) {
    %c0_i32 = arith.constant 0 : i32
    %c0_i32_0 = arith.constant 0 : i32
    %c0_i32_1 = arith.constant 0 : i32
    return %c0_i32, %c0_i32_0 : i32, i32
  }
  func.func @transform_4(%arg0: i32) -> (i32, i32) {
    %c0_i32 = arith.constant 0 : i32
    %c0_i32_0 = arith.constant 0 : i32
    %c0_i32_1 = arith.constant 0 : i32
    return %c0_i32, %c0_i32_0 : i32, i32
  }
  func.func @transform_5(%arg0: i32) -> (i32, i32) {
    %c0_i32 = arith.constant 0 : i32
    %c0_i32_0 = arith.constant 0 : i32
    return %arg0, %c0_i32 : i32, i32
  }
}

module attributes {stable_mosaic.version = 11 : i64} {
  func.func @_double_linear_kernel(%arg0: i32, %arg1: memref<128x64xf32, #tpu.memory_space<vmem>>, %arg2: memref<64x64xf32, #tpu.memory_space<vmem>>, %arg3: memref<1x64xf32, #tpu.memory_space<vmem>>, %arg4: memref<64x128xf32, #tpu.memory_space<vmem>>, %arg5: memref<1x128xf32, #tpu.memory_space<vmem>>, %arg6: memref<128x128xf32, #tpu.memory_space<vmem>>) attributes {dimension_semantics = [#tpu.dimension_semantics<parallel>], iteration_bounds = array<i64: 2>, scalar_prefetch = 0 : i64, scratch_operands = 0 : i64, tpu.core_type = #tpu.core_type<tc>, window_params = [{transform_indices = @transform_0, window_bounds = array<i64: 128, 64>}, {pipeline_mode = #tpu.pipeline_mode<synchronous>, transform_indices = @transform_1, window_bounds = array<i64: 64, 64>}, {pipeline_mode = #tpu.pipeline_mode<synchronous>, transform_indices = @transform_2, window_bounds = array<i64: 1, 64>}, {pipeline_mode = #tpu.pipeline_mode<synchronous>, transform_indices = @transform_3, window_bounds = array<i64: 64, 128>}, {pipeline_mode = #tpu.pipeline_mode<synchronous>, transform_indices = @transform_4, window_bounds = array<i64: 1, 128>}, {transform_indices = @transform_5, window_bounds = array<i64: 128, 128>}]} {
    %c0 = arith.constant 0 : index
    %c0_0 = arith.constant 0 : index
    %0 = vector.load %arg1[%c0, %c0_0] : memref<128x64xf32, #tpu.memory_space<vmem>>, vector<128x64xf32>
    %c0_1 = arith.constant 0 : index
    %c0_2 = arith.constant 0 : index
    %1 = vector.load %arg2[%c0_1, %c0_2] : memref<64x64xf32, #tpu.memory_space<vmem>>, vector<64x64xf32>
    %cst = arith.constant dense<0.000000e+00> : vector<128x64xf32>
    %2 = tpu.matmul %0, %1, %cst {dimension_numbers = #tpu.dot_dimension_numbers<[1], [0], [0], [1], [0, 0, 1, 1], [], []>} : vector<128x64xf32>, vector<64x64xf32>, vector<128x64xf32> -> vector<128x64xf32>
    %c0_3 = arith.constant 0 : index
    %c0_4 = arith.constant 0 : index
    %3 = vector.load %arg3[%c0_3, %c0_4] : memref<1x64xf32, #tpu.memory_space<vmem>>, vector<1x64xf32>
    %4 = vector.broadcast %3 : vector<1x64xf32> to vector<128x64xf32>
    %5 = arith.addf %2, %4 : vector<128x64xf32>
    %c0_5 = arith.constant 0 : index
    %c0_6 = arith.constant 0 : index
    %6 = vector.load %arg4[%c0_5, %c0_6] : memref<64x128xf32, #tpu.memory_space<vmem>>, vector<64x128xf32>
    %cst_7 = arith.constant dense<0.000000e+00> : vector<128x128xf32>
    %7 = tpu.matmul %5, %6, %cst_7 {dimension_numbers = #tpu.dot_dimension_numbers<[1], [0], [0], [1], [0, 0, 1, 1], [], []>} : vector<128x64xf32>, vector<64x128xf32>, vector<128x128xf32> -> vector<128x128xf32>
    %c0_8 = arith.constant 0 : index
    %c0_9 = arith.constant 0 : index
    %8 = vector.load %arg5[%c0_8, %c0_9] : memref<1x128xf32, #tpu.memory_space<vmem>>, vector<1x128xf32>
    %9 = vector.broadcast %8 : vector<1x128xf32> to vector<128x128xf32>
    %10 = arith.addf %7, %9 : vector<128x128xf32>
    %c0_10 = arith.constant 0 : index
    %c0_11 = arith.constant 0 : index
    %11 = vector.load %arg6[%c0_10, %c0_11] : memref<128x128xf32, #tpu.memory_space<vmem>>, vector<128x128xf32>
    tpu.vector_store %arg6[%c0_10, %c0_11], %10 {strides = array<i32>} : memref<128x128xf32, #tpu.memory_space<vmem>>, vector<128x128xf32>,
    return
  }
  func.func @transform_0(%arg0: i32) -> (i32, i32) {
    %c0_i32 = arith.constant 0 : i32
    %c0_i32_0 = arith.constant 0 : i32
    return %arg0, %c0_i32 : i32, i32
  }
  func.func @transform_1(%arg0: i32) -> (i32, i32) {
    %c0_i32 = arith.constant 0 : i32
    %c0_i32_0 = arith.constant 0 : i32
    %c0_i32_1 = arith.constant 0 : i32
    return %c0_i32, %c0_i32_0 : i32, i32
  }
  func.func @transform_2(%arg0: i32) -> (i32, i32) {
    %c0_i32 = arith.constant 0 : i32
    %c0_i32_0 = arith.constant 0 : i32
    %c0_i32_1 = arith.constant 0 : i32
    return %c0_i32, %c0_i32_0 : i32, i32
  }
  func.func @transform_3(%arg0: i32) -> (i32, i32) {
    %c0_i32 = arith.constant 0 : i32
    %c0_i32_0 = arith.constant 0 : i32
    %c0_i32_1 = arith.constant 0 : i32
    return %c0_i32, %c0_i32_0 : i32, i32
  }
  func.func @transform_4(%arg0: i32) -> (i32, i32) {
    %c0_i32 = arith.constant 0 : i32
    %c0_i32_0 = arith.constant 0 : i32
    %c0_i32_1 = arith.constant 0 : i32
    return %c0_i32, %c0_i32_0 : i32, i32
  }
  func.func @transform_5(%arg0: i32) -> (i32, i32) {
    %c0_i32 = arith.constant 0 : i32
    %c0_i32_0 = arith.constant 0 : i32
    return %arg0, %c0_i32 : i32, i32
  }
}

module attributes {stable_mosaic.version = 11 : i64} {
  func.func @_mix_attention_layer_kernel(%arg0: i32, %arg1: i32, %arg2: memref<4xf32, #tpu.memory_space<smem>>, %arg3: memref<4xf32, #tpu.memory_space<smem>>, %arg4: memref<1x64x64xf32, #tpu.memory_space<vmem>>, %arg5: memref<1x128x64xf32, #tpu.memory_space<vmem>>, %arg6: memref<64x64xf32, #tpu.memory_space<vmem>>, %arg7: memref<1x64xf32, #tpu.memory_space<vmem>>, %arg8: memref<64x128xf32, #tpu.memory_space<vmem>>, %arg9: memref<1x128xf32, #tpu.memory_space<vmem>>, %arg10: memref<1x64xf32, #tpu.memory_space<vmem>>, %arg11: memref<1x64xf32, #tpu.memory_space<vmem>>, %arg12: memref<64x64xf32, #tpu.memory_space<vmem>>, %arg13: memref<1x64xf32, #tpu.memory_space<vmem>>, %arg14: memref<1x64x64xf32, #tpu.memory_space<vmem>>, %arg15: memref<128x128xf32, #tpu.memory_space<vmem>>, %arg16: memref<64x64xf32, #tpu.memory_space<vmem>>) attributes {dimension_semantics = [#tpu.dimension_semantics<parallel>, #tpu.dimension_semantics<parallel>], iteration_bounds = array<i64: 2, 2>, scalar_prefetch = 0 : i64, scratch_operands = 2 : i64, tpu.core_type = #tpu.core_type<tc>, window_params = [{transform_indices = @transform_0, window_bounds = array<i64: 4>}, {transform_indices = @transform_1, window_bounds = array<i64: 4>}, {transform_indices = @transform_2, window_bounds = array<i64: 1, 64, 64>}, {transform_indices = @transform_3, window_bounds = array<i64: 1, 128, 64>}, {pipeline_mode = #tpu.pipeline_mode<synchronous>, transform_indices = @transform_4, window_bounds = array<i64: 64, 64>}, {pipeline_mode = #tpu.pipeline_mode<synchronous>, transform_indices = @transform_5, window_bounds = array<i64: 1, 64>}, {pipeline_mode = #tpu.pipeline_mode<synchronous>, transform_indices = @transform_6, window_bounds = array<i64: 64, 128>}, {pipeline_mode = #tpu.pipeline_mode<synchronous>, transform_indices = @transform_7, window_bounds = array<i64: 1, 128>}, {pipeline_mode = #tpu.pipeline_mode<synchronous>, transform_indices = @transform_8, window_bounds = array<i64: 1, 64>}, {pipeline_mode = #tpu.pipeline_mode<synchronous>, transform_indices = @transform_9, window_bounds = array<i64: 1, 64>}, {pipeline_mode = #tpu.pipeline_mode<synchronous>, transform_indices = @transform_10, window_bounds = array<i64: 64, 64>}, {pipeline_mode = #tpu.pipeline_mode<synchronous>, transform_indices = @transform_11, window_bounds = array<i64: 1, 64>}, {transform_indices = @transform_12, window_bounds = array<i64: 1, 64, 64>}]} {
    %c0 = arith.constant 0 : index
    %c0_0 = arith.constant 0 : index
    %c0_1 = arith.constant 0 : index
    %0 = vector.load %arg4[%c0, %c0_0, %c0_1] : memref<1x64x64xf32, #tpu.memory_space<vmem>>, vector<1x64x64xf32>
    %1 = vector.shape_cast %0 : vector<1x64x64xf32> to vector<64x64xf32>
    %c0_2 = arith.constant 0 : index
    %c0_3 = arith.constant 0 : index
    %c0_4 = arith.constant 0 : index
    %2 = vector.load %arg5[%c0_2, %c0_3, %c0_4] : memref<1x128x64xf32, #tpu.memory_space<vmem>>, vector<1x128x64xf32>
    %3 = vector.shape_cast %2 : vector<1x128x64xf32> to vector<128x64xf32>
    %c0_5 = arith.constant 0 : index
    %c0_6 = arith.constant 0 : index
    %4 = vector.load %arg6[%c0_5, %c0_6] : memref<64x64xf32, #tpu.memory_space<vmem>>, vector<64x64xf32>
    %cst = arith.constant dense<0.000000e+00> : vector<64x64xf32>
    %5 = tpu.matmul %1, %4, %cst {dimension_numbers = #tpu.dot_dimension_numbers<[1], [0], [0], [1], [0, 0, 1, 1], [], []>} : vector<64x64xf32>, vector<64x64xf32>, vector<64x64xf32> -> vector<64x64xf32>
    %c0_7 = arith.constant 0 : index
    %c0_8 = arith.constant 0 : index
    %6 = vector.load %arg7[%c0_7, %c0_8] : memref<1x64xf32, #tpu.memory_space<vmem>>, vector<1x64xf32>
    %7 = vector.broadcast %6 : vector<1x64xf32> to vector<64x64xf32>
    %8 = arith.addf %5, %7 : vector<64x64xf32>
    %c0_9 = arith.constant 0 : index
    %c0_10 = arith.constant 0 : index
    %9 = vector.load %arg8[%c0_9, %c0_10] : memref<64x128xf32, #tpu.memory_space<vmem>>, vector<64x128xf32>
    %cst_11 = arith.constant dense<0.000000e+00> : vector<128x128xf32>
    %10 = tpu.matmul %3, %9, %cst_11 {dimension_numbers = #tpu.dot_dimension_numbers<[1], [0], [0], [1], [0, 0, 1, 1], [], []>} : vector<128x64xf32>, vector<64x128xf32>, vector<128x128xf32> -> vector<128x128xf32>
    %c0_12 = arith.constant 0 : index
    %c0_13 = arith.constant 0 : index
    %11 = vector.load %arg9[%c0_12, %c0_13] : memref<1x128xf32, #tpu.memory_space<vmem>>, vector<1x128xf32>
    %12 = vector.broadcast %11 : vector<1x128xf32> to vector<128x128xf32>
    %13 = arith.addf %10, %12 : vector<128x128xf32>
    %c0_14 = arith.constant 0 : index
    %c0_15 = arith.constant 0 : index
    %14 = vector.load %arg15[%c0_14, %c0_15] : memref<128x128xf32, #tpu.memory_space<vmem>>, vector<128x128xf32>
    tpu.vector_store %arg15[%c0_14, %c0_15], %13 {strides = array<i32>} : memref<128x128xf32, #tpu.memory_space<vmem>>, vector<128x128xf32>,
    %c64_i32 = arith.constant 64 : i32
    %15 = arith.muli %arg1, %c64_i32 : i32
    %c0_16 = arith.constant 0 : index
    %16 = memref.load %arg2[%c0_16] : memref<4xf32, #tpu.memory_space<smem>>
    %c0_17 = arith.constant 0 : index
    %17 = memref.load %arg3[%c0_17] : memref<4xf32, #tpu.memory_space<smem>>
    %18 = vector.extract_strided_slice %8 {offsets = [0, 0], sizes = [64, 16], strides = [1, 1]} : vector<64x64xf32> to vector<64x16xf32>
    %c0_18 = arith.constant 0 : index
    %c0_19 = arith.constant 0 : index
    %19 = vector.load %arg15[%c0_18, %c0_19] : memref<128x128xf32, #tpu.memory_space<vmem>>, vector<128x16xf32>
    %c0_20 = arith.constant 0 : index
    %c64 = arith.constant 64 : index
    %20 = vector.load %arg15[%c0_20, %c64] : memref<128x128xf32, #tpu.memory_space<vmem>>, vector<128x16xf32>
    %21 = arith.truncf %18 : vector<64x16xf32> to vector<64x16xbf16>
    %22 = arith.truncf %19 : vector<128x16xf32> to vector<128x16xbf16>
    %cst_21 = arith.constant dense<0.000000e+00> : vector<64x128xf32>
    %23 = tpu.matmul %21, %22, %cst_21 {dimension_numbers = #tpu.dot_dimension_numbers<[1], [1], [0], [0], [0, 0, 1, 0], [], []>} : vector<64x16xbf16>, vector<128x16xbf16>, vector<64x128xf32> -> vector<64x128xf32>
    %24 = tpu.iota {dimensions = array<i32: 0>} : vector<64x128xi32>
    %25 = vector.broadcast %15 : i32 to vector<64x128xi32>
    %26 = arith.addi %24, %25 : vector<64x128xi32>
    %27 = tpu.iota {dimensions = array<i32: 1>} : vector<64x128xi32>
    %28 = arith.subi %26, %27 : vector<64x128xi32>
    %29 = math.absi %28 : vector<64x128xi32>
    %30 = arith.sitofp %29 : vector<64x128xi32> to vector<64x128xf32>
    %31 = vector.broadcast %17 : f32 to vector<64x128xf32>
    %32 = arith.cmpf ogt, %30, %31 : vector<64x128xf32>
    %cst_22 = arith.constant -1.000000e+30 : f32
    %33 = vector.broadcast %cst_22 : f32 to vector<64x128xf32>
    %34 = arith.select %32, %33, %23 : vector<64x128xi1>, vector<64x128xf32>
    %cst_23 = arith.constant 1.000000e+00 : f32
    %35 = arith.subf %16, %cst_23 : f32
    %cst_24 = arith.constant 1.000000e+00 : f32
    %36 = arith.divf %cst_24, %35 : f32
    %37 = vector.broadcast %35 : f32 to vector<64x128xf32>
    %38 = arith.mulf %34, %37 : vector<64x128xf32>
    %cst_25 = arith.constant dense<0xFF800000> : vector<64xf32>
    %39 = vector.multi_reduction <maximumf>, %38, %cst_25 [1] : vector<64x128xf32> to vector<64xf32>
    %40 = vector.shape_cast %39 : vector<64xf32> to vector<64x1xf32>
    %cst_26 = arith.constant 1.000000e+00 : f32
    %41 = vector.broadcast %cst_26 : f32 to vector<64x1xf32>
    %42 = arith.subf %40, %41 : vector<64x1xf32>
    %cst_27 = arith.constant -4.85203028 : f32
    %43 = arith.mulf %35, %cst_27 : f32
    %44 = math.exp %43 : f32
    %cst_28 = arith.constant 1.000000e+00 : f32
    %45 = arith.subf %cst_28, %44 : f32
    %c0_i32 = arith.constant 0 : i32
    %c23_i32 = arith.constant 23 : i32
    %46 = arith.addi %c0_i32, %c23_i32 : i32
    %c1_i32 = arith.constant 1 : i32
    %47:3 = scf.for %arg17 = %c0_i32 to %46 step %c1_i32 iter_args(%arg18 = %42, %arg19 = %45, %arg20 = %42) -> (vector<64x1xf32>, f32, vector<64x1xf32>)  : i32 {
      %cst_122 = arith.constant 5.000000e-01 : f32
      %277 = arith.mulf %arg19, %cst_122 : f32
      %278 = vector.broadcast %277 : f32 to vector<64x1xf32>
      %279 = arith.addf %arg18, %278 : vector<64x1xf32>
      %280 = vector.broadcast %279 : vector<64x1xf32> to vector<64x128xf32>
      %281 = arith.subf %38, %280 : vector<64x128xf32>
      %cst_123 = arith.constant 0.000000e+00 : f32
      %282 = vector.broadcast %cst_123 : f32 to vector<64x128xf32>
      %283 = arith.maximumf %281, %282 : vector<64x128xf32>
      %cst_124 = arith.constant 0.000000e+00 : f32
      %284 = vector.broadcast %cst_124 : f32 to vector<64x128xf32>
      %285 = arith.cmpf ogt, %283, %284 : vector<64x128xf32>
      %c1_i32_125 = arith.constant 1 : i32
      %286 = arith.sitofp %c1_i32_125 : i32 to f32
      %287 = vector.broadcast %286 : f32 to vector<64x128xf32>
      %288 = arith.select %285, %283, %287 : vector<64x128xi1>, vector<64x128xf32>
      %289 = math.log %288 : vector<64x128xf32>
      %290 = vector.broadcast %36 : f32 to vector<64x128xf32>
      %291 = arith.mulf %290, %289 : vector<64x128xf32>
      %292 = math.exp %291 : vector<64x128xf32>
      %c0_i32_126 = arith.constant 0 : i32
      %293 = arith.sitofp %c0_i32_126 : i32 to f32
      %294 = vector.broadcast %293 : f32 to vector<64x128xf32>
      %295 = arith.select %285, %292, %294 : vector<64x128xi1>, vector<64x128xf32>
      %cst_127 = arith.constant dense<0.000000e+00> : vector<64xf32>
      %296 = vector.multi_reduction <add>, %295, %cst_127 [1] : vector<64x128xf32> to vector<64xf32>
      %297 = vector.shape_cast %296 : vector<64xf32> to vector<64x1xf32>
      %cst_128 = arith.constant 1.000000e+00 : f32
      %298 = vector.broadcast %cst_128 : f32 to vector<64x1xf32>
      %299 = arith.cmpf oge, %297, %298 : vector<64x1xf32>
      %300 = arith.select %299, %279, %arg18 : vector<64x1xi1>, vector<64x1xf32>
      scf.yield %300, %277, %279 : vector<64x1xf32>, f32, vector<64x1xf32>
    }
    %48 = vector.broadcast %47#2 : vector<64x1xf32> to vector<64x128xf32>
    %49 = arith.subf %38, %48 : vector<64x128xf32>
    %cst_29 = arith.constant 0.000000e+00 : f32
    %50 = vector.broadcast %cst_29 : f32 to vector<64x128xf32>
    %51 = arith.maximumf %49, %50 : vector<64x128xf32>
    %cst_30 = arith.constant 0.000000e+00 : f32
    %52 = vector.broadcast %cst_30 : f32 to vector<64x128xf32>
    %53 = arith.cmpf ogt, %51, %52 : vector<64x128xf32>
    %c1_i32_31 = arith.constant 1 : i32
    %54 = arith.sitofp %c1_i32_31 : i32 to f32
    %55 = vector.broadcast %54 : f32 to vector<64x128xf32>
    %56 = arith.select %53, %51, %55 : vector<64x128xi1>, vector<64x128xf32>
    %57 = math.log %56 : vector<64x128xf32>
    %58 = vector.broadcast %36 : f32 to vector<64x128xf32>
    %59 = arith.mulf %58, %57 : vector<64x128xf32>
    %60 = math.exp %59 : vector<64x128xf32>
    %c0_i32_32 = arith.constant 0 : i32
    %61 = arith.sitofp %c0_i32_32 : i32 to f32
    %62 = vector.broadcast %61 : f32 to vector<64x128xf32>
    %63 = arith.select %53, %60, %62 : vector<64x128xi1>, vector<64x128xf32>
    %cst_33 = arith.constant dense<0.000000e+00> : vector<64xf32>
    %64 = vector.multi_reduction <add>, %63, %cst_33 [1] : vector<64x128xf32> to vector<64xf32>
    %65 = vector.shape_cast %64 : vector<64xf32> to vector<64x1xf32>
    %66 = tpu.reciprocal %65 {approx = true} : vector<64x1xf32> -> vector<64x1xf32>
    %67 = vector.broadcast %66 : vector<64x1xf32> to vector<64x128xf32>
    %68 = arith.mulf %63, %67 : vector<64x128xf32>
    %69 = arith.truncf %68 : vector<64x128xf32> to vector<64x128xbf16>
    %70 = arith.truncf %20 : vector<128x16xf32> to vector<128x16xbf16>
    %cst_34 = arith.constant dense<0.000000e+00> : vector<64x16xf32>
    %71 = tpu.matmul %69, %70, %cst_34 {dimension_numbers = #tpu.dot_dimension_numbers<[1], [0], [0], [1], [0, 0, 1, 1], [], []>} : vector<64x128xbf16>, vector<128x16xbf16>, vector<64x16xf32> -> vector<64x16xf32>
    %c0_35 = arith.constant 0 : index
    %c0_36 = arith.constant 0 : index
    %72 = vector.load %arg16[%c0_35, %c0_36] : memref<64x64xf32, #tpu.memory_space<vmem>>, vector<64x16xf32>
    tpu.vector_store %arg16[%c0_35, %c0_36], %71 {strides = array<i32>} : memref<64x64xf32, #tpu.memory_space<vmem>>, vector<64x16xf32>,
    %c1 = arith.constant 1 : index
    %73 = memref.load %arg2[%c1] : memref<4xf32, #tpu.memory_space<smem>>
    %c1_37 = arith.constant 1 : index
    %74 = memref.load %arg3[%c1_37] : memref<4xf32, #tpu.memory_space<smem>>
    %75 = vector.extract_strided_slice %8 {offsets = [0, 16], sizes = [64, 16], strides = [1, 1]} : vector<64x64xf32> to vector<64x16xf32>
    %c0_38 = arith.constant 0 : index
    %c16 = arith.constant 16 : index
    %76 = vector.load %arg15[%c0_38, %c16] : memref<128x128xf32, #tpu.memory_space<vmem>>, vector<128x16xf32>
    %c0_39 = arith.constant 0 : index
    %c80 = arith.constant 80 : index
    %77 = vector.load %arg15[%c0_39, %c80] : memref<128x128xf32, #tpu.memory_space<vmem>>, vector<128x16xf32>
    %78 = arith.truncf %75 : vector<64x16xf32> to vector<64x16xbf16>
    %79 = arith.truncf %76 : vector<128x16xf32> to vector<128x16xbf16>
    %cst_40 = arith.constant dense<0.000000e+00> : vector<64x128xf32>
    %80 = tpu.matmul %78, %79, %cst_40 {dimension_numbers = #tpu.dot_dimension_numbers<[1], [1], [0], [0], [0, 0, 1, 0], [], []>} : vector<64x16xbf16>, vector<128x16xbf16>, vector<64x128xf32> -> vector<64x128xf32>
    %81 = tpu.iota {dimensions = array<i32: 0>} : vector<64x128xi32>
    %82 = vector.broadcast %15 : i32 to vector<64x128xi32>
    %83 = arith.addi %81, %82 : vector<64x128xi32>
    %84 = tpu.iota {dimensions = array<i32: 1>} : vector<64x128xi32>
    %85 = arith.subi %83, %84 : vector<64x128xi32>
    %86 = math.absi %85 : vector<64x128xi32>
    %87 = arith.sitofp %86 : vector<64x128xi32> to vector<64x128xf32>
    %88 = vector.broadcast %74 : f32 to vector<64x128xf32>
    %89 = arith.cmpf ogt, %87, %88 : vector<64x128xf32>
    %cst_41 = arith.constant -1.000000e+30 : f32
    %90 = vector.broadcast %cst_41 : f32 to vector<64x128xf32>
    %91 = arith.select %89, %90, %80 : vector<64x128xi1>, vector<64x128xf32>
    %cst_42 = arith.constant 1.000000e+00 : f32
    %92 = arith.subf %73, %cst_42 : f32
    %cst_43 = arith.constant 1.000000e+00 : f32
    %93 = arith.divf %cst_43, %92 : f32
    %94 = vector.broadcast %92 : f32 to vector<64x128xf32>
    %95 = arith.mulf %91, %94 : vector<64x128xf32>
    %cst_44 = arith.constant dense<0xFF800000> : vector<64xf32>
    %96 = vector.multi_reduction <maximumf>, %95, %cst_44 [1] : vector<64x128xf32> to vector<64xf32>
    %97 = vector.shape_cast %96 : vector<64xf32> to vector<64x1xf32>
    %cst_45 = arith.constant 1.000000e+00 : f32
    %98 = vector.broadcast %cst_45 : f32 to vector<64x1xf32>
    %99 = arith.subf %97, %98 : vector<64x1xf32>
    %cst_46 = arith.constant -4.85203028 : f32
    %100 = arith.mulf %92, %cst_46 : f32
    %101 = math.exp %100 : f32
    %cst_47 = arith.constant 1.000000e+00 : f32
    %102 = arith.subf %cst_47, %101 : f32
    %c0_i32_48 = arith.constant 0 : i32
    %c23_i32_49 = arith.constant 23 : i32
    %103 = arith.addi %c0_i32_48, %c23_i32_49 : i32
    %c1_i32_50 = arith.constant 1 : i32
    %104:3 = scf.for %arg17 = %c0_i32_48 to %103 step %c1_i32_50 iter_args(%arg18 = %99, %arg19 = %102, %arg20 = %99) -> (vector<64x1xf32>, f32, vector<64x1xf32>)  : i32 {
      %cst_122 = arith.constant 5.000000e-01 : f32
      %277 = arith.mulf %arg19, %cst_122 : f32
      %278 = vector.broadcast %277 : f32 to vector<64x1xf32>
      %279 = arith.addf %arg18, %278 : vector<64x1xf32>
      %280 = vector.broadcast %279 : vector<64x1xf32> to vector<64x128xf32>
      %281 = arith.subf %95, %280 : vector<64x128xf32>
      %cst_123 = arith.constant 0.000000e+00 : f32
      %282 = vector.broadcast %cst_123 : f32 to vector<64x128xf32>
      %283 = arith.maximumf %281, %282 : vector<64x128xf32>
      %cst_124 = arith.constant 0.000000e+00 : f32
      %284 = vector.broadcast %cst_124 : f32 to vector<64x128xf32>
      %285 = arith.cmpf ogt, %283, %284 : vector<64x128xf32>
      %c1_i32_125 = arith.constant 1 : i32
      %286 = arith.sitofp %c1_i32_125 : i32 to f32
      %287 = vector.broadcast %286 : f32 to vector<64x128xf32>
      %288 = arith.select %285, %283, %287 : vector<64x128xi1>, vector<64x128xf32>
      %289 = math.log %288 : vector<64x128xf32>
      %290 = vector.broadcast %93 : f32 to vector<64x128xf32>
      %291 = arith.mulf %290, %289 : vector<64x128xf32>
      %292 = math.exp %291 : vector<64x128xf32>
      %c0_i32_126 = arith.constant 0 : i32
      %293 = arith.sitofp %c0_i32_126 : i32 to f32
      %294 = vector.broadcast %293 : f32 to vector<64x128xf32>
      %295 = arith.select %285, %292, %294 : vector<64x128xi1>, vector<64x128xf32>
      %cst_127 = arith.constant dense<0.000000e+00> : vector<64xf32>
      %296 = vector.multi_reduction <add>, %295, %cst_127 [1] : vector<64x128xf32> to vector<64xf32>
      %297 = vector.shape_cast %296 : vector<64xf32> to vector<64x1xf32>
      %cst_128 = arith.constant 1.000000e+00 : f32
      %298 = vector.broadcast %cst_128 : f32 to vector<64x1xf32>
      %299 = arith.cmpf oge, %297, %298 : vector<64x1xf32>
      %300 = arith.select %299, %279, %arg18 : vector<64x1xi1>, vector<64x1xf32>
      scf.yield %300, %277, %279 : vector<64x1xf32>, f32, vector<64x1xf32>
    }
    %105 = vector.broadcast %104#2 : vector<64x1xf32> to vector<64x128xf32>
    %106 = arith.subf %95, %105 : vector<64x128xf32>
    %cst_51 = arith.constant 0.000000e+00 : f32
    %107 = vector.broadcast %cst_51 : f32 to vector<64x128xf32>
    %108 = arith.maximumf %106, %107 : vector<64x128xf32>
    %cst_52 = arith.constant 0.000000e+00 : f32
    %109 = vector.broadcast %cst_52 : f32 to vector<64x128xf32>
    %110 = arith.cmpf ogt, %108, %109 : vector<64x128xf32>
    %c1_i32_53 = arith.constant 1 : i32
    %111 = arith.sitofp %c1_i32_53 : i32 to f32
    %112 = vector.broadcast %111 : f32 to vector<64x128xf32>
    %113 = arith.select %110, %108, %112 : vector<64x128xi1>, vector<64x128xf32>
    %114 = math.log %113 : vector<64x128xf32>
    %115 = vector.broadcast %93 : f32 to vector<64x128xf32>
    %116 = arith.mulf %115, %114 : vector<64x128xf32>
    %117 = math.exp %116 : vector<64x128xf32>
    %c0_i32_54 = arith.constant 0 : i32
    %118 = arith.sitofp %c0_i32_54 : i32 to f32
    %119 = vector.broadcast %118 : f32 to vector<64x128xf32>
    %120 = arith.select %110, %117, %119 : vector<64x128xi1>, vector<64x128xf32>
    %cst_55 = arith.constant dense<0.000000e+00> : vector<64xf32>
    %121 = vector.multi_reduction <add>, %120, %cst_55 [1] : vector<64x128xf32> to vector<64xf32>
    %122 = vector.shape_cast %121 : vector<64xf32> to vector<64x1xf32>
    %123 = tpu.reciprocal %122 {approx = true} : vector<64x1xf32> -> vector<64x1xf32>
    %124 = vector.broadcast %123 : vector<64x1xf32> to vector<64x128xf32>
    %125 = arith.mulf %120, %124 : vector<64x128xf32>
    %126 = arith.truncf %125 : vector<64x128xf32> to vector<64x128xbf16>
    %127 = arith.truncf %77 : vector<128x16xf32> to vector<128x16xbf16>
    %cst_56 = arith.constant dense<0.000000e+00> : vector<64x16xf32>
    %128 = tpu.matmul %126, %127, %cst_56 {dimension_numbers = #tpu.dot_dimension_numbers<[1], [0], [0], [1], [0, 0, 1, 1], [], []>} : vector<64x128xbf16>, vector<128x16xbf16>, vector<64x16xf32> -> vector<64x16xf32>
    %c0_57 = arith.constant 0 : index
    %c16_58 = arith.constant 16 : index
    %129 = vector.load %arg16[%c0_57, %c16_58] : memref<64x64xf32, #tpu.memory_space<vmem>>, vector<64x16xf32>
    tpu.vector_store %arg16[%c0_57, %c16_58], %128 {strides = array<i32>} : memref<64x64xf32, #tpu.memory_space<vmem>>, vector<64x16xf32>,
    %c2 = arith.constant 2 : index
    %130 = memref.load %arg2[%c2] : memref<4xf32, #tpu.memory_space<smem>>
    %c2_59 = arith.constant 2 : index
    %131 = memref.load %arg3[%c2_59] : memref<4xf32, #tpu.memory_space<smem>>
    %132 = vector.extract_strided_slice %8 {offsets = [0, 32], sizes = [64, 16], strides = [1, 1]} : vector<64x64xf32> to vector<64x16xf32>
    %c0_60 = arith.constant 0 : index
    %c32 = arith.constant 32 : index
    %133 = vector.load %arg15[%c0_60, %c32] : memref<128x128xf32, #tpu.memory_space<vmem>>, vector<128x16xf32>
    %c0_61 = arith.constant 0 : index
    %c96 = arith.constant 96 : index
    %134 = vector.load %arg15[%c0_61, %c96] : memref<128x128xf32, #tpu.memory_space<vmem>>, vector<128x16xf32>
    %135 = arith.truncf %132 : vector<64x16xf32> to vector<64x16xbf16>
    %136 = arith.truncf %133 : vector<128x16xf32> to vector<128x16xbf16>
    %cst_62 = arith.constant dense<0.000000e+00> : vector<64x128xf32>
    %137 = tpu.matmul %135, %136, %cst_62 {dimension_numbers = #tpu.dot_dimension_numbers<[1], [1], [0], [0], [0, 0, 1, 0], [], []>} : vector<64x16xbf16>, vector<128x16xbf16>, vector<64x128xf32> -> vector<64x128xf32>
    %138 = tpu.iota {dimensions = array<i32: 0>} : vector<64x128xi32>
    %139 = vector.broadcast %15 : i32 to vector<64x128xi32>
    %140 = arith.addi %138, %139 : vector<64x128xi32>
    %141 = tpu.iota {dimensions = array<i32: 1>} : vector<64x128xi32>
    %142 = arith.subi %140, %141 : vector<64x128xi32>
    %143 = math.absi %142 : vector<64x128xi32>
    %144 = arith.sitofp %143 : vector<64x128xi32> to vector<64x128xf32>
    %145 = vector.broadcast %131 : f32 to vector<64x128xf32>
    %146 = arith.cmpf ogt, %144, %145 : vector<64x128xf32>
    %cst_63 = arith.constant -1.000000e+30 : f32
    %147 = vector.broadcast %cst_63 : f32 to vector<64x128xf32>
    %148 = arith.select %146, %147, %137 : vector<64x128xi1>, vector<64x128xf32>
    %cst_64 = arith.constant 1.000000e+00 : f32
    %149 = arith.subf %130, %cst_64 : f32
    %cst_65 = arith.constant 1.000000e+00 : f32
    %150 = arith.divf %cst_65, %149 : f32
    %151 = vector.broadcast %149 : f32 to vector<64x128xf32>
    %152 = arith.mulf %148, %151 : vector<64x128xf32>
    %cst_66 = arith.constant dense<0xFF800000> : vector<64xf32>
    %153 = vector.multi_reduction <maximumf>, %152, %cst_66 [1] : vector<64x128xf32> to vector<64xf32>
    %154 = vector.shape_cast %153 : vector<64xf32> to vector<64x1xf32>
    %cst_67 = arith.constant 1.000000e+00 : f32
    %155 = vector.broadcast %cst_67 : f32 to vector<64x1xf32>
    %156 = arith.subf %154, %155 : vector<64x1xf32>
    %cst_68 = arith.constant -4.85203028 : f32
    %157 = arith.mulf %149, %cst_68 : f32
    %158 = math.exp %157 : f32
    %cst_69 = arith.constant 1.000000e+00 : f32
    %159 = arith.subf %cst_69, %158 : f32
    %c0_i32_70 = arith.constant 0 : i32
    %c23_i32_71 = arith.constant 23 : i32
    %160 = arith.addi %c0_i32_70, %c23_i32_71 : i32
    %c1_i32_72 = arith.constant 1 : i32
    %161:3 = scf.for %arg17 = %c0_i32_70 to %160 step %c1_i32_72 iter_args(%arg18 = %156, %arg19 = %159, %arg20 = %156) -> (vector<64x1xf32>, f32, vector<64x1xf32>)  : i32 {
      %cst_122 = arith.constant 5.000000e-01 : f32
      %277 = arith.mulf %arg19, %cst_122 : f32
      %278 = vector.broadcast %277 : f32 to vector<64x1xf32>
      %279 = arith.addf %arg18, %278 : vector<64x1xf32>
      %280 = vector.broadcast %279 : vector<64x1xf32> to vector<64x128xf32>
      %281 = arith.subf %152, %280 : vector<64x128xf32>
      %cst_123 = arith.constant 0.000000e+00 : f32
      %282 = vector.broadcast %cst_123 : f32 to vector<64x128xf32>
      %283 = arith.maximumf %281, %282 : vector<64x128xf32>
      %cst_124 = arith.constant 0.000000e+00 : f32
      %284 = vector.broadcast %cst_124 : f32 to vector<64x128xf32>
      %285 = arith.cmpf ogt, %283, %284 : vector<64x128xf32>
      %c1_i32_125 = arith.constant 1 : i32
      %286 = arith.sitofp %c1_i32_125 : i32 to f32
      %287 = vector.broadcast %286 : f32 to vector<64x128xf32>
      %288 = arith.select %285, %283, %287 : vector<64x128xi1>, vector<64x128xf32>
      %289 = math.log %288 : vector<64x128xf32>
      %290 = vector.broadcast %150 : f32 to vector<64x128xf32>
      %291 = arith.mulf %290, %289 : vector<64x128xf32>
      %292 = math.exp %291 : vector<64x128xf32>
      %c0_i32_126 = arith.constant 0 : i32
      %293 = arith.sitofp %c0_i32_126 : i32 to f32
      %294 = vector.broadcast %293 : f32 to vector<64x128xf32>
      %295 = arith.select %285, %292, %294 : vector<64x128xi1>, vector<64x128xf32>
      %cst_127 = arith.constant dense<0.000000e+00> : vector<64xf32>
      %296 = vector.multi_reduction <add>, %295, %cst_127 [1] : vector<64x128xf32> to vector<64xf32>
      %297 = vector.shape_cast %296 : vector<64xf32> to vector<64x1xf32>
      %cst_128 = arith.constant 1.000000e+00 : f32
      %298 = vector.broadcast %cst_128 : f32 to vector<64x1xf32>
      %299 = arith.cmpf oge, %297, %298 : vector<64x1xf32>
      %300 = arith.select %299, %279, %arg18 : vector<64x1xi1>, vector<64x1xf32>
      scf.yield %300, %277, %279 : vector<64x1xf32>, f32, vector<64x1xf32>
    }
    %162 = vector.broadcast %161#2 : vector<64x1xf32> to vector<64x128xf32>
    %163 = arith.subf %152, %162 : vector<64x128xf32>
    %cst_73 = arith.constant 0.000000e+00 : f32
    %164 = vector.broadcast %cst_73 : f32 to vector<64x128xf32>
    %165 = arith.maximumf %163, %164 : vector<64x128xf32>
    %cst_74 = arith.constant 0.000000e+00 : f32
    %166 = vector.broadcast %cst_74 : f32 to vector<64x128xf32>
    %167 = arith.cmpf ogt, %165, %166 : vector<64x128xf32>
    %c1_i32_75 = arith.constant 1 : i32
    %168 = arith.sitofp %c1_i32_75 : i32 to f32
    %169 = vector.broadcast %168 : f32 to vector<64x128xf32>
    %170 = arith.select %167, %165, %169 : vector<64x128xi1>, vector<64x128xf32>
    %171 = math.log %170 : vector<64x128xf32>
    %172 = vector.broadcast %150 : f32 to vector<64x128xf32>
    %173 = arith.mulf %172, %171 : vector<64x128xf32>
    %174 = math.exp %173 : vector<64x128xf32>
    %c0_i32_76 = arith.constant 0 : i32
    %175 = arith.sitofp %c0_i32_76 : i32 to f32
    %176 = vector.broadcast %175 : f32 to vector<64x128xf32>
    %177 = arith.select %167, %174, %176 : vector<64x128xi1>, vector<64x128xf32>
    %cst_77 = arith.constant dense<0.000000e+00> : vector<64xf32>
    %178 = vector.multi_reduction <add>, %177, %cst_77 [1] : vector<64x128xf32> to vector<64xf32>
    %179 = vector.shape_cast %178 : vector<64xf32> to vector<64x1xf32>
    %180 = tpu.reciprocal %179 {approx = true} : vector<64x1xf32> -> vector<64x1xf32>
    %181 = vector.broadcast %180 : vector<64x1xf32> to vector<64x128xf32>
    %182 = arith.mulf %177, %181 : vector<64x128xf32>
    %183 = arith.truncf %182 : vector<64x128xf32> to vector<64x128xbf16>
    %184 = arith.truncf %134 : vector<128x16xf32> to vector<128x16xbf16>
    %cst_78 = arith.constant dense<0.000000e+00> : vector<64x16xf32>
    %185 = tpu.matmul %183, %184, %cst_78 {dimension_numbers = #tpu.dot_dimension_numbers<[1], [0], [0], [1], [0, 0, 1, 1], [], []>} : vector<64x128xbf16>, vector<128x16xbf16>, vector<64x16xf32> -> vector<64x16xf32>
    %c0_79 = arith.constant 0 : index
    %c32_80 = arith.constant 32 : index
    %186 = vector.load %arg16[%c0_79, %c32_80] : memref<64x64xf32, #tpu.memory_space<vmem>>, vector<64x16xf32>
    tpu.vector_store %arg16[%c0_79, %c32_80], %185 {strides = array<i32>} : memref<64x64xf32, #tpu.memory_space<vmem>>, vector<64x16xf32>,
    %c3 = arith.constant 3 : index
    %187 = memref.load %arg2[%c3] : memref<4xf32, #tpu.memory_space<smem>>
    %c3_81 = arith.constant 3 : index
    %188 = memref.load %arg3[%c3_81] : memref<4xf32, #tpu.memory_space<smem>>
    %189 = vector.extract_strided_slice %8 {offsets = [0, 48], sizes = [64, 16], strides = [1, 1]} : vector<64x64xf32> to vector<64x16xf32>
    %c0_82 = arith.constant 0 : index
    %c48 = arith.constant 48 : index
    %190 = vector.load %arg15[%c0_82, %c48] : memref<128x128xf32, #tpu.memory_space<vmem>>, vector<128x16xf32>
    %c0_83 = arith.constant 0 : index
    %c112 = arith.constant 112 : index
    %191 = vector.load %arg15[%c0_83, %c112] : memref<128x128xf32, #tpu.memory_space<vmem>>, vector<128x16xf32>
    %192 = arith.truncf %189 : vector<64x16xf32> to vector<64x16xbf16>
    %193 = arith.truncf %190 : vector<128x16xf32> to vector<128x16xbf16>
    %cst_84 = arith.constant dense<0.000000e+00> : vector<64x128xf32>
    %194 = tpu.matmul %192, %193, %cst_84 {dimension_numbers = #tpu.dot_dimension_numbers<[1], [1], [0], [0], [0, 0, 1, 0], [], []>} : vector<64x16xbf16>, vector<128x16xbf16>, vector<64x128xf32> -> vector<64x128xf32>
    %195 = tpu.iota {dimensions = array<i32: 0>} : vector<64x128xi32>
    %196 = vector.broadcast %15 : i32 to vector<64x128xi32>
    %197 = arith.addi %195, %196 : vector<64x128xi32>
    %198 = tpu.iota {dimensions = array<i32: 1>} : vector<64x128xi32>
    %199 = arith.subi %197, %198 : vector<64x128xi32>
    %200 = math.absi %199 : vector<64x128xi32>
    %201 = arith.sitofp %200 : vector<64x128xi32> to vector<64x128xf32>
    %202 = vector.broadcast %188 : f32 to vector<64x128xf32>
    %203 = arith.cmpf ogt, %201, %202 : vector<64x128xf32>
    %cst_85 = arith.constant -1.000000e+30 : f32
    %204 = vector.broadcast %cst_85 : f32 to vector<64x128xf32>
    %205 = arith.select %203, %204, %194 : vector<64x128xi1>, vector<64x128xf32>
    %cst_86 = arith.constant 1.000000e+00 : f32
    %206 = arith.subf %187, %cst_86 : f32
    %cst_87 = arith.constant 1.000000e+00 : f32
    %207 = arith.divf %cst_87, %206 : f32
    %208 = vector.broadcast %206 : f32 to vector<64x128xf32>
    %209 = arith.mulf %205, %208 : vector<64x128xf32>
    %cst_88 = arith.constant dense<0xFF800000> : vector<64xf32>
    %210 = vector.multi_reduction <maximumf>, %209, %cst_88 [1] : vector<64x128xf32> to vector<64xf32>
    %211 = vector.shape_cast %210 : vector<64xf32> to vector<64x1xf32>
    %cst_89 = arith.constant 1.000000e+00 : f32
    %212 = vector.broadcast %cst_89 : f32 to vector<64x1xf32>
    %213 = arith.subf %211, %212 : vector<64x1xf32>
    %cst_90 = arith.constant -4.85203028 : f32
    %214 = arith.mulf %206, %cst_90 : f32
    %215 = math.exp %214 : f32
    %cst_91 = arith.constant 1.000000e+00 : f32
    %216 = arith.subf %cst_91, %215 : f32
    %c0_i32_92 = arith.constant 0 : i32
    %c23_i32_93 = arith.constant 23 : i32
    %217 = arith.addi %c0_i32_92, %c23_i32_93 : i32
    %c1_i32_94 = arith.constant 1 : i32
    %218:3 = scf.for %arg17 = %c0_i32_92 to %217 step %c1_i32_94 iter_args(%arg18 = %213, %arg19 = %216, %arg20 = %213) -> (vector<64x1xf32>, f32, vector<64x1xf32>)  : i32 {
      %cst_122 = arith.constant 5.000000e-01 : f32
      %277 = arith.mulf %arg19, %cst_122 : f32
      %278 = vector.broadcast %277 : f32 to vector<64x1xf32>
      %279 = arith.addf %arg18, %278 : vector<64x1xf32>
      %280 = vector.broadcast %279 : vector<64x1xf32> to vector<64x128xf32>
      %281 = arith.subf %209, %280 : vector<64x128xf32>
      %cst_123 = arith.constant 0.000000e+00 : f32
      %282 = vector.broadcast %cst_123 : f32 to vector<64x128xf32>
      %283 = arith.maximumf %281, %282 : vector<64x128xf32>
      %cst_124 = arith.constant 0.000000e+00 : f32
      %284 = vector.broadcast %cst_124 : f32 to vector<64x128xf32>
      %285 = arith.cmpf ogt, %283, %284 : vector<64x128xf32>
      %c1_i32_125 = arith.constant 1 : i32
      %286 = arith.sitofp %c1_i32_125 : i32 to f32
      %287 = vector.broadcast %286 : f32 to vector<64x128xf32>
      %288 = arith.select %285, %283, %287 : vector<64x128xi1>, vector<64x128xf32>
      %289 = math.log %288 : vector<64x128xf32>
      %290 = vector.broadcast %207 : f32 to vector<64x128xf32>
      %291 = arith.mulf %290, %289 : vector<64x128xf32>
      %292 = math.exp %291 : vector<64x128xf32>
      %c0_i32_126 = arith.constant 0 : i32
      %293 = arith.sitofp %c0_i32_126 : i32 to f32
      %294 = vector.broadcast %293 : f32 to vector<64x128xf32>
      %295 = arith.select %285, %292, %294 : vector<64x128xi1>, vector<64x128xf32>
      %cst_127 = arith.constant dense<0.000000e+00> : vector<64xf32>
      %296 = vector.multi_reduction <add>, %295, %cst_127 [1] : vector<64x128xf32> to vector<64xf32>
      %297 = vector.shape_cast %296 : vector<64xf32> to vector<64x1xf32>
      %cst_128 = arith.constant 1.000000e+00 : f32
      %298 = vector.broadcast %cst_128 : f32 to vector<64x1xf32>
      %299 = arith.cmpf oge, %297, %298 : vector<64x1xf32>
      %300 = arith.select %299, %279, %arg18 : vector<64x1xi1>, vector<64x1xf32>
      scf.yield %300, %277, %279 : vector<64x1xf32>, f32, vector<64x1xf32>
    }
    %219 = vector.broadcast %218#2 : vector<64x1xf32> to vector<64x128xf32>
    %220 = arith.subf %209, %219 : vector<64x128xf32>
    %cst_95 = arith.constant 0.000000e+00 : f32
    %221 = vector.broadcast %cst_95 : f32 to vector<64x128xf32>
    %222 = arith.maximumf %220, %221 : vector<64x128xf32>
    %cst_96 = arith.constant 0.000000e+00 : f32
    %223 = vector.broadcast %cst_96 : f32 to vector<64x128xf32>
    %224 = arith.cmpf ogt, %222, %223 : vector<64x128xf32>
    %c1_i32_97 = arith.constant 1 : i32
    %225 = arith.sitofp %c1_i32_97 : i32 to f32
    %226 = vector.broadcast %225 : f32 to vector<64x128xf32>
    %227 = arith.select %224, %222, %226 : vector<64x128xi1>, vector<64x128xf32>
    %228 = math.log %227 : vector<64x128xf32>
    %229 = vector.broadcast %207 : f32 to vector<64x128xf32>
    %230 = arith.mulf %229, %228 : vector<64x128xf32>
    %231 = math.exp %230 : vector<64x128xf32>
    %c0_i32_98 = arith.constant 0 : i32
    %232 = arith.sitofp %c0_i32_98 : i32 to f32
    %233 = vector.broadcast %232 : f32 to vector<64x128xf32>
    %234 = arith.select %224, %231, %233 : vector<64x128xi1>, vector<64x128xf32>
    %cst_99 = arith.constant dense<0.000000e+00> : vector<64xf32>
    %235 = vector.multi_reduction <add>, %234, %cst_99 [1] : vector<64x128xf32> to vector<64xf32>
    %236 = vector.shape_cast %235 : vector<64xf32> to vector<64x1xf32>
    %237 = tpu.reciprocal %236 {approx = true} : vector<64x1xf32> -> vector<64x1xf32>
    %238 = vector.broadcast %237 : vector<64x1xf32> to vector<64x128xf32>
    %239 = arith.mulf %234, %238 : vector<64x128xf32>
    %240 = arith.truncf %239 : vector<64x128xf32> to vector<64x128xbf16>
    %241 = arith.truncf %191 : vector<128x16xf32> to vector<128x16xbf16>
    %cst_100 = arith.constant dense<0.000000e+00> : vector<64x16xf32>
    %242 = tpu.matmul %240, %241, %cst_100 {dimension_numbers = #tpu.dot_dimension_numbers<[1], [0], [0], [1], [0, 0, 1, 1], [], []>} : vector<64x128xbf16>, vector<128x16xbf16>, vector<64x16xf32> -> vector<64x16xf32>
    %c0_101 = arith.constant 0 : index
    %c48_102 = arith.constant 48 : index
    %243 = vector.load %arg16[%c0_101, %c48_102] : memref<64x64xf32, #tpu.memory_space<vmem>>, vector<64x16xf32>
    tpu.vector_store %arg16[%c0_101, %c48_102], %242 {strides = array<i32>} : memref<64x64xf32, #tpu.memory_space<vmem>>, vector<64x16xf32>,
    %c0_103 = arith.constant 0 : index
    %c0_104 = arith.constant 0 : index
    %244 = vector.load %arg16[%c0_103, %c0_104] : memref<64x64xf32, #tpu.memory_space<vmem>>, vector<64x64xf32>
    %cst_105 = arith.constant dense<0.000000e+00> : vector<64xf32>
    %245 = vector.multi_reduction <add>, %244, %cst_105 [1] : vector<64x64xf32> to vector<64xf32>
    %246 = vector.shape_cast %245 : vector<64xf32> to vector<64x1xf32>
    %cst_106 = arith.constant 6.400000e+01 : f32
    %247 = vector.broadcast %cst_106 : f32 to vector<64x1xf32>
    %248 = arith.divf %246, %247 : vector<64x1xf32>
    %249 = vector.broadcast %248 : vector<64x1xf32> to vector<64x64xf32>
    %250 = arith.subf %244, %249 : vector<64x64xf32>
    %251 = arith.mulf %250, %250 : vector<64x64xf32>
    %cst_107 = arith.constant dense<0.000000e+00> : vector<64xf32>
    %252 = vector.multi_reduction <add>, %251, %cst_107 [1] : vector<64x64xf32> to vector<64xf32>
    %253 = vector.shape_cast %252 : vector<64xf32> to vector<64x1xf32>
    %cst_108 = arith.constant 6.400000e+01 : f32
    %254 = vector.broadcast %cst_108 : f32 to vector<64x1xf32>
    %255 = arith.divf %253, %254 : vector<64x1xf32>
    %256 = vector.broadcast %248 : vector<64x1xf32> to vector<64x64xf32>
    %257 = arith.subf %244, %256 : vector<64x64xf32>
    %cst_109 = arith.constant 9.99999974E-6 : f32
    %258 = vector.broadcast %cst_109 : f32 to vector<64x1xf32>
    %259 = arith.addf %255, %258 : vector<64x1xf32>
    %260 = math.rsqrt %259 : vector<64x1xf32>
    %261 = vector.broadcast %260 : vector<64x1xf32> to vector<64x64xf32>
    %262 = arith.mulf %257, %261 : vector<64x64xf32>
    %c0_110 = arith.constant 0 : index
    %c0_111 = arith.constant 0 : index
    %263 = vector.load %arg10[%c0_110, %c0_111] : memref<1x64xf32, #tpu.memory_space<vmem>>, vector<1x64xf32>
    %264 = vector.broadcast %263 : vector<1x64xf32> to vector<64x64xf32>
    %265 = arith.mulf %262, %264 : vector<64x64xf32>
    %c0_112 = arith.constant 0 : index
    %c0_113 = arith.constant 0 : index
    %266 = vector.load %arg11[%c0_112, %c0_113] : memref<1x64xf32, #tpu.memory_space<vmem>>, vector<1x64xf32>
    %267 = vector.broadcast %266 : vector<1x64xf32> to vector<64x64xf32>
    %268 = arith.addf %265, %267 : vector<64x64xf32>
    %c0_114 = arith.constant 0 : index
    %c0_115 = arith.constant 0 : index
    %269 = vector.load %arg12[%c0_114, %c0_115] : memref<64x64xf32, #tpu.memory_space<vmem>>, vector<64x64xf32>
    %cst_116 = arith.constant dense<0.000000e+00> : vector<64x64xf32>
    %270 = tpu.matmul %268, %269, %cst_116 {dimension_numbers = #tpu.dot_dimension_numbers<[1], [0], [0], [1], [0, 0, 1, 1], [], []>} : vector<64x64xf32>, vector<64x64xf32>, vector<64x64xf32> -> vector<64x64xf32>
    %c0_117 = arith.constant 0 : index
    %c0_118 = arith.constant 0 : index
    %271 = vector.load %arg13[%c0_117, %c0_118] : memref<1x64xf32, #tpu.memory_space<vmem>>, vector<1x64xf32>
    %272 = vector.broadcast %271 : vector<1x64xf32> to vector<64x64xf32>
    %273 = arith.addf %270, %272 : vector<64x64xf32>
    %c0_119 = arith.constant 0 : index
    %c0_120 = arith.constant 0 : index
    %c0_121 = arith.constant 0 : index
    %274 = vector.load %arg14[%c0_119, %c0_120, %c0_121] : memref<1x64x64xf32, #tpu.memory_space<vmem>>, vector<1x64x64xf32>
    %275 = vector.shape_cast %274 : vector<1x64x64xf32> to vector<64x64xf32>
    %276 = vector.shape_cast %273 : vector<64x64xf32> to vector<1x64x64xf32>
    tpu.vector_store %arg14[%c0_119, %c0_120, %c0_121], %276 {strides = array<i32>} : memref<1x64x64xf32, #tpu.memory_space<vmem>>, vector<1x64x64xf32>,
    return
  }
  func.func @transform_0(%arg0: i32, %arg1: i32) -> i32 {
    %c0_i32 = arith.constant 0 : i32
    %c0_i32_0 = arith.constant 0 : i32
    return %c0_i32 : i32
  }
  func.func @transform_1(%arg0: i32, %arg1: i32) -> i32 {
    %c0_i32 = arith.constant 0 : i32
    %c0_i32_0 = arith.constant 0 : i32
    return %c0_i32 : i32
  }
  func.func @transform_2(%arg0: i32, %arg1: i32) -> (i32, i32, i32) {
    %c0_i32 = arith.constant 0 : i32
    %c0_i32_0 = arith.constant 0 : i32
    return %arg0, %arg1, %c0_i32 : i32, i32, i32
  }
  func.func @transform_3(%arg0: i32, %arg1: i32) -> (i32, i32, i32) {
    %c0_i32 = arith.constant 0 : i32
    %c0_i32_0 = arith.constant 0 : i32
    %c0_i32_1 = arith.constant 0 : i32
    return %arg0, %c0_i32, %c0_i32_0 : i32, i32, i32
  }
  func.func @transform_4(%arg0: i32, %arg1: i32) -> (i32, i32) {
    %c0_i32 = arith.constant 0 : i32
    %c0_i32_0 = arith.constant 0 : i32
    %c0_i32_1 = arith.constant 0 : i32
    return %c0_i32, %c0_i32_0 : i32, i32
  }
  func.func @transform_5(%arg0: i32, %arg1: i32) -> (i32, i32) {
    %c0_i32 = arith.constant 0 : i32
    %c0_i32_0 = arith.constant 0 : i32
    %c0_i32_1 = arith.constant 0 : i32
    return %c0_i32, %c0_i32_0 : i32, i32
  }
  func.func @transform_6(%arg0: i32, %arg1: i32) -> (i32, i32) {
    %c0_i32 = arith.constant 0 : i32
    %c0_i32_0 = arith.constant 0 : i32
    %c0_i32_1 = arith.constant 0 : i32
    return %c0_i32, %c0_i32_0 : i32, i32
  }
  func.func @transform_7(%arg0: i32, %arg1: i32) -> (i32, i32) {
    %c0_i32 = arith.constant 0 : i32
    %c0_i32_0 = arith.constant 0 : i32
    %c0_i32_1 = arith.constant 0 : i32
    return %c0_i32, %c0_i32_0 : i32, i32
  }
  func.func @transform_8(%arg0: i32, %arg1: i32) -> (i32, i32) {
    %c0_i32 = arith.constant 0 : i32
    %c0_i32_0 = arith.constant 0 : i32
    %c0_i32_1 = arith.constant 0 : i32
    return %c0_i32, %c0_i32_0 : i32, i32
  }
  func.func @transform_9(%arg0: i32, %arg1: i32) -> (i32, i32) {
    %c0_i32 = arith.constant 0 : i32
    %c0_i32_0 = arith.constant 0 : i32
    %c0_i32_1 = arith.constant 0 : i32
    return %c0_i32, %c0_i32_0 : i32, i32
  }
  func.func @transform_10(%arg0: i32, %arg1: i32) -> (i32, i32) {
    %c0_i32 = arith.constant 0 : i32
    %c0_i32_0 = arith.constant 0 : i32
    %c0_i32_1 = arith.constant 0 : i32
    return %c0_i32, %c0_i32_0 : i32, i32
  }
  func.func @transform_11(%arg0: i32, %arg1: i32) -> (i32, i32) {
    %c0_i32 = arith.constant 0 : i32
    %c0_i32_0 = arith.constant 0 : i32
    %c0_i32_1 = arith.constant 0 : i32
    return %c0_i32, %c0_i32_0 : i32, i32
  }
  func.func @transform_12(%arg0: i32, %arg1: i32) -> (i32, i32, i32) {
    %c0_i32 = arith.constant 0 : i32
    %c0_i32_0 = arith.constant 0 : i32
    return %arg0, %arg1, %c0_i32 : i32, i32, i32
  }
}

</mosaic_0001>

<llo_original>
// kernel: squeeze.22
$region0: #{squeeze.22}
  %s0 = inlined_call_operand.vmem [shape: f32[4,16], index: 0, kind: input, shape index: {}]
  %s1 = inlined_call_operand.vmem [shape: f32[1,64], index: 1, kind: output, shape index: {}]
  $region1: #{squeeze.22} parent=0
    #allocation0 [shape = 'u8[4096]{0}', space=vmem, size = 0x1000, scoped, tag = 'scoped mem for output reshape']
    #allocation1 [shape = 'u8[4096]{0}', space=vmem, size = 0x1000, scoped, tag = 'scoped mem for input reshape']
    %s3 = sshllo.u32 0, 4
    %v4 = vld [vmem:[%s0] sm:%s3]
    %5 = vst [vmem:[#allocation1] sm:%s3] %v4
    %v6 = vld [vmem:[#allocation1] sm:$0x1]
    %vm7 = vcmask 130048
    %8 = vst.msk [vmem:[#allocation0] sm:$0x1] %vm7, %v6
    %s9 = scalar_lea.vmem [#allocation1], 3
    %v10 = vld [vmem:[%s9] sm:$0x1]
    %11 = vrot.lane.b32.xlu0 %v10, 48
    %v12 = vpop.permute.xlu0 %11
    %vm13 = vcmask 523648
    %14 = vst.msk [vmem:[#allocation0] sm:$0x1] %vm13, %v12
    %s15 = scalar_lea.vmem [#allocation1], 2
    %v16 = vld [vmem:[%s15] sm:$0x1]
    %17 = vrot.lane.b32.xlu0 %v16, 32
    %v18 = vpop.permute.xlu0 %17
    %vm19 = vcmask 392448
    %20 = vst.msk [vmem:[#allocation0] sm:$0x1] %vm19, %v18
    %s21 = scalar_lea.vmem [#allocation1], 1
    %v22 = vld [vmem:[%s21] sm:$0x1]
    %23 = vrot.lane.b32.xlu0 %v22, 16
    %v24 = vpop.permute.xlu0 %23
    %vm25 = vcmask 261248
    %26 = vst.msk [vmem:[#allocation0] sm:$0x1] %vm25, %v24
    %s28 = sshllo.u32 0, 1
    %v30 = vld [vmem:[#allocation0] sm:%s28]
    %s31 = sshllo.u32 0, 1
    %32 = vst [vmem:[%s1] sm:%s31] %v30

// kernel: custom_longformer_forward.4
$region0: #{custom_longformer_forward.4}
  #allocation0 [shape = 'u32[]', space=smem, size = 0x4, offset = 0x4, fixed_abs, tag = 'smem constant byte address 0x4 - core index']
  #allocation1 [shape = 'u32[144,128]{1,0:T(1,128)}', space=vmem, size = 0x12000, scoped, tag = 'internal scratch']
  %s0 = inlined_call_operand.vmem [shape: f32[256,64], index: 0, kind: input, shape index: {}]
  %s1 = inlined_call_operand.vmem [shape: f32[1,64], index: 1, kind: input, shape index: {}]
  %s2 = inlined_call_operand.vmem [shape: f32[1,64], index: 2, kind: input, shape index: {}]
  %s3 = inlined_call_operand.vmem [shape: f32[64,64], index: 3, kind: input, shape index: {}]
  %s4 = inlined_call_operand.vmem [shape: f32[1,64], index: 4, kind: input, shape index: {}]
  %s5 = inlined_call_operand.vmem [shape: f32[256,64], index: 5, kind: output, shape index: {}]
  %s6 = sld [smem:[#allocation0]]
  $region53: #{custom_longformer_forward.4} parent=0
    _
  %s8 = ssub.s32 1, %s6
  %s9 = scalar_select 0, %s8, %s6
  loop: start=0, step=1, limit=4
  $region2: #{custom_longformer_forward.4} parent=0 // loop_pre_header
    _
  $region3: #{custom_longformer_forward.4} parent=0 // loop_header
    %s11 = sphi 0, %s15
    %p12 = scmp.ge.s32.totalorder %s11, 4
    %s21 = sphi 0, %s23
    %s24 = sphi 0, %s21
    %s25 = sphi 0, %s24
    %s41 = sphi 0, %s25
    %s45 = sphi 0, %s45
    %s47 = sphi 0, %s45
    %s48 = sphi 0, %s47
    %s62 = sphi 0, %s48
    %s66 = sphi 0, %s66
    %s68 = sphi 0, %s66
    %s69 = sphi 0, %s68
    %s83 = sphi 0, %s69
    %s87 = sphi 0, %s87
    %s89 = sphi 0, %s87
    %s90 = sphi 0, %s89
    %s104 = sphi 0, %s90
    %s108 = sphi 0, %s108
    %s110 = sphi 0, %s108
    %s111 = sphi 0, %s110
    %s125 = sphi 0, %s111
    %s131 = sphi 0, %s133
    %s134 = sphi 0, %s131
    %s135 = sphi 0, %s134
    %s151 = sphi 0, %s135
  $region4: #{custom_longformer_forward.4} parent=0 // loop_header_branch
    %14 = sbr.rel (%p12) target = $region8
  $region5: #{custom_longformer_forward.4} parent=0 // loop_body
    %s16 = ssub.s32 %s11, 1
    %s17 = ssub.s32 %s11, 2
    %s18 = sadd.s32 %s11, 1
    %s19 = ssub.s32 %s11, %s18
    %p20 = scmp.eq.s32.totalorder %s19, 0
    %s22 = sadd.s32 %s21, 1
    %s23 = scalar_select %p20, %s21, %s22
    %p26 = pneg %p20
    %p27 = scmp.eq.s32.totalorder %s11, 1
    %p28 = por %p26, %p27
    %p29 = scmp.ne.s32.totalorder %s21, %s24
    %p30 = scmp.eq.s32.totalorder %s11, 0
    %p31 = por %p29, %p30
    %p32 = scmp.ne.s32.totalorder %s21, %s24
    %p33 = scmp.eq.s32.totalorder %s16, 1
    %p34 = por %p32, %p33
    %p35 = scmp.ne.s32.totalorder %s24, %s25
    %p36 = scmp.eq.s32.totalorder %s16, 0
    %p37 = por %p35, %p36
    %p38 = scmp.ne.s32.totalorder %s24, %s25
    %p39 = scmp.eq.s32.totalorder %s17, 1
    %p40 = por %p38, %p39
    %p42 = scmp.ne.s32.totalorder %s25, %s41
    %p43 = scmp.eq.s32.totalorder %s17, 0
    %p44 = por %p42, %p43
    %s46 = sadd.s32 %s45, 1
    %p49 = scmp.eq.s32.totalorder %s11, 1
    %p50 = scmp.ne.s32.totalorder %s45, %s47
    %p51 = scmp.eq.s32.totalorder %s11, 0
    %p52 = por %p50, %p51
    %p53 = scmp.ne.s32.totalorder %s45, %s47
    %p54 = scmp.eq.s32.totalorder %s16, 1
    %p55 = por %p53, %p54
    %p56 = scmp.ne.s32.totalorder %s47, %s48
    %p57 = scmp.eq.s32.totalorder %s16, 0
    %p58 = por %p56, %p57
    %p59 = scmp.ne.s32.totalorder %s47, %s48
    %p60 = scmp.eq.s32.totalorder %s17, 1
    %p61 = por %p59, %p60
    %p63 = scmp.ne.s32.totalorder %s48, %s62
    %p64 = scmp.eq.s32.totalorder %s17, 0
    %p65 = por %p63, %p64
    %s67 = sadd.s32 %s66, 1
    %p70 = scmp.eq.s32.totalorder %s11, 1
    %p71 = scmp.ne.s32.totalorder %s66, %s68
    %p72 = scmp.eq.s32.totalorder %s11, 0
    %p73 = por %p71, %p72
    %p74 = scmp.ne.s32.totalorder %s66, %s68
    %p75 = scmp.eq.s32.totalorder %s16, 1
    %p76 = por %p74, %p75
    %p77 = scmp.ne.s32.totalorder %s68, %s69
    %p78 = scmp.eq.s32.totalorder %s16, 0
    %p79 = por %p77, %p78
    %p80 = scmp.ne.s32.totalorder %s68, %s69
    %p81 = scmp.eq.s32.totalorder %s17, 1
    %p82 = por %p80, %p81
    %p84 = scmp.ne.s32.totalorder %s69, %s83
    %p85 = scmp.eq.s32.totalorder %s17, 0
    %p86 = por %p84, %p85
    %s88 = sadd.s32 %s87, 1
    %p91 = scmp.eq.s32.totalorder %s11, 1
    %p92 = scmp.ne.s32.totalorder %s87, %s89
    %p93 = scmp.eq.s32.totalorder %s11, 0
    %p94 = por %p92, %p93
    %p95 = scmp.ne.s32.totalorder %s87, %s89
    %p96 = scmp.eq.s32.totalorder %s16, 1
    %p97 = por %p95, %p96
    %p98 = scmp.ne.s32.totalorder %s89, %s90
    %p99 = scmp.eq.s32.totalorder %s16, 0
    %p100 = por %p98, %p99
    %p101 = scmp.ne.s32.totalorder %s89, %s90
    %p102 = scmp.eq.s32.totalorder %s17, 1
    %p103 = por %p101, %p102
    %p105 = scmp.ne.s32.totalorder %s90, %s104
    %p106 = scmp.eq.s32.totalorder %s17, 0
    %p107 = por %p105, %p106
    %s109 = sadd.s32 %s108, 1
    %p112 = scmp.eq.s32.totalorder %s11, 1
    %p113 = scmp.ne.s32.totalorder %s108, %s110
    %p114 = scmp.eq.s32.totalorder %s11, 0
    %p115 = por %p113, %p114
    %p116 = scmp.ne.s32.totalorder %s108, %s110
    %p117 = scmp.eq.s32.totalorder %s16, 1
    %p118 = por %p116, %p117
    %p119 = scmp.ne.s32.totalorder %s110, %s111
    %p120 = scmp.eq.s32.totalorder %s16, 0
    %p121 = por %p119, %p120
    %p122 = scmp.ne.s32.totalorder %s110, %s111
    %p123 = scmp.eq.s32.totalorder %s17, 1
    %p124 = por %p122, %p123
    %p126 = scmp.ne.s32.totalorder %s111, %s125
    %p127 = scmp.eq.s32.totalorder %s17, 0
    %p128 = por %p126, %p127
    %s129 = ssub.s32 %s11, %s18
    %p130 = scmp.eq.s32.totalorder %s129, 0
    %s132 = sadd.s32 %s131, 1
    %s133 = scalar_select %p130, %s131, %s132
    %p136 = pneg %p130
    %p137 = scmp.eq.s32.totalorder %s11, 1
    %p138 = por %p136, %p137
    %p139 = scmp.ne.s32.totalorder %s131, %s134
    %p140 = scmp.eq.s32.totalorder %s11, 0
    %p141 = por %p139, %p140
    %p142 = scmp.ne.s32.totalorder %s131, %s134
    %p143 = scmp.eq.s32.totalorder %s16, 1
    %p144 = por %p142, %p143
    %p145 = scmp.ne.s32.totalorder %s134, %s135
    %p146 = scmp.eq.s32.totalorder %s16, 0
    %p147 = por %p145, %p146
    %p148 = scmp.ne.s32.totalorder %s134, %s135
    %p149 = scmp.eq.s32.totalorder %s17, 1
    %p150 = por %p148, %p149
    %p152 = scmp.ne.s32.totalorder %s135, %s151
    %p153 = scmp.eq.s32.totalorder %s17, 0
    %p154 = por %p152, %p153
    %p155 = scmp.le.s32.totalorder 1, %s11
    %p156 = scmp.lt.s32.totalorder %s11, 3
    %p157 = pnand %p155, %p156
    %p158 = pneg %p157
    // Predicated region
    $region9: #{custom_longformer_forward.4} parent=5 // pred_check
      _
    $region10: #{custom_longformer_forward.4} parent=5 // pred_check_branch
      %160 = sbr.rel (%p157) target = $region12
    $region11: #{custom_longformer_forward.4} parent=5 // pred_region
      %s161 = ssub.s32 %s11, 1
      // Predicated region
      $region13: #{custom_longformer_forward.4} parent=11 // pred_check
        %p162 = pneg %p58
      $region14: #{custom_longformer_forward.4} parent=11 // pred_check_branch
        %164 = sbr.rel (%p162) target = $region16
      $region15: #{custom_longformer_forward.4} parent=11 // pred_region
        _
      $region16: #{custom_longformer_forward.4} parent=11 // pred_fallthru
        _
      // Predicated region
      $region17: #{custom_longformer_forward.4} parent=11 // pred_check
        %p165 = pneg %p79
      $region18: #{custom_longformer_forward.4} parent=11 // pred_check_branch
        %167 = sbr.rel (%p165) target = $region20
      $region19: #{custom_longformer_forward.4} parent=11 // pred_region
        _
      $region20: #{custom_longformer_forward.4} parent=11 // pred_fallthru
        _
      // Predicated region
      $region21: #{custom_longformer_forward.4} parent=11 // pred_check
        %p168 = pneg %p100
      $region22: #{custom_longformer_forward.4} parent=11 // pred_check_branch
        %170 = sbr.rel (%p168) target = $region24
      $region23: #{custom_longformer_forward.4} parent=11 // pred_region
        _
      $region24: #{custom_longformer_forward.4} parent=11 // pred_fallthru
        _
      // Predicated region
      $region25: #{custom_longformer_forward.4} parent=11 // pred_check
        %p171 = pneg %p121
      $region26: #{custom_longformer_forward.4} parent=11 // pred_check_branch
        %173 = sbr.rel (%p171) target = $region28
      $region27: #{custom_longformer_forward.4} parent=11 // pred_region
        _
      $region28: #{custom_longformer_forward.4} parent=11 // pred_fallthru
        _
    $region12: #{custom_longformer_forward.4} parent=5 // pred_fallthru
      _
    %p174 = scmp.lt.s32.totalorder %s11, 2
    // Predicated region
    $region29: #{custom_longformer_forward.4} parent=5 // pred_check
      %p175 = pneg %p174
    $region30: #{custom_longformer_forward.4} parent=5 // pred_check_branch
      %177 = sbr.rel (%p175) target = $region32
    $region31: #{custom_longformer_forward.4} parent=5 // pred_region
      // Predicated region
      $region33: #{custom_longformer_forward.4} parent=31 // pred_check
        %p178 = pneg %p31
      $region34: #{custom_longformer_forward.4} parent=31 // pred_check_branch
        %180 = sbr.rel (%p178) target = $region36
      $region35: #{custom_longformer_forward.4} parent=31 // pred_region
        %s181 = smul.u32 16, %s11
        %p182 = scmp.lt.s32.totalorder %s181, 31
        %s183 = scalar_select %p182, %s181, 31
        %s184 = smul.addr %s183, 8
        %s185 = scalar_lea.vmem %s0, %s184
        %s186 = smul.u32 16, %s11
      $region36: #{custom_longformer_forward.4} parent=31 // pred_fallthru
        _
    $region32: #{custom_longformer_forward.4} parent=5 // pred_fallthru
      _
    %p187 = scmp.le.s32.totalorder 1, %s11
    %p188 = scmp.lt.s32.totalorder %s11, 3
    %p189 = pnand %p187, %p188
    %p190 = pneg %p189
    // Predicated region
    $region37: #{custom_longformer_forward.4} parent=5 // pred_check
      _
    $region38: #{custom_longformer_forward.4} parent=5 // pred_check_branch
      %192 = sbr.rel (%p189) target = $region40
    $region39: #{custom_longformer_forward.4} parent=5 // pred_region
      %s193 = ssub.s32 %s11, 1
      %s194 = smul.u32 16, %s16
      %p195 = scmp.lt.s32.totalorder %s194, 31
      %s196 = scalar_select %p195, %s194, 31
      %s197 = smul.addr %s196, 8
      %s198 = scalar_lea.vmem %s0, %s197
      %p199 = pneg %p37
      %p200 = pneg %p34
      %p201 = pneg %p58
      %p202 = pneg %p55
      %p203 = pneg %p79
      %p204 = pneg %p76
      %p205 = pneg %p100
      %p206 = pneg %p97
      %p207 = pneg %p121
      %p208 = pneg %p118
      %p209 = pneg %p147
      %p210 = pneg %p144
      %s211 = smul.u32 16, %s16
      %p212 = scmp.lt.s32.totalorder %s211, 31
      %s213 = scalar_select %p212, %s211, 31
      %s214 = smul.addr %s213, 8
      %s215 = scalar_lea.vmem %s5, %s214
      %s216 = smul.u32 16, %s16
      %p217 = scmp.lt.s32.totalorder %s216, 31
      %s218 = scalar_select %p217, %s216, 31
      %s219 = smul.addr %s218, 8
      %s220 = scalar_lea.vmem %s0, %s219
      %s221 = smul.u32 16, %s16
      %s222 = smul.u32 16, %s16
      %p223 = scmp.lt.s32.totalorder %s222, 31
      %s224 = scalar_select %p223, %s222, 31
      %s225 = smul.addr %s224, 8
      %s226 = scalar_lea.vmem %s5, %s225
      %s227 = smul.u32 16, %s16
      %v228 = vld [vmem:[%s220] sm:$0xff]
      %v229 = vld [vmem:[%s220 + $0x8] sm:$0xff]
      %v230 = vld [vmem:[%s220 + $0x10] sm:$0xff]
      %v231 = vld [vmem:[%s220 + $0x18] sm:$0xff]
      %v232 = vld [vmem:[%s220 + $0x20] sm:$0xff]
      %v233 = vld [vmem:[%s220 + $0x28] sm:$0xff]
      %v234 = vld [vmem:[%s220 + $0x30] sm:$0xff]
      %v235 = vld [vmem:[%s220 + $0x38] sm:$0xff]
      %v236 = vld [vmem:[%s220 + $0x40] sm:$0xff]
      %v237 = vld [vmem:[%s220 + $0x48] sm:$0xff]
      %v238 = vld [vmem:[%s220 + $0x50] sm:$0xff]
      %v239 = vld [vmem:[%s220 + $0x58] sm:$0xff]
      %v240 = vld [vmem:[%s220 + $0x60] sm:$0xff]
      %v241 = vld [vmem:[%s220 + $0x68] sm:$0xff]
      %v242 = vld [vmem:[%s220 + $0x70] sm:$0xff]
      %v243 = vld [vmem:[%s220 + $0x78] sm:$0xff]
      %vm244 = vcmask 523264
      %v245 = vsel %vm244, %v228, 0.0
      %246 = vadd.xlane.f32.xlu0 %v245
      %v247 = vpop.xlane.xlu0 %246
      %v248 = vsel %vm244, %v229, 0.0
      %249 = vadd.xlane.f32.xlu0 %v248
      %v250 = vpop.xlane.xlu0 %249
      %v251 = vsel %vm244, %v230, 0.0
      %252 = vadd.xlane.f32.xlu0 %v251
      %v253 = vpop.xlane.xlu0 %252
      %v254 = vsel %vm244, %v231, 0.0
      %255 = vadd.xlane.f32.xlu0 %v254
      %v256 = vpop.xlane.xlu0 %255
      %v257 = vsel %vm244, %v232, 0.0
      %258 = vadd.xlane.f32.xlu0 %v257
      %v259 = vpop.xlane.xlu0 %258
      %v260 = vsel %vm244, %v233, 0.0
      %261 = vadd.xlane.f32.xlu0 %v260
      %v262 = vpop.xlane.xlu0 %261
      %v263 = vsel %vm244, %v234, 0.0
      %264 = vadd.xlane.f32.xlu0 %v263
      %v265 = vpop.xlane.xlu0 %264
      %v266 = vsel %vm244, %v235, 0.0
      %267 = vadd.xlane.f32.xlu0 %v266
      %v268 = vpop.xlane.xlu0 %267
      %v269 = vsel %vm244, %v236, 0.0
      %270 = vadd.xlane.f32.xlu0 %v269
      %v271 = vpop.xlane.xlu0 %270
      %v272 = vsel %vm244, %v237, 0.0
      %273 = vadd.xlane.f32.xlu0 %v272
      %v274 = vpop.xlane.xlu0 %273
      %v275 = vsel %vm244, %v238, 0.0
      %276 = vadd.xlane.f32.xlu0 %v275
      %v277 = vpop.xlane.xlu0 %276
      %v278 = vsel %vm244, %v239, 0.0
      %279 = vadd.xlane.f32.xlu0 %v278
      %v280 = vpop.xlane.xlu0 %279
      %v281 = vsel %vm244, %v240, 0.0
      %282 = vadd.xlane.f32.xlu0 %v281
      %v283 = vpop.xlane.xlu0 %282
      %v284 = vsel %vm244, %v241, 0.0
      %285 = vadd.xlane.f32.xlu0 %v284
      %v286 = vpop.xlane.xlu0 %285
      %v287 = vsel %vm244, %v242, 0.0
      %288 = vadd.xlane.f32.xlu0 %v287
      %v289 = vpop.xlane.xlu0 %288
      %v290 = vsel %vm244, %v243, 0.0
      %291 = vadd.xlane.f32.xlu0 %v290
      %v292 = vpop.xlane.xlu0 %291
      %v293 = vrcp.pop 64.0
      %v294 = vmul.f32 %v247, %v293
      %v295 = vmul.f32 %v250, %v293
      %v296 = vmul.f32 %v253, %v293
      %v297 = vmul.f32 %v256, %v293
      %v298 = vmul.f32 %v259, %v293
      %v299 = vmul.f32 %v262, %v293
      %v300 = vmul.f32 %v265, %v293
      %v301 = vmul.f32 %v268, %v293
      %v302 = vmul.f32 %v271, %v293
      %v303 = vmul.f32 %v274, %v293
      %v304 = vmul.f32 %v277, %v293
      %v305 = vmul.f32 %v280, %v293
      %v306 = vmul.f32 %v283, %v293
      %v307 = vmul.f32 %v286, %v293
      %v308 = vmul.f32 %v289, %v293
      %v309 = vmul.f32 %v292, %v293
      %v310 = vsub.f32 %v228, %v294
      %v311 = vsub.f32 %v229, %v295
      %v312 = vsub.f32 %v230, %v296
      %v313 = vsub.f32 %v231, %v297
      %v314 = vsub.f32 %v232, %v298
      %v315 = vsub.f32 %v233, %v299
      %v316 = vsub.f32 %v234, %v300
      %v317 = vsub.f32 %v235, %v301
      %v318 = vsub.f32 %v236, %v302
      %v319 = vsub.f32 %v237, %v303
      %v320 = vsub.f32 %v238, %v304
      %v321 = vsub.f32 %v239, %v305
      %v322 = vsub.f32 %v240, %v306
      %v323 = vsub.f32 %v241, %v307
      %v324 = vsub.f32 %v242, %v308
      %v325 = vsub.f32 %v243, %v309
      %v326 = vmul.f32 %v310, %v310
      %v327 = vmul.f32 %v311, %v311
      %v328 = vmul.f32 %v312, %v312
      %v329 = vmul.f32 %v313, %v313
      %v330 = vmul.f32 %v314, %v314
      %v331 = vmul.f32 %v315, %v315
      %v332 = vmul.f32 %v316, %v316
      %v333 = vmul.f32 %v317, %v317
      %v334 = vmul.f32 %v318, %v318
      %v335 = vmul.f32 %v319, %v319
      %v336 = vmul.f32 %v320, %v320
      %v337 = vmul.f32 %v321, %v321
      %v338 = vmul.f32 %v322, %v322
      %v339 = vmul.f32 %v323, %v323
      %v340 = vmul.f32 %v324, %v324
      %v341 = vmul.f32 %v325, %v325
      %v342 = vsel %vm244, %v326, 0.0
      %343 = vadd.xlane.f32.xlu0 %v342
      %v344 = vpop.xlane.xlu0 %343
      %v345 = vsel %vm244, %v327, 0.0
      %346 = vadd.xlane.f32.xlu0 %v345
      %v347 = vpop.xlane.xlu0 %346
      %v348 = vsel %vm244, %v328, 0.0
      %349 = vadd.xlane.f32.xlu0 %v348
      %v350 = vpop.xlane.xlu0 %349
      %v351 = vsel %vm244, %v329, 0.0
      %352 = vadd.xlane.f32.xlu0 %v351
      %v353 = vpop.xlane.xlu0 %352
      %v354 = vsel %vm244, %v330, 0.0
      %355 = vadd.xlane.f32.xlu0 %v354
      %v356 = vpop.xlane.xlu0 %355
      %v357 = vsel %vm244, %v331, 0.0
      %358 = vadd.xlane.f32.xlu0 %v357
      %v359 = vpop.xlane.xlu0 %358
      %v360 = vsel %vm244, %v332, 0.0
      %361 = vadd.xlane.f32.xlu0 %v360
      %v362 = vpop.xlane.xlu0 %361
      %v363 = vsel %vm244, %v333, 0.0
      %364 = vadd.xlane.f32.xlu0 %v363
      %v365 = vpop.xlane.xlu0 %364
      %v366 = vsel %vm244, %v334, 0.0
      %367 = vadd.xlane.f32.xlu0 %v366
      %v368 = vpop.xlane.xlu0 %367
      %v369 = vsel %vm244, %v335, 0.0
      %370 = vadd.xlane.f32.xlu0 %v369
      %v371 = vpop.xlane.xlu0 %370
      %v372 = vsel %vm244, %v336, 0.0
      %373 = vadd.xlane.f32.xlu0 %v372
      %v374 = vpop.xlane.xlu0 %373
      %v375 = vsel %vm244, %v337, 0.0
      %376 = vadd.xlane.f32.xlu0 %v375
      %v377 = vpop.xlane.xlu0 %376
      %v378 = vsel %vm244, %v338, 0.0
      %379 = vadd.xlane.f32.xlu0 %v378
      %v380 = vpop.xlane.xlu0 %379
      %v381 = vsel %vm244, %v339, 0.0
      %382 = vadd.xlane.f32.xlu0 %v381
      %v383 = vpop.xlane.xlu0 %382
      %v384 = vsel %vm244, %v340, 0.0
      %385 = vadd.xlane.f32.xlu0 %v384
      %v386 = vpop.xlane.xlu0 %385
      %v387 = vsel %vm244, %v341, 0.0
      %388 = vadd.xlane.f32.xlu0 %v387
      %v389 = vpop.xlane.xlu0 %388
      %v390 = vmul.f32 %v344, %v293
      %v391 = vmul.f32 %v347, %v293
      %v392 = vmul.f32 %v350, %v293
      %v393 = vmul.f32 %v353, %v293
      %v394 = vmul.f32 %v356, %v293
      %v395 = vmul.f32 %v359, %v293
      %v396 = vmul.f32 %v362, %v293
      %v397 = vmul.f32 %v365, %v293
      %v398 = vmul.f32 %v368, %v293
      %v399 = vmul.f32 %v371, %v293
      %v400 = vmul.f32 %v374, %v293
      %v401 = vmul.f32 %v377, %v293
      %v402 = vmul.f32 %v380, %v293
      %v403 = vmul.f32 %v383, %v293
      %v404 = vmul.f32 %v386, %v293
      %v405 = vmul.f32 %v389, %v293
      %v406 = vadd.f32 %v390, 1e-05
      %v407 = vadd.f32 %v391, 1e-05
      %v408 = vadd.f32 %v392, 1e-05
      %v409 = vadd.f32 %v393, 1e-05
      %v410 = vadd.f32 %v394, 1e-05
      %v411 = vadd.f32 %v395, 1e-05
      %v412 = vadd.f32 %v396, 1e-05
      %v413 = vadd.f32 %v397, 1e-05
      %v414 = vadd.f32 %v398, 1e-05
      %v415 = vadd.f32 %v399, 1e-05
      %v416 = vadd.f32 %v400, 1e-05
      %v417 = vadd.f32 %v401, 1e-05
      %v418 = vadd.f32 %v402, 1e-05
      %v419 = vadd.f32 %v403, 1e-05
      %v420 = vadd.f32 %v404, 1e-05
      %v421 = vadd.f32 %v405, 1e-05
      %v422 = vrsqrt.pop %v406
      %v423 = vrsqrt.pop %v407
      %v424 = vrsqrt.pop %v408
      %v425 = vrsqrt.pop %v409
      %v426 = vrsqrt.pop %v410
      %v427 = vrsqrt.pop %v411
      %v428 = vrsqrt.pop %v412
      %v429 = vrsqrt.pop %v413
      %v430 = vrsqrt.pop %v414
      %v431 = vrsqrt.pop %v415
      %v432 = vrsqrt.pop %v416
      %v433 = vrsqrt.pop %v417
      %v434 = vrsqrt.pop %v418
      %v435 = vrsqrt.pop %v419
      %v436 = vrsqrt.pop %v420
      %v437 = vrsqrt.pop %v421
      %v438 = vmul.f32 %v310, %v422
      %v439 = vmul.f32 %v311, %v423
      %v440 = vmul.f32 %v312, %v424
      %v441 = vmul.f32 %v313, %v425
      %v442 = vmul.f32 %v314, %v426
      %v443 = vmul.f32 %v315, %v427
      %v444 = vmul.f32 %v316, %v428
      %v445 = vmul.f32 %v317, %v429
      %v446 = vmul.f32 %v318, %v430
      %v447 = vmul.f32 %v319, %v431
      %v448 = vmul.f32 %v320, %v432
      %v449 = vmul.f32 %v321, %v433
      %v450 = vmul.f32 %v322, %v434
      %v451 = vmul.f32 %v323, %v435
      %v452 = vmul.f32 %v324, %v436
      %v453 = vmul.f32 %v325, %v437
      %v454 = vld [vmem:[%s1] sm:$0x1]
      %v456 = vlaneseq
      %v457 = vshrl.u32 %v456, 7
      %v458 = vsub.s32 0, %v457
      %v459 = vrot.slane %v454, %v458
      %v461 = vmul.f32 %v438, %v459
      %v462 = vmul.f32 %v439, %v459
      %v463 = vmul.f32 %v440, %v459
      %v464 = vmul.f32 %v441, %v459
      %v465 = vmul.f32 %v442, %v459
      %v466 = vmul.f32 %v443, %v459
      %v467 = vmul.f32 %v444, %v459
      %v468 = vmul.f32 %v445, %v459
      %v469 = vmul.f32 %v446, %v459
      %v470 = vmul.f32 %v447, %v459
      %v471 = vmul.f32 %v448, %v459
      %v472 = vmul.f32 %v449, %v459
      %v473 = vmul.f32 %v450, %v459
      %v474 = vmul.f32 %v451, %v459
      %v475 = vmul.f32 %v452, %v459
      %v476 = vmul.f32 %v453, %v459
      %v477 = vld [vmem:[%s2] sm:$0x1]
      %v479 = vlaneseq
      %v480 = vshrl.u32 %v479, 7
      %v481 = vsub.s32 0, %v480
      %v482 = vrot.slane %v477, %v481
      %v484 = vadd.f32 %v461, %v482
      %v485 = vadd.f32 %v462, %v482
      %v486 = vadd.f32 %v463, %v482
      %v487 = vadd.f32 %v464, %v482
      %v488 = vadd.f32 %v465, %v482
      %v489 = vadd.f32 %v466, %v482
      %v490 = vadd.f32 %v467, %v482
      %v491 = vadd.f32 %v468, %v482
      %v492 = vadd.f32 %v469, %v482
      %v493 = vadd.f32 %v470, %v482
      %v494 = vadd.f32 %v471, %v482
      %v495 = vadd.f32 %v472, %v482
      %v496 = vadd.f32 %v473, %v482
      %v497 = vadd.f32 %v474, %v482
      %v498 = vadd.f32 %v475, %v482
      %v499 = vadd.f32 %v476, %v482
      %v500 = vld [vmem:[%s3] sm:$0xff]
      %v501 = vld [vmem:[%s3 + $0x8] sm:$0xff]
      %v502 = vld [vmem:[%s3 + $0x10] sm:$0xff]
      %v503 = vld [vmem:[%s3 + $0x18] sm:$0xff]
      %v504 = vld [vmem:[%s3 + $0x20] sm:$0xff]
      %v505 = vld [vmem:[%s3 + $0x28] sm:$0xff]
      %v506 = vld [vmem:[%s3 + $0x30] sm:$0xff]
      %v507 = vld [vmem:[%s3 + $0x38] sm:$0xff]
      %v508 = vld [vmem:[%s4] sm:$0x1]
      %v510 = vlaneseq
      %v511 = vshrl.u32 %v510, 7
      %v512 = vsub.s32 0, %v511
      %v513 = vrot.slane %v508, %v512
      %v516 = vsel %vm244, %v484, 0
      %v519 = vsel %vm244, %v485, 0
      %v522 = vsel %vm244, %v486, 0
      %v525 = vsel %vm244, %v487, 0
      %v528 = vsel %vm244, %v488, 0
      %v531 = vsel %vm244, %v489, 0
      %v534 = vsel %vm244, %v490, 0
      %v537 = vsel %vm244, %v491, 0
      %v540 = vsel %vm244, %v492, 0
      %v543 = vsel %vm244, %v493, 0
      %v546 = vsel %vm244, %v494, 0
      %v549 = vsel %vm244, %v495, 0
      %v552 = vsel %vm244, %v496, 0
      %v555 = vsel %vm244, %v497, 0
      %v558 = vsel %vm244, %v498, 0
      %v561 = vsel %vm244, %v499, 0
      %563 = vmatprep.subr.mxu0 0.0
      %564 = vmatpush1.msra.mxu0 %v500
      %565 = vmatprep.subr.mxu0 0.0
      %566 = vmatpush1.msra.mxu0 %v501
      %567 = vmatprep.subr.mxu0 0.0
      %568 = vmatpush1.msra.mxu0 %v502
      %569 = vmatprep.subr.mxu0 0.0
      %570 = vmatpush1.msra.mxu0 %v503
      %571 = vmatprep.subr.mxu0 0.0
      %572 = vmatpush1.msra.mxu0 %v504
      %573 = vmatprep.subr.mxu0 0.0
      %574 = vmatpush1.msra.mxu0 %v505
      %575 = vmatprep.subr.mxu0 0.0
      %576 = vmatpush1.msra.mxu0 %v506
      %577 = vmatprep.subr.mxu0 0.0
      %578 = vmatpush1.msra.mxu0 %v507
      %579 = vmatprep.subr.mxu0 0.0
      %580 = vmatpush1.msra.mxu0 0.0
      %581 = vmatprep.subr.mxu0 0.0
      %582 = vmatpush1.msra.mxu0 0.0
      %583 = vmatprep.subr.mxu0 0.0
      %584 = vmatpush1.msra.mxu0 0.0
      %585 = vmatprep.subr.mxu0 0.0
      %586 = vmatpush1.msra.mxu0 0.0
      %587 = vmatprep.subr.mxu0 0.0
      %588 = vmatpush1.msra.mxu0 0.0
      %589 = vmatprep.subr.mxu0 0.0
      %590 = vmatpush1.msra.mxu0 0.0
      %591 = vmatprep.subr.mxu0 0.0
      %592 = vmatpush1.msra.mxu0 0.0
      %593 = vmatprep.subr.mxu0 0.0
      %594 = vmatpush1.msra.mxu0 0.0
      %595 = vmatprep.subr.mxu0 0.0
      %596 = vmatpush1.msra.mxu0 0.0
      %597 = vmatprep.subr.mxu0 0.0
      %598 = vmatpush1.msra.mxu0 0.0
      %599 = vmatprep.subr.mxu0 0.0
      %600 = vmatpush1.msra.mxu0 0.0
      %601 = vmatprep.subr.mxu0 0.0
      %602 = vmatpush1.msra.mxu0 0.0
      %603 = vmatprep.subr.mxu0 0.0
      %604 = vmatpush1.msra.mxu0 0.0
      %605 = vmatprep.subr.mxu0 0.0
      %606 = vmatpush1.msra.mxu0 0.0
      %607 = vmatprep.subr.mxu0 0.0
      %608 = vmatpush1.msra.mxu0 0.0
      %609 = vmatprep.subr.mxu0 0.0
      %610 = vmatpush1.msra.mxu0 0.0
      %611 = vmatprep.subr.mxu0 0.0
      %612 = vmatpush1.msra.mxu0 0.0
      %613 = vmatprep.subr.mxu0 0.0
      %614 = vmatpush1.msra.mxu0 0.0
      %615 = vmatprep.subr.mxu0 0.0
      %616 = vmatpush1.msra.mxu0 0.0
      %617 = vmatprep.subr.mxu0 0.0
      %618 = vmatpush1.msra.mxu0 0.0
      %619 = vmatprep.subr.mxu0 0.0
      %620 = vmatpush1.msra.mxu0 0.0
      %621 = vmatprep.subr.mxu0 0.0
      %622 = vmatpush1.msra.mxu0 0.0
      %623 = vmatprep.subr.mxu0 0.0
      %624 = vmatpush1.msra.mxu0 0.0
      %625 = vmatprep.subr.mxu0 0.0
      %626 = vmatpush1.msra.mxu0 0.0
      %627 = vmatprep.mubr.f32.mxu0 0.0
      %628 = vmatmul.mubr.f32.gmra.mrb[0].mxu0 %v516
      %v629 = vpop.f32.mrb[0].mxu0
      %v630 = vadd.f32 %v513, %v629
      %v631 = vpop.f32.mrb[0].mxu0
      %632 = vmatprep.mubr.f32.mxu0 0.0
      %633 = vmatmul.mubr.f32.gmra.mrb[0].mxu0 %v519
      %v634 = vpop.f32.mrb[0].mxu0
      %v635 = vadd.f32 %v513, %v634
      %v636 = vpop.f32.mrb[0].mxu0
      %637 = vmatprep.mubr.f32.mxu0 0.0
      %638 = vmatmul.mubr.f32.gmra.mrb[0].mxu0 %v522
      %v639 = vpop.f32.mrb[0].mxu0
      %v640 = vadd.f32 %v513, %v639
      %v641 = vpop.f32.mrb[0].mxu0
      %642 = vmatprep.mubr.f32.mxu0 0.0
      %643 = vmatmul.mubr.f32.gmra.mrb[0].mxu0 %v525
      %v644 = vpop.f32.mrb[0].mxu0
      %v645 = vadd.f32 %v513, %v644
      %v646 = vpop.f32.mrb[0].mxu0
      %647 = vmatprep.mubr.f32.mxu0 0.0
      %648 = vmatmul.mubr.f32.gmra.mrb[0].mxu0 %v528
      %v649 = vpop.f32.mrb[0].mxu0
      %v650 = vadd.f32 %v513, %v649
      %v651 = vpop.f32.mrb[0].mxu0
      %652 = vmatprep.mubr.f32.mxu0 0.0
      %653 = vmatmul.mubr.f32.gmra.mrb[0].mxu0 %v531
      %v654 = vpop.f32.mrb[0].mxu0
      %v655 = vadd.f32 %v513, %v654
      %v656 = vpop.f32.mrb[0].mxu0
      %657 = vmatprep.mubr.f32.mxu0 0.0
      %658 = vmatmul.mubr.f32.gmra.mrb[0].mxu0 %v534
      %v659 = vpop.f32.mrb[0].mxu0
      %v660 = vadd.f32 %v513, %v659
      %v661 = vpop.f32.mrb[0].mxu0
      %662 = vmatprep.mubr.f32.mxu0 0.0
      %663 = vmatmul.mubr.f32.gmra.mrb[0].mxu0 %v537
      %v664 = vpop.f32.mrb[0].mxu0
      %v665 = vadd.f32 %v513, %v664
      %v666 = vpop.f32.mrb[0].mxu0
      %667 = vmatprep.mubr.f32.mxu0 0.0
      %668 = vmatmul.mubr.f32.gmra.mrb[0].mxu0 %v540
      %v669 = vpop.f32.mrb[0].mxu0
      %v670 = vadd.f32 %v513, %v669
      %v671 = vpop.f32.mrb[0].mxu0
      %672 = vmatprep.mubr.f32.mxu0 0.0
      %673 = vmatmul.mubr.f32.gmra.mrb[0].mxu0 %v543
      %v674 = vpop.f32.mrb[0].mxu0
      %v675 = vadd.f32 %v513, %v674
      %v676 = vpop.f32.mrb[0].mxu0
      %677 = vmatprep.mubr.f32.mxu0 0.0
      %678 = vmatmul.mubr.f32.gmra.mrb[0].mxu0 %v546
      %v679 = vpop.f32.mrb[0].mxu0
      %v680 = vadd.f32 %v513, %v679
      %v681 = vpop.f32.mrb[0].mxu0
      %682 = vmatprep.mubr.f32.mxu0 0.0
      %683 = vmatmul.mubr.f32.gmra.mrb[0].mxu0 %v549
      %v684 = vpop.f32.mrb[0].mxu0
      %v685 = vadd.f32 %v513, %v684
      %v686 = vpop.f32.mrb[0].mxu0
      %687 = vmatprep.mubr.f32.mxu0 0.0
      %688 = vmatmul.mubr.f32.gmra.mrb[0].mxu0 %v552
      %v689 = vpop.f32.mrb[0].mxu0
      %v690 = vadd.f32 %v513, %v689
      %v691 = vpop.f32.mrb[0].mxu0
      %692 = vmatprep.mubr.f32.mxu0 0.0
      %693 = vmatmul.mubr.f32.gmra.mrb[0].mxu0 %v555
      %v694 = vpop.f32.mrb[0].mxu0
      %v695 = vadd.f32 %v513, %v694
      %v696 = vpop.f32.mrb[0].mxu0
      %697 = vmatprep.mubr.f32.mxu0 0.0
      %698 = vmatmul.mubr.f32.gmra.mrb[0].mxu0 %v558
      %v699 = vpop.f32.mrb[0].mxu0
      %v700 = vadd.f32 %v513, %v699
      %v701 = vpop.f32.mrb[0].mxu0
      %702 = vmatprep.mubr.f32.mxu0 0.0
      %703 = vmatmul.mubr.f32.gmra.mrb[0].mxu0 %v561
      %v704 = vpop.f32.mrb[0].mxu0
      %v705 = vadd.f32 %v513, %v704
      %v706 = vpop.f32.mrb[0].mxu0
      %707 = vdwg.mxu0
      %708 = vst.msk [vmem:[%s226] sm:$0xff] %vm244, %v630
      %709 = vst.msk [vmem:[%s226 + $0x8] sm:$0xff] %vm244, %v635
      %710 = vst.msk [vmem:[%s226 + $0x10] sm:$0xff] %vm244, %v640
      %711 = vst.msk [vmem:[%s226 + $0x18] sm:$0xff] %vm244, %v645
      %712 = vst.msk [vmem:[%s226 + $0x20] sm:$0xff] %vm244, %v650
      %713 = vst.msk [vmem:[%s226 + $0x28] sm:$0xff] %vm244, %v655
      %714 = vst.msk [vmem:[%s226 + $0x30] sm:$0xff] %vm244, %v660
      %715 = vst.msk [vmem:[%s226 + $0x38] sm:$0xff] %vm244, %v665
      %716 = vst.msk [vmem:[%s226 + $0x40] sm:$0xff] %vm244, %v670
      %717 = vst.msk [vmem:[%s226 + $0x48] sm:$0xff] %vm244, %v675
      %718 = vst.msk [vmem:[%s226 + $0x50] sm:$0xff] %vm244, %v680
      %719 = vst.msk [vmem:[%s226 + $0x58] sm:$0xff] %vm244, %v685
      %720 = vst.msk [vmem:[%s226 + $0x60] sm:$0xff] %vm244, %v690
      %721 = vst.msk [vmem:[%s226 + $0x68] sm:$0xff] %vm244, %v695
      %722 = vst.msk [vmem:[%s226 + $0x70] sm:$0xff] %vm244, %v700
      %723 = vst.msk [vmem:[%s226 + $0x78] sm:$0xff] %vm244, %v705
      %s724 = smul.u32 16, %s16
      %p725 = scmp.lt.s32.totalorder %s724, 31
      %s726 = scalar_select %p725, %s724, 31
      %s727 = smul.addr %s726, 8
      %s728 = scalar_lea.vmem %s5, %s727
      // Predicated region
      $region41: #{custom_longformer_forward.4} parent=39 // pred_check
        %p729 = pneg %p144
      $region42: #{custom_longformer_forward.4} parent=39 // pred_check_branch
        %731 = sbr.rel (%p729) target = $region44
      $region43: #{custom_longformer_forward.4} parent=39 // pred_region
        %s732 = smul.u32 16, %s16
      $region44: #{custom_longformer_forward.4} parent=39 // pred_fallthru
        _
    $region40: #{custom_longformer_forward.4} parent=5 // pred_fallthru
      _
    %p733 = scmp.le.s32.totalorder 2, %s11
    // Predicated region
    $region45: #{custom_longformer_forward.4} parent=5 // pred_check
      %p734 = pneg %p733
    $region46: #{custom_longformer_forward.4} parent=5 // pred_check_branch
      %736 = sbr.rel (%p734) target = $region48
    $region47: #{custom_longformer_forward.4} parent=5 // pred_region
      %s737 = ssub.s32 %s11, 2
      // Predicated region
      $region49: #{custom_longformer_forward.4} parent=47 // pred_check
        %p738 = pneg %p150
      $region50: #{custom_longformer_forward.4} parent=47 // pred_check_branch
        %740 = sbr.rel (%p738) target = $region52
      $region51: #{custom_longformer_forward.4} parent=47 // pred_region
        %s741 = smul.u32 16, %s17
        %p742 = scmp.lt.s32.totalorder %s741, 31
        %s743 = scalar_select %p742, %s741, 31
        %s744 = smul.addr %s743, 8
        %s745 = scalar_lea.vmem %s5, %s744
      $region52: #{custom_longformer_forward.4} parent=47 // pred_fallthru
        _
    $region48: #{custom_longformer_forward.4} parent=5 // pred_fallthru
      _
  $region6: #{custom_longformer_forward.4} parent=0 // loop_footer
    %s15 = sadd.s32 1, %s11
  $region7: #{custom_longformer_forward.4} parent=0 // loop_footer_branch
    %10 = sbr.rel target = $region3
  $region8: #{custom_longformer_forward.4} parent=0 // loop_exit
    _

// kernel: custom_longformer_forward.7
$region0: #{custom_longformer_forward.7}
  #allocation0 [shape = 'u32[]', space=smem, size = 0x4, offset = 0x4, fixed_abs, tag = 'smem constant byte address 0x4 - core index']
  #allocation1 [shape = 'u32[144,128]{1,0:T(1,128)}', space=vmem, size = 0x12000, scoped, tag = 'internal scratch']
  %s0 = inlined_call_operand.vmem [shape: f32[256,64], index: 0, kind: input, shape index: {}]
  %s1 = inlined_call_operand.vmem [shape: f32[64,64], index: 1, kind: input, shape index: {}]
  %s2 = inlined_call_operand.vmem [shape: f32[1,64], index: 2, kind: input, shape index: {}]
  %s3 = inlined_call_operand.vmem [shape: f32[64,128], index: 3, kind: input, shape index: {}]
  %s4 = inlined_call_operand.vmem [shape: f32[1,128], index: 4, kind: input, shape index: {}]
  %s5 = inlined_call_operand.hbm [shape: f32[256,128], index: 5, kind: output, shape index: {}]
  %s6 = sld [smem:[#allocation0]]
  $region53: #{custom_longformer_forward.7} parent=0
    _
  %s8 = ssub.s32 1, %s6
  %s9 = scalar_select 0, %s8, %s6
  $region1: #{custom_longformer_forward.7} parent=0
    #allocation2 [shape = 'u8[131072]{0}', space=vmem, size = 0x20000, scoped, tag = 'output window, operand 0']
    #allocation3 [shape = 's32[2]{0}', space=sflag, size = 0x8, scoped, tag = 'scoped memory for custom_longformer_forward.7']
    %10 = vsyncpa [#allocation3], 0
    %s11 = scalar_lea.sflag [#allocation3], 1
    %12 = vsyncpa %s11, 0
    loop: start=0, step=1, limit=4
    $region2: #{custom_longformer_forward.7} parent=1 // loop_pre_header
      _
    $region3: #{custom_longformer_forward.7} parent=1 // loop_header
      %s14 = sphi 0, %s18
      %p15 = scmp.ge.s32.totalorder %s14, 4
      %s24 = sphi 0, %s26
      %s27 = sphi 0, %s24
      %s28 = sphi 0, %s27
      %s44 = sphi 0, %s28
      %s48 = sphi 0, %s48
      %s50 = sphi 0, %s48
      %s51 = sphi 0, %s50
      %s65 = sphi 0, %s51
      %s69 = sphi 0, %s69
      %s71 = sphi 0, %s69
      %s72 = sphi 0, %s71
      %s86 = sphi 0, %s72
      %s90 = sphi 0, %s90
      %s92 = sphi 0, %s90
      %s93 = sphi 0, %s92
      %s107 = sphi 0, %s93
      %s111 = sphi 0, %s111
      %s113 = sphi 0, %s111
      %s114 = sphi 0, %s113
      %s128 = sphi 0, %s114
      %s134 = sphi 0, %s136
      %s137 = sphi 0, %s134
      %s138 = sphi 0, %s137
      %s154 = sphi 0, %s138
    $region4: #{custom_longformer_forward.7} parent=1 // loop_header_branch
      %17 = sbr.rel (%p15) target = $region8
    $region5: #{custom_longformer_forward.7} parent=1 // loop_body
      %s19 = ssub.s32 %s14, 1
      %s20 = ssub.s32 %s14, 2
      %s21 = sadd.s32 %s14, 1
      %s22 = ssub.s32 %s14, %s21
      %p23 = scmp.eq.s32.totalorder %s22, 0
      %s25 = sadd.s32 %s24, 1
      %s26 = scalar_select %p23, %s24, %s25
      %p29 = pneg %p23
      %p30 = scmp.eq.s32.totalorder %s14, 1
      %p31 = por %p29, %p30
      %p32 = scmp.ne.s32.totalorder %s24, %s27
      %p33 = scmp.eq.s32.totalorder %s14, 0
      %p34 = por %p32, %p33
      %p35 = scmp.ne.s32.totalorder %s24, %s27
      %p36 = scmp.eq.s32.totalorder %s19, 1
      %p37 = por %p35, %p36
      %p38 = scmp.ne.s32.totalorder %s27, %s28
      %p39 = scmp.eq.s32.totalorder %s19, 0
      %p40 = por %p38, %p39
      %p41 = scmp.ne.s32.totalorder %s27, %s28
      %p42 = scmp.eq.s32.totalorder %s20, 1
      %p43 = por %p41, %p42
      %p45 = scmp.ne.s32.totalorder %s28, %s44
      %p46 = scmp.eq.s32.totalorder %s20, 0
      %p47 = por %p45, %p46
      %s49 = sadd.s32 %s48, 1
      %p52 = scmp.eq.s32.totalorder %s14, 1
      %p53 = scmp.ne.s32.totalorder %s48, %s50
      %p54 = scmp.eq.s32.totalorder %s14, 0
      %p55 = por %p53, %p54
      %p56 = scmp.ne.s32.totalorder %s48, %s50
      %p57 = scmp.eq.s32.totalorder %s19, 1
      %p58 = por %p56, %p57
      %p59 = scmp.ne.s32.totalorder %s50, %s51
      %p60 = scmp.eq.s32.totalorder %s19, 0
      %p61 = por %p59, %p60
      %p62 = scmp.ne.s32.totalorder %s50, %s51
      %p63 = scmp.eq.s32.totalorder %s20, 1
      %p64 = por %p62, %p63
      %p66 = scmp.ne.s32.totalorder %s51, %s65
      %p67 = scmp.eq.s32.totalorder %s20, 0
      %p68 = por %p66, %p67
      %s70 = sadd.s32 %s69, 1
      %p73 = scmp.eq.s32.totalorder %s14, 1
      %p74 = scmp.ne.s32.totalorder %s69, %s71
      %p75 = scmp.eq.s32.totalorder %s14, 0
      %p76 = por %p74, %p75
      %p77 = scmp.ne.s32.totalorder %s69, %s71
      %p78 = scmp.eq.s32.totalorder %s19, 1
      %p79 = por %p77, %p78
      %p80 = scmp.ne.s32.totalorder %s71, %s72
      %p81 = scmp.eq.s32.totalorder %s19, 0
      %p82 = por %p80, %p81
      %p83 = scmp.ne.s32.totalorder %s71, %s72
      %p84 = scmp.eq.s32.totalorder %s20, 1
      %p85 = por %p83, %p84
      %p87 = scmp.ne.s32.totalorder %s72, %s86
      %p88 = scmp.eq.s32.totalorder %s20, 0
      %p89 = por %p87, %p88
      %s91 = sadd.s32 %s90, 1
      %p94 = scmp.eq.s32.totalorder %s14, 1
      %p95 = scmp.ne.s32.totalorder %s90, %s92
      %p96 = scmp.eq.s32.totalorder %s14, 0
      %p97 = por %p95, %p96
      %p98 = scmp.ne.s32.totalorder %s90, %s92
      %p99 = scmp.eq.s32.totalorder %s19, 1
      %p100 = por %p98, %p99
      %p101 = scmp.ne.s32.totalorder %s92, %s93
      %p102 = scmp.eq.s32.totalorder %s19, 0
      %p103 = por %p101, %p102
      %p104 = scmp.ne.s32.totalorder %s92, %s93
      %p105 = scmp.eq.s32.totalorder %s20, 1
      %p106 = por %p104, %p105
      %p108 = scmp.ne.s32.totalorder %s93, %s107
      %p109 = scmp.eq.s32.totalorder %s20, 0
      %p110 = por %p108, %p109
      %s112 = sadd.s32 %s111, 1
      %p115 = scmp.eq.s32.totalorder %s14, 1
      %p116 = scmp.ne.s32.totalorder %s111, %s113
      %p117 = scmp.eq.s32.totalorder %s14, 0
      %p118 = por %p116, %p117
      %p119 = scmp.ne.s32.totalorder %s111, %s113
      %p120 = scmp.eq.s32.totalorder %s19, 1
      %p121 = por %p119, %p120
      %p122 = scmp.ne.s32.totalorder %s113, %s114
      %p123 = scmp.eq.s32.totalorder %s19, 0
      %p124 = por %p122, %p123
      %p125 = scmp.ne.s32.totalorder %s113, %s114
      %p126 = scmp.eq.s32.totalorder %s20, 1
      %p127 = por %p125, %p126
      %p129 = scmp.ne.s32.totalorder %s114, %s128
      %p130 = scmp.eq.s32.totalorder %s20, 0
      %p131 = por %p129, %p130
      %s132 = ssub.s32 %s14, %s21
      %p133 = scmp.eq.s32.totalorder %s132, 0
      %s135 = sadd.s32 %s134, 1
      %s136 = scalar_select %p133, %s134, %s135
      %p139 = pneg %p133
      %p140 = scmp.eq.s32.totalorder %s14, 1
      %p141 = por %p139, %p140
      %p142 = scmp.ne.s32.totalorder %s134, %s137
      %p143 = scmp.eq.s32.totalorder %s14, 0
      %p144 = por %p142, %p143
      %p145 = scmp.ne.s32.totalorder %s134, %s137
      %p146 = scmp.eq.s32.totalorder %s19, 1
      %p147 = por %p145, %p146
      %p148 = scmp.ne.s32.totalorder %s137, %s138
      %p149 = scmp.eq.s32.totalorder %s19, 0
      %p150 = por %p148, %p149
      %p151 = scmp.ne.s32.totalorder %s137, %s138
      %p152 = scmp.eq.s32.totalorder %s20, 1
      %p153 = por %p151, %p152
      %p155 = scmp.ne.s32.totalorder %s138, %s154
      %p156 = scmp.eq.s32.totalorder %s20, 0
      %p157 = por %p155, %p156
      %p158 = scmp.le.s32.totalorder 1, %s14
      %p159 = scmp.lt.s32.totalorder %s14, 3
      %p160 = pnand %p158, %p159
      %p161 = pneg %p160
      // Predicated region
      $region9: #{custom_longformer_forward.7} parent=5 // pred_check
        _
      $region10: #{custom_longformer_forward.7} parent=5 // pred_check_branch
        %163 = sbr.rel (%p160) target = $region12
      $region11: #{custom_longformer_forward.7} parent=5 // pred_region
        %s164 = ssub.s32 %s14, 1
        // Predicated region
        $region13: #{custom_longformer_forward.7} parent=11 // pred_check
          %p165 = pneg %p61
        $region14: #{custom_longformer_forward.7} parent=11 // pred_check_branch
          %167 = sbr.rel (%p165) target = $region16
        $region15: #{custom_longformer_forward.7} parent=11 // pred_region
          _
        $region16: #{custom_longformer_forward.7} parent=11 // pred_fallthru
          _
        // Predicated region
        $region17: #{custom_longformer_forward.7} parent=11 // pred_check
          %p168 = pneg %p82
        $region18: #{custom_longformer_forward.7} parent=11 // pred_check_branch
          %170 = sbr.rel (%p168) target = $region20
        $region19: #{custom_longformer_forward.7} parent=11 // pred_region
          _
        $region20: #{custom_longformer_forward.7} parent=11 // pred_fallthru
          _
        // Predicated region
        $region21: #{custom_longformer_forward.7} parent=11 // pred_check
          %p171 = pneg %p103
        $region22: #{custom_longformer_forward.7} parent=11 // pred_check_branch
          %173 = sbr.rel (%p171) target = $region24
        $region23: #{custom_longformer_forward.7} parent=11 // pred_region
          _
        $region24: #{custom_longformer_forward.7} parent=11 // pred_fallthru
          _
        // Predicated region
        $region25: #{custom_longformer_forward.7} parent=11 // pred_check
          %p174 = pneg %p124
        $region26: #{custom_longformer_forward.7} parent=11 // pred_check_branch
          %176 = sbr.rel (%p174) target = $region28
        $region27: #{custom_longformer_forward.7} parent=11 // pred_region
          _
        $region28: #{custom_longformer_forward.7} parent=11 // pred_fallthru
          _
      $region12: #{custom_longformer_forward.7} parent=5 // pred_fallthru
        _
      %p177 = scmp.lt.s32.totalorder %s14, 2
      // Predicated region
      $region29: #{custom_longformer_forward.7} parent=5 // pred_check
        %p178 = pneg %p177
      $region30: #{custom_longformer_forward.7} parent=5 // pred_check_branch
        %180 = sbr.rel (%p178) target = $region32
      $region31: #{custom_longformer_forward.7} parent=5 // pred_region
        // Predicated region
        $region33: #{custom_longformer_forward.7} parent=31 // pred_check
          %p181 = pneg %p34
        $region34: #{custom_longformer_forward.7} parent=31 // pred_check_branch
          %183 = sbr.rel (%p181) target = $region36
        $region35: #{custom_longformer_forward.7} parent=31 // pred_region
          %s184 = smul.u32 16, %s14
          %p185 = scmp.lt.s32.totalorder %s184, 31
          %s186 = scalar_select %p185, %s184, 31
          %s187 = smul.addr %s186, 8
          %s188 = scalar_lea.vmem %s0, %s187
          %s189 = smul.u32 16, %s14
        $region36: #{custom_longformer_forward.7} parent=31 // pred_fallthru
          _
      $region32: #{custom_longformer_forward.7} parent=5 // pred_fallthru
        _
      %p190 = scmp.le.s32.totalorder 1, %s14
      %p191 = scmp.lt.s32.totalorder %s14, 3
      %p192 = pnand %p190, %p191
      %p193 = pneg %p192
      // Predicated region
      $region37: #{custom_longformer_forward.7} parent=5 // pred_check
        _
      $region38: #{custom_longformer_forward.7} parent=5 // pred_check_branch
        %195 = sbr.rel (%p192) target = $region40
      $region39: #{custom_longformer_forward.7} parent=5 // pred_region
        %s196 = ssub.s32 %s14, 1
        %s197 = smul.u32 16, %s19
        %p198 = scmp.lt.s32.totalorder %s197, 31
        %s199 = scalar_select %p198, %s197, 31
        %s200 = smul.addr %s199, 8
        %s201 = scalar_lea.vmem %s0, %s200
        %p202 = pneg %p40
        %p203 = pneg %p37
        %p204 = pneg %p61
        %p205 = pneg %p58
        %p206 = pneg %p82
        %p207 = pneg %p79
        %p208 = pneg %p103
        %p209 = pneg %p100
        %p210 = pneg %p124
        %p211 = pneg %p121
        %p212 = pneg %p150
        %p213 = pneg %p147
        %s214 = sand.u32 %s137, 1
        %s215 = scalar_lea.sflag [#allocation3], %s214
        %s216 = sand.u32 %s137, 1
        %s217 = smul.addr %s216, 128
        %s218 = scalar_lea.vmem [#allocation2], %s217
        %s219 = smul.u32 16, %s19
        %p220 = scmp.lt.s32.totalorder %s219, 31
        %s221 = scalar_select %p220, %s219, 31
        %s222 = smul.addr %s221, 8
        %s223 = scalar_lea.vmem %s0, %s222
        %s224 = smul.u32 16, %s19
        %s225 = smul.u32 16, %s19
        %v226 = vld [vmem:[%s223] sm:$0xff]
        %v227 = vld [vmem:[%s223 + $0x8] sm:$0xff]
        %v228 = vld [vmem:[%s223 + $0x10] sm:$0xff]
        %v229 = vld [vmem:[%s223 + $0x18] sm:$0xff]
        %v230 = vld [vmem:[%s223 + $0x20] sm:$0xff]
        %v231 = vld [vmem:[%s223 + $0x28] sm:$0xff]
        %v232 = vld [vmem:[%s223 + $0x30] sm:$0xff]
        %v233 = vld [vmem:[%s223 + $0x38] sm:$0xff]
        %v234 = vld [vmem:[%s223 + $0x40] sm:$0xff]
        %v235 = vld [vmem:[%s223 + $0x48] sm:$0xff]
        %v236 = vld [vmem:[%s223 + $0x50] sm:$0xff]
        %v237 = vld [vmem:[%s223 + $0x58] sm:$0xff]
        %v238 = vld [vmem:[%s223 + $0x60] sm:$0xff]
        %v239 = vld [vmem:[%s223 + $0x68] sm:$0xff]
        %v240 = vld [vmem:[%s223 + $0x70] sm:$0xff]
        %v241 = vld [vmem:[%s223 + $0x78] sm:$0xff]
        %v242 = vld [vmem:[%s1] sm:$0xff]
        %v243 = vld [vmem:[%s1 + $0x8] sm:$0xff]
        %v244 = vld [vmem:[%s1 + $0x10] sm:$0xff]
        %v245 = vld [vmem:[%s1 + $0x18] sm:$0xff]
        %v246 = vld [vmem:[%s1 + $0x20] sm:$0xff]
        %v247 = vld [vmem:[%s1 + $0x28] sm:$0xff]
        %v248 = vld [vmem:[%s1 + $0x30] sm:$0xff]
        %v249 = vld [vmem:[%s1 + $0x38] sm:$0xff]
        %v250 = vld [vmem:[%s2] sm:$0x1]
        %v252 = vlaneseq
        %v253 = vshrl.u32 %v252, 7
        %v254 = vsub.s32 0, %v253
        %v255 = vrot.slane %v250, %v254
        %vm257 = vcmask 523264
        %v259 = vsel %vm257, %v226, 0
        %v262 = vsel %vm257, %v227, 0
        %v265 = vsel %vm257, %v228, 0
        %v268 = vsel %vm257, %v229, 0
        %v271 = vsel %vm257, %v230, 0
        %v274 = vsel %vm257, %v231, 0
        %v277 = vsel %vm257, %v232, 0
        %v280 = vsel %vm257, %v233, 0
        %v283 = vsel %vm257, %v234, 0
        %v286 = vsel %vm257, %v235, 0
        %v289 = vsel %vm257, %v236, 0
        %v292 = vsel %vm257, %v237, 0
        %v295 = vsel %vm257, %v238, 0
        %v298 = vsel %vm257, %v239, 0
        %v301 = vsel %vm257, %v240, 0
        %v304 = vsel %vm257, %v241, 0
        %306 = vmatprep.subr.mxu0 0.0
        %307 = vmatpush1.msra.mxu0 %v242
        %308 = vmatprep.subr.mxu0 0.0
        %309 = vmatpush1.msra.mxu0 %v243
        %310 = vmatprep.subr.mxu0 0.0
        %311 = vmatpush1.msra.mxu0 %v244
        %312 = vmatprep.subr.mxu0 0.0
        %313 = vmatpush1.msra.mxu0 %v245
        %314 = vmatprep.subr.mxu0 0.0
        %315 = vmatpush1.msra.mxu0 %v246
        %316 = vmatprep.subr.mxu0 0.0
        %317 = vmatpush1.msra.mxu0 %v247
        %318 = vmatprep.subr.mxu0 0.0
        %319 = vmatpush1.msra.mxu0 %v248
        %320 = vmatprep.subr.mxu0 0.0
        %321 = vmatpush1.msra.mxu0 %v249
        %322 = vmatprep.subr.mxu0 0.0
        %323 = vmatpush1.msra.mxu0 0.0
        %324 = vmatprep.subr.mxu0 0.0
        %325 = vmatpush1.msra.mxu0 0.0
        %326 = vmatprep.subr.mxu0 0.0
        %327 = vmatpush1.msra.mxu0 0.0
        %328 = vmatprep.subr.mxu0 0.0
        %329 = vmatpush1.msra.mxu0 0.0
        %330 = vmatprep.subr.mxu0 0.0
        %331 = vmatpush1.msra.mxu0 0.0
        %332 = vmatprep.subr.mxu0 0.0
        %333 = vmatpush1.msra.mxu0 0.0
        %334 = vmatprep.subr.mxu0 0.0
        %335 = vmatpush1.msra.mxu0 0.0
        %336 = vmatprep.subr.mxu0 0.0
        %337 = vmatpush1.msra.mxu0 0.0
        %338 = vmatprep.subr.mxu0 0.0
        %339 = vmatpush1.msra.mxu0 0.0
        %340 = vmatprep.subr.mxu0 0.0
        %341 = vmatpush1.msra.mxu0 0.0
        %342 = vmatprep.subr.mxu0 0.0
        %343 = vmatpush1.msra.mxu0 0.0
        %344 = vmatprep.subr.mxu0 0.0
        %345 = vmatpush1.msra.mxu0 0.0
        %346 = vmatprep.subr.mxu0 0.0
        %347 = vmatpush1.msra.mxu0 0.0
        %348 = vmatprep.subr.mxu0 0.0
        %349 = vmatpush1.msra.mxu0 0.0
        %350 = vmatprep.subr.mxu0 0.0
        %351 = vmatpush1.msra.mxu0 0.0
        %352 = vmatprep.subr.mxu0 0.0
        %353 = vmatpush1.msra.mxu0 0.0
        %354 = vmatprep.subr.mxu0 0.0
        %355 = vmatpush1.msra.mxu0 0.0
        %356 = vmatprep.subr.mxu0 0.0
        %357 = vmatpush1.msra.mxu0 0.0
        %358 = vmatprep.subr.mxu0 0.0
        %359 = vmatpush1.msra.mxu0 0.0
        %360 = vmatprep.subr.mxu0 0.0
        %361 = vmatpush1.msra.mxu0 0.0
        %362 = vmatprep.subr.mxu0 0.0
        %363 = vmatpush1.msra.mxu0 0.0
        %364 = vmatprep.subr.mxu0 0.0
        %365 = vmatpush1.msra.mxu0 0.0
        %366 = vmatprep.subr.mxu0 0.0
        %367 = vmatpush1.msra.mxu0 0.0
        %368 = vmatprep.subr.mxu0 0.0
        %369 = vmatpush1.msra.mxu0 0.0
        %370 = vmatprep.mubr.f32.mxu0 0.0
        %371 = vmatmul.mubr.f32.gmra.mrb[0].mxu0 %v259
        %v372 = vpop.f32.mrb[0].mxu0
        %v373 = vadd.f32 %v255, %v372
        %v374 = vpop.f32.mrb[0].mxu0
        %375 = vmatprep.mubr.f32.mxu0 0.0
        %376 = vmatmul.mubr.f32.gmra.mrb[0].mxu0 %v262
        %v377 = vpop.f32.mrb[0].mxu0
        %v378 = vadd.f32 %v255, %v377
        %v379 = vpop.f32.mrb[0].mxu0
        %380 = vmatprep.mubr.f32.mxu0 0.0
        %381 = vmatmul.mubr.f32.gmra.mrb[0].mxu0 %v265
        %v382 = vpop.f32.mrb[0].mxu0
        %v383 = vadd.f32 %v255, %v382
        %v384 = vpop.f32.mrb[0].mxu0
        %385 = vmatprep.mubr.f32.mxu0 0.0
        %386 = vmatmul.mubr.f32.gmra.mrb[0].mxu0 %v268
        %v387 = vpop.f32.mrb[0].mxu0
        %v388 = vadd.f32 %v255, %v387
        %v389 = vpop.f32.mrb[0].mxu0
        %390 = vmatprep.mubr.f32.mxu0 0.0
        %391 = vmatmul.mubr.f32.gmra.mrb[0].mxu0 %v271
        %v392 = vpop.f32.mrb[0].mxu0
        %v393 = vadd.f32 %v255, %v392
        %v394 = vpop.f32.mrb[0].mxu0
        %395 = vmatprep.mubr.f32.mxu0 0.0
        %396 = vmatmul.mubr.f32.gmra.mrb[0].mxu0 %v274
        %v397 = vpop.f32.mrb[0].mxu0
        %v398 = vadd.f32 %v255, %v397
        %v399 = vpop.f32.mrb[0].mxu0
        %400 = vmatprep.mubr.f32.mxu0 0.0
        %401 = vmatmul.mubr.f32.gmra.mrb[0].mxu0 %v277
        %v402 = vpop.f32.mrb[0].mxu0
        %v403 = vadd.f32 %v255, %v402
        %v404 = vpop.f32.mrb[0].mxu0
        %405 = vmatprep.mubr.f32.mxu0 0.0
        %406 = vmatmul.mubr.f32.gmra.mrb[0].mxu0 %v280
        %v407 = vpop.f32.mrb[0].mxu0
        %v408 = vadd.f32 %v255, %v407
        %v409 = vpop.f32.mrb[0].mxu0
        %410 = vmatprep.mubr.f32.mxu0 0.0
        %411 = vmatmul.mubr.f32.gmra.mrb[0].mxu0 %v283
        %v412 = vpop.f32.mrb[0].mxu0
        %v413 = vadd.f32 %v255, %v412
        %v414 = vpop.f32.mrb[0].mxu0
        %415 = vmatprep.mubr.f32.mxu0 0.0
        %416 = vmatmul.mubr.f32.gmra.mrb[0].mxu0 %v286
        %v417 = vpop.f32.mrb[0].mxu0
        %v418 = vadd.f32 %v255, %v417
        %v419 = vpop.f32.mrb[0].mxu0
        %420 = vmatprep.mubr.f32.mxu0 0.0
        %421 = vmatmul.mubr.f32.gmra.mrb[0].mxu0 %v289
        %v422 = vpop.f32.mrb[0].mxu0
        %v423 = vadd.f32 %v255, %v422
        %v424 = vpop.f32.mrb[0].mxu0
        %425 = vmatprep.mubr.f32.mxu0 0.0
        %426 = vmatmul.mubr.f32.gmra.mrb[0].mxu0 %v292
        %v427 = vpop.f32.mrb[0].mxu0
        %v428 = vadd.f32 %v255, %v427
        %v429 = vpop.f32.mrb[0].mxu0
        %430 = vmatprep.mubr.f32.mxu0 0.0
        %431 = vmatmul.mubr.f32.gmra.mrb[0].mxu0 %v295
        %v432 = vpop.f32.mrb[0].mxu0
        %v433 = vadd.f32 %v255, %v432
        %v434 = vpop.f32.mrb[0].mxu0
        %435 = vmatprep.mubr.f32.mxu0 0.0
        %436 = vmatmul.mubr.f32.gmra.mrb[0].mxu0 %v298
        %v437 = vpop.f32.mrb[0].mxu0
        %v438 = vadd.f32 %v255, %v437
        %v439 = vpop.f32.mrb[0].mxu0
        %440 = vmatprep.mubr.f32.mxu0 0.0
        %441 = vmatmul.mubr.f32.gmra.mrb[0].mxu0 %v301
        %v442 = vpop.f32.mrb[0].mxu0
        %v443 = vadd.f32 %v255, %v442
        %v444 = vpop.f32.mrb[0].mxu0
        %445 = vmatprep.mubr.f32.mxu0 0.0
        %446 = vmatmul.mubr.f32.gmra.mrb[0].mxu0 %v304
        %v447 = vpop.f32.mrb[0].mxu0
        %v448 = vadd.f32 %v255, %v447
        %v449 = vpop.f32.mrb[0].mxu0
        %450 = vdwg.mxu0
        %v451 = vld [vmem:[%s3] sm:$0xff]
        %v452 = vld [vmem:[%s3 + $0x8] sm:$0xff]
        %v453 = vld [vmem:[%s3 + $0x10] sm:$0xff]
        %v454 = vld [vmem:[%s3 + $0x18] sm:$0xff]
        %v455 = vld [vmem:[%s3 + $0x20] sm:$0xff]
        %v456 = vld [vmem:[%s3 + $0x28] sm:$0xff]
        %v457 = vld [vmem:[%s3 + $0x30] sm:$0xff]
        %v458 = vld [vmem:[%s3 + $0x38] sm:$0xff]
        %v459 = vld [vmem:[%s4] sm:$0x1]
        %v461 = vlaneseq
        %v462 = vshrl.u32 %v461, 7
        %v463 = vsub.s32 0, %v462
        %v464 = vrot.slane %v459, %v463
        %v467 = vsel %vm257, %v373, 0
        %v470 = vsel %vm257, %v378, 0
        %v473 = vsel %vm257, %v383, 0
        %v476 = vsel %vm257, %v388, 0
        %v479 = vsel %vm257, %v393, 0
        %v482 = vsel %vm257, %v398, 0
        %v485 = vsel %vm257, %v403, 0
        %v488 = vsel %vm257, %v408, 0
        %v491 = vsel %vm257, %v413, 0
        %v494 = vsel %vm257, %v418, 0
        %v497 = vsel %vm257, %v423, 0
        %v500 = vsel %vm257, %v428, 0
        %v503 = vsel %vm257, %v433, 0
        %v506 = vsel %vm257, %v438, 0
        %v509 = vsel %vm257, %v443, 0
        %v512 = vsel %vm257, %v448, 0
        %514 = vmatprep.subr.mxu0 0.0
        %515 = vmatpush1.msra.mxu0 %v451
        %516 = vmatprep.subr.mxu0 0.0
        %517 = vmatpush1.msra.mxu0 %v452
        %518 = vmatprep.subr.mxu0 0.0
        %519 = vmatpush1.msra.mxu0 %v453
        %520 = vmatprep.subr.mxu0 0.0
        %521 = vmatpush1.msra.mxu0 %v454
        %522 = vmatprep.subr.mxu0 0.0
        %523 = vmatpush1.msra.mxu0 %v455
        %524 = vmatprep.subr.mxu0 0.0
        %525 = vmatpush1.msra.mxu0 %v456
        %526 = vmatprep.subr.mxu0 0.0
        %527 = vmatpush1.msra.mxu0 %v457
        %528 = vmatprep.subr.mxu0 0.0
        %529 = vmatpush1.msra.mxu0 %v458
        %530 = vmatprep.subr.mxu0 0.0
        %531 = vmatpush1.msra.mxu0 0.0
        %532 = vmatprep.subr.mxu0 0.0
        %533 = vmatpush1.msra.mxu0 0.0
        %534 = vmatprep.subr.mxu0 0.0
        %535 = vmatpush1.msra.mxu0 0.0
        %536 = vmatprep.subr.mxu0 0.0
        %537 = vmatpush1.msra.mxu0 0.0
        %538 = vmatprep.subr.mxu0 0.0
        %539 = vmatpush1.msra.mxu0 0.0
        %540 = vmatprep.subr.mxu0 0.0
        %541 = vmatpush1.msra.mxu0 0.0
        %542 = vmatprep.subr.mxu0 0.0
        %543 = vmatpush1.msra.mxu0 0.0
        %544 = vmatprep.subr.mxu0 0.0
        %545 = vmatpush1.msra.mxu0 0.0
        %546 = vmatprep.subr.mxu0 0.0
        %547 = vmatpush1.msra.mxu0 0.0
        %548 = vmatprep.subr.mxu0 0.0
        %549 = vmatpush1.msra.mxu0 0.0
        %550 = vmatprep.subr.mxu0 0.0
        %551 = vmatpush1.msra.mxu0 0.0
        %552 = vmatprep.subr.mxu0 0.0
        %553 = vmatpush1.msra.mxu0 0.0
        %554 = vmatprep.subr.mxu0 0.0
        %555 = vmatpush1.msra.mxu0 0.0
        %556 = vmatprep.subr.mxu0 0.0
        %557 = vmatpush1.msra.mxu0 0.0
        %558 = vmatprep.subr.mxu0 0.0
        %559 = vmatpush1.msra.mxu0 0.0
        %560 = vmatprep.subr.mxu0 0.0
        %561 = vmatpush1.msra.mxu0 0.0
        %562 = vmatprep.subr.mxu0 0.0
        %563 = vmatpush1.msra.mxu0 0.0
        %564 = vmatprep.subr.mxu0 0.0
        %565 = vmatpush1.msra.mxu0 0.0
        %566 = vmatprep.subr.mxu0 0.0
        %567 = vmatpush1.msra.mxu0 0.0
        %568 = vmatprep.subr.mxu0 0.0
        %569 = vmatpush1.msra.mxu0 0.0
        %570 = vmatprep.subr.mxu0 0.0
        %571 = vmatpush1.msra.mxu0 0.0
        %572 = vmatprep.subr.mxu0 0.0
        %573 = vmatpush1.msra.mxu0 0.0
        %574 = vmatprep.subr.mxu0 0.0
        %575 = vmatpush1.msra.mxu0 0.0
        %576 = vmatprep.subr.mxu0 0.0
        %577 = vmatpush1.msra.mxu0 0.0
        %578 = vmatprep.mubr.f32.mxu0 0.0
        %579 = vmatmul.mubr.f32.gmra.mrb[0].mxu0 %v467
        %v580 = vpop.f32.mrb[0].mxu0
        %v581 = vadd.f32 %v464, %v580
        %v582 = vpop.f32.mrb[0].mxu0
        %583 = vmatprep.mubr.f32.mxu0 0.0
        %584 = vmatmul.mubr.f32.gmra.mrb[0].mxu0 %v470
        %v585 = vpop.f32.mrb[0].mxu0
        %v586 = vadd.f32 %v464, %v585
        %v587 = vpop.f32.mrb[0].mxu0
        %588 = vmatprep.mubr.f32.mxu0 0.0
        %589 = vmatmul.mubr.f32.gmra.mrb[0].mxu0 %v473
        %v590 = vpop.f32.mrb[0].mxu0
        %v591 = vadd.f32 %v464, %v590
        %v592 = vpop.f32.mrb[0].mxu0
        %593 = vmatprep.mubr.f32.mxu0 0.0
        %594 = vmatmul.mubr.f32.gmra.mrb[0].mxu0 %v476
        %v595 = vpop.f32.mrb[0].mxu0
        %v596 = vadd.f32 %v464, %v595
        %v597 = vpop.f32.mrb[0].mxu0
        %598 = vmatprep.mubr.f32.mxu0 0.0
        %599 = vmatmul.mubr.f32.gmra.mrb[0].mxu0 %v479
        %v600 = vpop.f32.mrb[0].mxu0
        %v601 = vadd.f32 %v464, %v600
        %v602 = vpop.f32.mrb[0].mxu0
        %603 = vmatprep.mubr.f32.mxu0 0.0
        %604 = vmatmul.mubr.f32.gmra.mrb[0].mxu0 %v482
        %v605 = vpop.f32.mrb[0].mxu0
        %v606 = vadd.f32 %v464, %v605
        %v607 = vpop.f32.mrb[0].mxu0
        %608 = vmatprep.mubr.f32.mxu0 0.0
        %609 = vmatmul.mubr.f32.gmra.mrb[0].mxu0 %v485
        %v610 = vpop.f32.mrb[0].mxu0
        %v611 = vadd.f32 %v464, %v610
        %v612 = vpop.f32.mrb[0].mxu0
        %613 = vmatprep.mubr.f32.mxu0 0.0
        %614 = vmatmul.mubr.f32.gmra.mrb[0].mxu0 %v488
        %v615 = vpop.f32.mrb[0].mxu0
        %v616 = vadd.f32 %v464, %v615
        %v617 = vpop.f32.mrb[0].mxu0
        %618 = vmatprep.mubr.f32.mxu0 0.0
        %619 = vmatmul.mubr.f32.gmra.mrb[0].mxu0 %v491
        %v620 = vpop.f32.mrb[0].mxu0
        %v621 = vadd.f32 %v464, %v620
        %v622 = vpop.f32.mrb[0].mxu0
        %623 = vmatprep.mubr.f32.mxu0 0.0
        %624 = vmatmul.mubr.f32.gmra.mrb[0].mxu0 %v494
        %v625 = vpop.f32.mrb[0].mxu0
        %v626 = vadd.f32 %v464, %v625
        %v627 = vpop.f32.mrb[0].mxu0
        %628 = vmatprep.mubr.f32.mxu0 0.0
        %629 = vmatmul.mubr.f32.gmra.mrb[0].mxu0 %v497
        %v630 = vpop.f32.mrb[0].mxu0
        %v631 = vadd.f32 %v464, %v630
        %v632 = vpop.f32.mrb[0].mxu0
        %633 = vmatprep.mubr.f32.mxu0 0.0
        %634 = vmatmul.mubr.f32.gmra.mrb[0].mxu0 %v500
        %v635 = vpop.f32.mrb[0].mxu0
        %v636 = vadd.f32 %v464, %v635
        %v637 = vpop.f32.mrb[0].mxu0
        %638 = vmatprep.mubr.f32.mxu0 0.0
        %639 = vmatmul.mubr.f32.gmra.mrb[0].mxu0 %v503
        %v640 = vpop.f32.mrb[0].mxu0
        %v641 = vadd.f32 %v464, %v640
        %v642 = vpop.f32.mrb[0].mxu0
        %643 = vmatprep.mubr.f32.mxu0 0.0
        %644 = vmatmul.mubr.f32.gmra.mrb[0].mxu0 %v506
        %v645 = vpop.f32.mrb[0].mxu0
        %v646 = vadd.f32 %v464, %v645
        %v647 = vpop.f32.mrb[0].mxu0
        %648 = vmatprep.mubr.f32.mxu0 0.0
        %649 = vmatmul.mubr.f32.gmra.mrb[0].mxu0 %v509
        %v650 = vpop.f32.mrb[0].mxu0
        %v651 = vadd.f32 %v464, %v650
        %v652 = vpop.f32.mrb[0].mxu0
        %653 = vmatprep.mubr.f32.mxu0 0.0
        %654 = vmatmul.mubr.f32.gmra.mrb[0].mxu0 %v512
        %v655 = vpop.f32.mrb[0].mxu0
        %v656 = vadd.f32 %v464, %v655
        %v657 = vpop.f32.mrb[0].mxu0
        %658 = vdwg.mxu0
        %659 = vst [vmem:[%s218] sm:$0xff] %v581
        %660 = vst [vmem:[%s218 + $0x8] sm:$0xff] %v586
        %661 = vst [vmem:[%s218 + $0x10] sm:$0xff] %v591
        %662 = vst [vmem:[%s218 + $0x18] sm:$0xff] %v596
        %663 = vst [vmem:[%s218 + $0x20] sm:$0xff] %v601
        %664 = vst [vmem:[%s218 + $0x28] sm:$0xff] %v606
        %665 = vst [vmem:[%s218 + $0x30] sm:$0xff] %v611
        %666 = vst [vmem:[%s218 + $0x38] sm:$0xff] %v616
        %667 = vst [vmem:[%s218 + $0x40] sm:$0xff] %v621
        %668 = vst [vmem:[%s218 + $0x48] sm:$0xff] %v626
        %669 = vst [vmem:[%s218 + $0x50] sm:$0xff] %v631
        %670 = vst [vmem:[%s218 + $0x58] sm:$0xff] %v636
        %671 = vst [vmem:[%s218 + $0x60] sm:$0xff] %v641
        %672 = vst [vmem:[%s218 + $0x68] sm:$0xff] %v646
        %673 = vst [vmem:[%s218 + $0x70] sm:$0xff] %v651
        %674 = vst [vmem:[%s218 + $0x78] sm:$0xff] %v656
        %s675 = sand.u32 %s137, 1
        %s676 = scalar_lea.sflag [#allocation3], %s675
        %s677 = sand.u32 %s137, 1
        %s678 = smul.addr %s677, 128
        %s679 = scalar_lea.vmem [#allocation2], %s678
        // Predicated region
        $region41: #{custom_longformer_forward.7} parent=39 // pred_check
          %p680 = pneg %p147
        $region42: #{custom_longformer_forward.7} parent=39 // pred_check_branch
          %682 = sbr.rel (%p680) target = $region44
        $region43: #{custom_longformer_forward.7} parent=39 // pred_region
          %s683 = smul.u32 16, %s19
          %s685 = ssub.s32 2048, 2048
          %686 = vsyncadd %s676, %s685
          %s687 = smul.addr %s683, 128
          %s688 = scalar_lea.hbm %s5, %s687
          %s689 = sshll.u32 %s679, 4
          %s690 = int_to_ptr.vmem [resolvable:$true] %s689
          %695 = dma.vmem_to_hbm [thread:$0]  %s690, 2048, %s688, %s676, 128, 128, 8
        $region44: #{custom_longformer_forward.7} parent=39 // pred_fallthru
          _
      $region40: #{custom_longformer_forward.7} parent=5 // pred_fallthru
        _
      %p696 = scmp.le.s32.totalorder 2, %s14
      // Predicated region
      $region45: #{custom_longformer_forward.7} parent=5 // pred_check
        %p697 = pneg %p696
      $region46: #{custom_longformer_forward.7} parent=5 // pred_check_branch
        %699 = sbr.rel (%p697) target = $region48
      $region47: #{custom_longformer_forward.7} parent=5 // pred_region
        %s700 = ssub.s32 %s14, 2
        // Predicated region
        $region49: #{custom_longformer_forward.7} parent=47 // pred_check
          %p701 = pneg %p153
        $region50: #{custom_longformer_forward.7} parent=47 // pred_check_branch
          %703 = sbr.rel (%p701) target = $region52
        $region51: #{custom_longformer_forward.7} parent=47 // pred_region
          %s704 = sand.u32 %s138, 1
          %s705 = scalar_lea.sflag [#allocation3], %s704
          %s706 = sand.u32 %s138, 1
          %s707 = smul.addr %s706, 128
          %s708 = scalar_lea.vmem [#allocation2], %s707
          %709 = dma.done %s705, 2048
        $region52: #{custom_longformer_forward.7} parent=47 // pred_fallthru
          _
      $region48: #{custom_longformer_forward.7} parent=5 // pred_fallthru
        _
    $region6: #{custom_longformer_forward.7} parent=1 // loop_footer
      %s18 = sadd.s32 1, %s14
    $region7: #{custom_longformer_forward.7} parent=1 // loop_footer_branch
      %13 = sbr.rel target = $region3
    $region8: #{custom_longformer_forward.7} parent=1 // loop_exit
      _
    %710 = vsyncpa [#allocation3], 1
    %s711 = scalar_lea.sflag [#allocation3], 1
    %712 = vsyncpa %s711, 1

// kernel: custom_longformer_forward.5
$region0: #{custom_longformer_forward.5}
  #allocation0 [shape = 'u32[]', space=smem, size = 0x4, offset = 0x4, fixed_abs, tag = 'smem constant byte address 0x4 - core index']
  #allocation1 [shape = 'u32[144,128]{1,0:T(1,128)}', space=vmem, size = 0x12000, scoped, tag = 'internal scratch']
  #allocation2 [shape = 'f32[128,128]{1,0:T(8,128)}', space=vmem, size = 0x10000, scoped, tag = 'scratch operand']
  #allocation3 [shape = 'f32[64,64]{1,0:T(8,128)}', space=vmem, size = 0x8000, scoped, tag = 'scratch operand']
  %s0 = inlined_call_operand.vmem [shape: f32[4], index: 0, kind: input, shape index: {}]
  %s1 = inlined_call_operand.vmem [shape: f32[4], index: 1, kind: input, shape index: {}]
  %s2 = inlined_call_operand.vmem [shape: f32[2,128,64], index: 2, kind: input, shape index: {}, may-alias: {2,3}]
  %s3 = inlined_call_operand.vmem [shape: f32[2,128,64], index: 3, kind: input, shape index: {}, may-alias: {2,3}]
  %s4 = inlined_call_operand.vmem [shape: f32[64,64], index: 4, kind: input, shape index: {}]
  %s5 = inlined_call_operand.vmem [shape: f32[1,64], index: 5, kind: input, shape index: {}]
  %s6 = inlined_call_operand.vmem [shape: f32[64,128], index: 6, kind: input, shape index: {}]
  %s7 = inlined_call_operand.vmem [shape: f32[1,128], index: 7, kind: input, shape index: {}]
  %s8 = inlined_call_operand.vmem [shape: f32[1,64], index: 8, kind: input, shape index: {}]
  %s9 = inlined_call_operand.vmem [shape: f32[1,64], index: 9, kind: input, shape index: {}]
  %s10 = inlined_call_operand.vmem [shape: f32[64,64], index: 10, kind: input, shape index: {}]
  %s11 = inlined_call_operand.vmem [shape: f32[1,64], index: 11, kind: input, shape index: {}]
  %s12 = inlined_call_operand.vmem [shape: f32[2,128,64], index: 12, kind: output, shape index: {}]
  %s13 = sld [smem:[#allocation0]]
  $region117: #{custom_longformer_forward.5} parent=0
    _
  %s15 = ssub.s32 1, %s13
  %s16 = scalar_select 0, %s15, %s13
  $region1: #{custom_longformer_forward.5} parent=0
    #allocation4 [shape = 'u8[512]{0}', space=smem, size = 0x200, scoped, tag = 'input window, operand 0, single buffered']
    #allocation5 [shape = 's32[2]{0}', space=sflag, size = 0x8, scoped, tag = 'scoped memory for custom_longformer_forward.5']
    #allocation6 [shape = 'u8[512]{0}', space=smem, size = 0x200, scoped, tag = 'input window, operand 1, single buffered']
    #allocation7 [shape = 's32[1]{0}', space=sflag, size = 0x4, scoped, tag = 'scoped memory for custom_longformer_forward.5']
    %17 = vsyncpa [#allocation5], 0
    %18 = vsyncpa [#allocation7], 0
    loop: start=0, step=1, limit=6
    $region2: #{custom_longformer_forward.5} parent=1 // loop_pre_header
      _
    $region3: #{custom_longformer_forward.5} parent=1 // loop_header
      %s20 = sphi 0, %s24
      %p21 = scmp.ge.s32.totalorder %s20, 6
      %s27 = sphi 0, %s39
      %s28 = sphi 0, %s35
      %s29 = sphi 0, %s27
      %s30 = sphi 0, %s28
      %s31 = sphi 0, %s29
      %s32 = sphi 0, %s30
      %s40 = sphi 0, %s40
      %s42 = sphi 0, %s40
      %s43 = sphi 0, %s42
      %s57 = sphi 0, %s43
      %s61 = sphi 0, %s61
      %s63 = sphi 0, %s61
      %s64 = sphi 0, %s63
      %s78 = sphi 0, %s64
      %s86 = sphi 0, %s88
      %s89 = sphi 0, %s86
      %s90 = sphi 0, %s89
      %s106 = sphi 0, %s90
      %s112 = sphi 0, %s114
      %s115 = sphi 0, %s112
      %s116 = sphi 0, %s115
      %s132 = sphi 0, %s116
      %s136 = sphi 0, %s136
      %s138 = sphi 0, %s136
      %s139 = sphi 0, %s138
      %s153 = sphi 0, %s139
      %s157 = sphi 0, %s157
      %s159 = sphi 0, %s157
      %s160 = sphi 0, %s159
      %s174 = sphi 0, %s160
      %s178 = sphi 0, %s178
      %s180 = sphi 0, %s178
      %s181 = sphi 0, %s180
      %s195 = sphi 0, %s181
      %s199 = sphi 0, %s199
      %s201 = sphi 0, %s199
      %s202 = sphi 0, %s201
      %s216 = sphi 0, %s202
      %s220 = sphi 0, %s220
      %s222 = sphi 0, %s220
      %s223 = sphi 0, %s222
      %s237 = sphi 0, %s223
      %s241 = sphi 0, %s241
      %s243 = sphi 0, %s241
      %s244 = sphi 0, %s243
      %s258 = sphi 0, %s244
      %s262 = sphi 0, %s262
      %s264 = sphi 0, %s262
      %s265 = sphi 0, %s264
      %s279 = sphi 0, %s265
      %s283 = sphi 0, %s283
      %s285 = sphi 0, %s283
      %s286 = sphi 0, %s285
      %s300 = sphi 0, %s286
      %s308 = sphi 0, %s310
      %s311 = sphi 0, %s308
      %s312 = sphi 0, %s311
      %s328 = sphi 0, %s312
    $region4: #{custom_longformer_forward.5} parent=1 // loop_header_branch
      %23 = sbr.rel (%p21) target = $region8
    $region5: #{custom_longformer_forward.5} parent=1 // loop_body
      %s25 = ssub.s32 %s20, 1
      %s26 = ssub.s32 %s20, 2
      %s33 = sadd.s32 1, %s28
      %p34 = scmp.ge.s32.totalorder %s33, 2
      %s35 = scalar_select %p34, 0, %s33
      %s36 = sadd.s32 1, %s27
      %s37 = scalar_select %p34, %s36, %s27
      %p38 = scmp.ge.s32.totalorder %s37, 2
      %s39 = scalar_select %p38, 0, %s37
      %s41 = sadd.s32 %s40, 1
      %p44 = scmp.eq.s32.totalorder %s20, 3
      %p45 = scmp.ne.s32.totalorder %s40, %s42
      %p46 = scmp.eq.s32.totalorder %s20, 0
      %p47 = por %p45, %p46
      %p48 = scmp.ne.s32.totalorder %s40, %s42
      %p49 = scmp.eq.s32.totalorder %s25, 3
      %p50 = por %p48, %p49
      %p51 = scmp.ne.s32.totalorder %s42, %s43
      %p52 = scmp.eq.s32.totalorder %s25, 0
      %p53 = por %p51, %p52
      %p54 = scmp.ne.s32.totalorder %s42, %s43
      %p55 = scmp.eq.s32.totalorder %s26, 3
      %p56 = por %p54, %p55
      %p58 = scmp.ne.s32.totalorder %s43, %s57
      %p59 = scmp.eq.s32.totalorder %s26, 0
      %p60 = por %p58, %p59
      %s62 = sadd.s32 %s61, 1
      %p65 = scmp.eq.s32.totalorder %s20, 3
      %p66 = scmp.ne.s32.totalorder %s61, %s63
      %p67 = scmp.eq.s32.totalorder %s20, 0
      %p68 = por %p66, %p67
      %p69 = scmp.ne.s32.totalorder %s61, %s63
      %p70 = scmp.eq.s32.totalorder %s25, 3
      %p71 = por %p69, %p70
      %p72 = scmp.ne.s32.totalorder %s63, %s64
      %p73 = scmp.eq.s32.totalorder %s25, 0
      %p74 = por %p72, %p73
      %p75 = scmp.ne.s32.totalorder %s63, %s64
      %p76 = scmp.eq.s32.totalorder %s26, 3
      %p77 = por %p75, %p76
      %p79 = scmp.ne.s32.totalorder %s64, %s78
      %p80 = scmp.eq.s32.totalorder %s26, 0
      %p81 = por %p79, %p80
      %s82 = ssub.s32 %s27, %s39
      %s83 = ssub.s32 %s28, %s35
      %s84 = sor.u32 %s82, %s83
      %p85 = scmp.eq.s32.totalorder %s84, 0
      %s87 = sadd.s32 %s86, 1
      %s88 = scalar_select %p85, %s86, %s87
      %p91 = pneg %p85
      %p92 = scmp.eq.s32.totalorder %s20, 3
      %p93 = por %p91, %p92
      %p94 = scmp.ne.s32.totalorder %s86, %s89
      %p95 = scmp.eq.s32.totalorder %s20, 0
      %p96 = por %p94, %p95
      %p97 = scmp.ne.s32.totalorder %s86, %s89
      %p98 = scmp.eq.s32.totalorder %s25, 3
      %p99 = por %p97, %p98
      %p100 = scmp.ne.s32.totalorder %s89, %s90
      %p101 = scmp.eq.s32.totalorder %s25, 0
      %p102 = por %p100, %p101
      %p103 = scmp.ne.s32.totalorder %s89, %s90
      %p104 = scmp.eq.s32.totalorder %s26, 3
      %p105 = por %p103, %p104
      %p107 = scmp.ne.s32.totalorder %s90, %s106
      %p108 = scmp.eq.s32.totalorder %s26, 0
      %p109 = por %p107, %p108
      %s110 = ssub.s32 %s27, %s39
      %p111 = scmp.eq.s32.totalorder %s110, 0
      %s113 = sadd.s32 %s112, 1
      %s114 = scalar_select %p111, %s112, %s113
      %p117 = pneg %p111
      %p118 = scmp.eq.s32.totalorder %s20, 3
      %p119 = por %p117, %p118
      %p120 = scmp.ne.s32.totalorder %s112, %s115
      %p121 = scmp.eq.s32.totalorder %s20, 0
      %p122 = por %p120, %p121
      %p123 = scmp.ne.s32.totalorder %s112, %s115
      %p124 = scmp.eq.s32.totalorder %s25, 3
      %p125 = por %p123, %p124
      %p126 = scmp.ne.s32.totalorder %s115, %s116
      %p127 = scmp.eq.s32.totalorder %s25, 0
      %p128 = por %p126, %p127
      %p129 = scmp.ne.s32.totalorder %s115, %s116
      %p130 = scmp.eq.s32.totalorder %s26, 3
      %p131 = por %p129, %p130
      %p133 = scmp.ne.s32.totalorder %s116, %s132
      %p134 = scmp.eq.s32.totalorder %s26, 0
      %p135 = por %p133, %p134
      %s137 = sadd.s32 %s136, 1
      %p140 = scmp.eq.s32.totalorder %s20, 3
      %p141 = scmp.ne.s32.totalorder %s136, %s138
      %p142 = scmp.eq.s32.totalorder %s20, 0
      %p143 = por %p141, %p142
      %p144 = scmp.ne.s32.totalorder %s136, %s138
      %p145 = scmp.eq.s32.totalorder %s25, 3
      %p146 = por %p144, %p145
      %p147 = scmp.ne.s32.totalorder %s138, %s139
      %p148 = scmp.eq.s32.totalorder %s25, 0
      %p149 = por %p147, %p148
      %p150 = scmp.ne.s32.totalorder %s138, %s139
      %p151 = scmp.eq.s32.totalorder %s26, 3
      %p152 = por %p150, %p151
      %p154 = scmp.ne.s32.totalorder %s139, %s153
      %p155 = scmp.eq.s32.totalorder %s26, 0
      %p156 = por %p154, %p155
      %s158 = sadd.s32 %s157, 1
      %p161 = scmp.eq.s32.totalorder %s20, 3
      %p162 = scmp.ne.s32.totalorder %s157, %s159
      %p163 = scmp.eq.s32.totalorder %s20, 0
      %p164 = por %p162, %p163
      %p165 = scmp.ne.s32.totalorder %s157, %s159
      %p166 = scmp.eq.s32.totalorder %s25, 3
      %p167 = por %p165, %p166
      %p168 = scmp.ne.s32.totalorder %s159, %s160
      %p169 = scmp.eq.s32.totalorder %s25, 0
      %p170 = por %p168, %p169
      %p171 = scmp.ne.s32.totalorder %s159, %s160
      %p172 = scmp.eq.s32.totalorder %s26, 3
      %p173 = por %p171, %p172
      %p175 = scmp.ne.s32.totalorder %s160, %s174
      %p176 = scmp.eq.s32.totalorder %s26, 0
      %p177 = por %p175, %p176
      %s179 = sadd.s32 %s178, 1
      %p182 = scmp.eq.s32.totalorder %s20, 3
      %p183 = scmp.ne.s32.totalorder %s178, %s180
      %p184 = scmp.eq.s32.totalorder %s20, 0
      %p185 = por %p183, %p184
      %p186 = scmp.ne.s32.totalorder %s178, %s180
      %p187 = scmp.eq.s32.totalorder %s25, 3
      %p188 = por %p186, %p187
      %p189 = scmp.ne.s32.totalorder %s180, %s181
      %p190 = scmp.eq.s32.totalorder %s25, 0
      %p191 = por %p189, %p190
      %p192 = scmp.ne.s32.totalorder %s180, %s181
      %p193 = scmp.eq.s32.totalorder %s26, 3
      %p194 = por %p192, %p193
      %p196 = scmp.ne.s32.totalorder %s181, %s195
      %p197 = scmp.eq.s32.totalorder %s26, 0
      %p198 = por %p196, %p197
      %s200 = sadd.s32 %s199, 1
      %p203 = scmp.eq.s32.totalorder %s20, 3
      %p204 = scmp.ne.s32.totalorder %s199, %s201
      %p205 = scmp.eq.s32.totalorder %s20, 0
      %p206 = por %p204, %p205
      %p207 = scmp.ne.s32.totalorder %s199, %s201
      %p208 = scmp.eq.s32.totalorder %s25, 3
      %p209 = por %p207, %p208
      %p210 = scmp.ne.s32.totalorder %s201, %s202
      %p211 = scmp.eq.s32.totalorder %s25, 0
      %p212 = por %p210, %p211
      %p213 = scmp.ne.s32.totalorder %s201, %s202
      %p214 = scmp.eq.s32.totalorder %s26, 3
      %p215 = por %p213, %p214
      %p217 = scmp.ne.s32.totalorder %s202, %s216
      %p218 = scmp.eq.s32.totalorder %s26, 0
      %p219 = por %p217, %p218
      %s221 = sadd.s32 %s220, 1
      %p224 = scmp.eq.s32.totalorder %s20, 3
      %p225 = scmp.ne.s32.totalorder %s220, %s222
      %p226 = scmp.eq.s32.totalorder %s20, 0
      %p227 = por %p225, %p226
      %p228 = scmp.ne.s32.totalorder %s220, %s222
      %p229 = scmp.eq.s32.totalorder %s25, 3
      %p230 = por %p228, %p229
      %p231 = scmp.ne.s32.totalorder %s222, %s223
      %p232 = scmp.eq.s32.totalorder %s25, 0
      %p233 = por %p231, %p232
      %p234 = scmp.ne.s32.totalorder %s222, %s223
      %p235 = scmp.eq.s32.totalorder %s26, 3
      %p236 = por %p234, %p235
      %p238 = scmp.ne.s32.totalorder %s223, %s237
      %p239 = scmp.eq.s32.totalorder %s26, 0
      %p240 = por %p238, %p239
      %s242 = sadd.s32 %s241, 1
      %p245 = scmp.eq.s32.totalorder %s20, 3
      %p246 = scmp.ne.s32.totalorder %s241, %s243
      %p247 = scmp.eq.s32.totalorder %s20, 0
      %p248 = por %p246, %p247
      %p249 = scmp.ne.s32.totalorder %s241, %s243
      %p250 = scmp.eq.s32.totalorder %s25, 3
      %p251 = por %p249, %p250
      %p252 = scmp.ne.s32.totalorder %s243, %s244
      %p253 = scmp.eq.s32.totalorder %s25, 0
      %p254 = por %p252, %p253
      %p255 = scmp.ne.s32.totalorder %s243, %s244
      %p256 = scmp.eq.s32.totalorder %s26, 3
      %p257 = por %p255, %p256
      %p259 = scmp.ne.s32.totalorder %s244, %s258
      %p260 = scmp.eq.s32.totalorder %s26, 0
      %p261 = por %p259, %p260
      %s263 = sadd.s32 %s262, 1
      %p266 = scmp.eq.s32.totalorder %s20, 3
      %p267 = scmp.ne.s32.totalorder %s262, %s264
      %p268 = scmp.eq.s32.totalorder %s20, 0
      %p269 = por %p267, %p268
      %p270 = scmp.ne.s32.totalorder %s262, %s264
      %p271 = scmp.eq.s32.totalorder %s25, 3
      %p272 = por %p270, %p271
      %p273 = scmp.ne.s32.totalorder %s264, %s265
      %p274 = scmp.eq.s32.totalorder %s25, 0
      %p275 = por %p273, %p274
      %p276 = scmp.ne.s32.totalorder %s264, %s265
      %p277 = scmp.eq.s32.totalorder %s26, 3
      %p278 = por %p276, %p277
      %p280 = scmp.ne.s32.totalorder %s265, %s279
      %p281 = scmp.eq.s32.totalorder %s26, 0
      %p282 = por %p280, %p281
      %s284 = sadd.s32 %s283, 1
      %p287 = scmp.eq.s32.totalorder %s20, 3
      %p288 = scmp.ne.s32.totalorder %s283, %s285
      %p289 = scmp.eq.s32.totalorder %s20, 0
      %p290 = por %p288, %p289
      %p291 = scmp.ne.s32.totalorder %s283, %s285
      %p292 = scmp.eq.s32.totalorder %s25, 3
      %p293 = por %p291, %p292
      %p294 = scmp.ne.s32.totalorder %s285, %s286
      %p295 = scmp.eq.s32.totalorder %s25, 0
      %p296 = por %p294, %p295
      %p297 = scmp.ne.s32.totalorder %s285, %s286
      %p298 = scmp.eq.s32.totalorder %s26, 3
      %p299 = por %p297, %p298
      %p301 = scmp.ne.s32.totalorder %s286, %s300
      %p302 = scmp.eq.s32.totalorder %s26, 0
      %p303 = por %p301, %p302
      %s304 = ssub.s32 %s27, %s39
      %s305 = ssub.s32 %s28, %s35
      %s306 = sor.u32 %s304, %s305
      %p307 = scmp.eq.s32.totalorder %s306, 0
      %s309 = sadd.s32 %s308, 1
      %s310 = scalar_select %p307, %s308, %s309
      %p313 = pneg %p307
      %p314 = scmp.eq.s32.totalorder %s20, 3
      %p315 = por %p313, %p314
      %p316 = scmp.ne.s32.totalorder %s308, %s311
      %p317 = scmp.eq.s32.totalorder %s20, 0
      %p318 = por %p316, %p317
      %p319 = scmp.ne.s32.totalorder %s308, %s311
      %p320 = scmp.eq.s32.totalorder %s25, 3
      %p321 = por %p319, %p320
      %p322 = scmp.ne.s32.totalorder %s311, %s312
      %p323 = scmp.eq.s32.totalorder %s25, 0
      %p324 = por %p322, %p323
      %p325 = scmp.ne.s32.totalorder %s311, %s312
      %p326 = scmp.eq.s32.totalorder %s26, 3
      %p327 = por %p325, %p326
      %p329 = scmp.ne.s32.totalorder %s312, %s328
      %p330 = scmp.eq.s32.totalorder %s26, 0
      %p331 = por %p329, %p330
      %p332 = scmp.le.s32.totalorder 1, %s20
      %p333 = scmp.lt.s32.totalorder %s20, 5
      %p334 = pnand %p332, %p333
      %p335 = pneg %p334
      // Predicated region
      $region9: #{custom_longformer_forward.5} parent=5 // pred_check
        _
      $region10: #{custom_longformer_forward.5} parent=5 // pred_check_branch
        %337 = sbr.rel (%p334) target = $region12
      $region11: #{custom_longformer_forward.5} parent=5 // pred_region
        %s338 = ssub.s32 %s20, 1
        // Predicated region
        $region13: #{custom_longformer_forward.5} parent=11 // pred_check
          %p339 = pneg %p53
        $region14: #{custom_longformer_forward.5} parent=11 // pred_check_branch
          %341 = sbr.rel (%p339) target = $region16
        $region15: #{custom_longformer_forward.5} parent=11 // pred_region
          %s343 = ssub.s32 16, 16
          %344 = vsyncadd [#allocation5], %s343
          %s346 = sshll.u32 %s0, 4
          %s347 = int_to_ptr.vmem [resolvable:$true] %s346
          %349 = dma.vmem_to_smem %s347, 16, [#allocation4], [#allocation5]
        $region16: #{custom_longformer_forward.5} parent=11 // pred_fallthru
          _
        // Predicated region
        $region17: #{custom_longformer_forward.5} parent=11 // pred_check
          %p350 = pneg %p74
        $region18: #{custom_longformer_forward.5} parent=11 // pred_check_branch
          %352 = sbr.rel (%p350) target = $region20
        $region19: #{custom_longformer_forward.5} parent=11 // pred_region
          %s354 = ssub.s32 16, 16
          %355 = vsyncadd [#allocation7], %s354
          %s357 = sshll.u32 %s1, 4
          %s358 = int_to_ptr.vmem [resolvable:$true] %s357
          %360 = dma.vmem_to_smem %s358, 16, [#allocation6], [#allocation7]
        $region20: #{custom_longformer_forward.5} parent=11 // pred_fallthru
          _
        // Predicated region
        $region21: #{custom_longformer_forward.5} parent=11 // pred_check
          %p361 = pneg %p149
        $region22: #{custom_longformer_forward.5} parent=11 // pred_check_branch
          %363 = sbr.rel (%p361) target = $region24
        $region23: #{custom_longformer_forward.5} parent=11 // pred_region
          _
        $region24: #{custom_longformer_forward.5} parent=11 // pred_fallthru
          _
        // Predicated region
        $region25: #{custom_longformer_forward.5} parent=11 // pred_check
          %p364 = pneg %p170
        $region26: #{custom_longformer_forward.5} parent=11 // pred_check_branch
          %366 = sbr.rel (%p364) target = $region28
        $region27: #{custom_longformer_forward.5} parent=11 // pred_region
          _
        $region28: #{custom_longformer_forward.5} parent=11 // pred_fallthru
          _
        // Predicated region
        $region29: #{custom_longformer_forward.5} parent=11 // pred_check
          %p367 = pneg %p191
        $region30: #{custom_longformer_forward.5} parent=11 // pred_check_branch
          %369 = sbr.rel (%p367) target = $region32
        $region31: #{custom_longformer_forward.5} parent=11 // pred_region
          _
        $region32: #{custom_longformer_forward.5} parent=11 // pred_fallthru
          _
        // Predicated region
        $region33: #{custom_longformer_forward.5} parent=11 // pred_check
          %p370 = pneg %p212
        $region34: #{custom_longformer_forward.5} parent=11 // pred_check_branch
          %372 = sbr.rel (%p370) target = $region36
        $region35: #{custom_longformer_forward.5} parent=11 // pred_region
          _
        $region36: #{custom_longformer_forward.5} parent=11 // pred_fallthru
          _
        // Predicated region
        $region37: #{custom_longformer_forward.5} parent=11 // pred_check
          %p373 = pneg %p233
        $region38: #{custom_longformer_forward.5} parent=11 // pred_check_branch
          %375 = sbr.rel (%p373) target = $region40
        $region39: #{custom_longformer_forward.5} parent=11 // pred_region
          _
        $region40: #{custom_longformer_forward.5} parent=11 // pred_fallthru
          _
        // Predicated region
        $region41: #{custom_longformer_forward.5} parent=11 // pred_check
          %p376 = pneg %p254
        $region42: #{custom_longformer_forward.5} parent=11 // pred_check_branch
          %378 = sbr.rel (%p376) target = $region44
        $region43: #{custom_longformer_forward.5} parent=11 // pred_region
          _
        $region44: #{custom_longformer_forward.5} parent=11 // pred_fallthru
          _
        // Predicated region
        $region45: #{custom_longformer_forward.5} parent=11 // pred_check
          %p379 = pneg %p275
        $region46: #{custom_longformer_forward.5} parent=11 // pred_check_branch
          %381 = sbr.rel (%p379) target = $region48
        $region47: #{custom_longformer_forward.5} parent=11 // pred_region
          _
        $region48: #{custom_longformer_forward.5} parent=11 // pred_fallthru
          _
        // Predicated region
        $region49: #{custom_longformer_forward.5} parent=11 // pred_check
          %p382 = pneg %p296
        $region50: #{custom_longformer_forward.5} parent=11 // pred_check_branch
          %384 = sbr.rel (%p382) target = $region52
        $region51: #{custom_longformer_forward.5} parent=11 // pred_region
          _
        $region52: #{custom_longformer_forward.5} parent=11 // pred_fallthru
          _
      $region12: #{custom_longformer_forward.5} parent=5 // pred_fallthru
        _
      %p385 = scmp.lt.s32.totalorder %s20, 4
      // Predicated region
      $region53: #{custom_longformer_forward.5} parent=5 // pred_check
        %p386 = pneg %p385
      $region54: #{custom_longformer_forward.5} parent=5 // pred_check_branch
        %388 = sbr.rel (%p386) target = $region56
      $region55: #{custom_longformer_forward.5} parent=5 // pred_region
        // Predicated region
        $region57: #{custom_longformer_forward.5} parent=55 // pred_check
          %p389 = pneg %p96
        $region58: #{custom_longformer_forward.5} parent=55 // pred_check_branch
          %391 = sbr.rel (%p389) target = $region60
        $region59: #{custom_longformer_forward.5} parent=55 // pred_region
          %s392 = smul.u32 8, %s28
          %p393 = scmp.lt.s32.totalorder %s27, 1
          %s394 = scalar_select %p393, %s27, 1
          %p395 = scmp.lt.s32.totalorder %s392, 15
          %s396 = scalar_select %p395, %s392, 15
          %s397 = smul.addr %s394, 16
          %s398 = sadd.s32 %s396, %s397
          %s399 = smul.addr %s398, 8
          %s400 = scalar_lea.vmem %s2, %s399
          %s401 = smul.u32 8, %s28
        $region60: #{custom_longformer_forward.5} parent=55 // pred_fallthru
          _
        // Predicated region
        $region61: #{custom_longformer_forward.5} parent=55 // pred_check
          %p402 = pneg %p122
        $region62: #{custom_longformer_forward.5} parent=55 // pred_check_branch
          %404 = sbr.rel (%p402) target = $region64
        $region63: #{custom_longformer_forward.5} parent=55 // pred_region
          %p405 = scmp.lt.s32.totalorder %s27, 1
          %s406 = scalar_select %p405, %s27, 1
          %s407 = smul.addr %s406, 16
          %s408 = smul.addr %s407, 8
          %s409 = scalar_lea.vmem %s3, %s408
        $region64: #{custom_longformer_forward.5} parent=55 // pred_fallthru
          _
      $region56: #{custom_longformer_forward.5} parent=5 // pred_fallthru
        _
      %p410 = scmp.le.s32.totalorder 1, %s20
      %p411 = scmp.lt.s32.totalorder %s20, 5
      %p412 = pnand %p410, %p411
      %p413 = pneg %p412
      // Predicated region
      $region65: #{custom_longformer_forward.5} parent=5 // pred_check
        _
      $region66: #{custom_longformer_forward.5} parent=5 // pred_check_branch
        %415 = sbr.rel (%p412) target = $region68
      $region67: #{custom_longformer_forward.5} parent=5 // pred_region
        %s416 = ssub.s32 %s20, 1
        // Predicated region
        $region69: #{custom_longformer_forward.5} parent=67 // pred_check
          %p417 = pneg %p53
        $region70: #{custom_longformer_forward.5} parent=67 // pred_check_branch
          %419 = sbr.rel (%p417) target = $region72
        $region71: #{custom_longformer_forward.5} parent=67 // pred_region
          %420 = dma.done [#allocation5], 16
        $region72: #{custom_longformer_forward.5} parent=67 // pred_fallthru
          _
        // Predicated region
        $region73: #{custom_longformer_forward.5} parent=67 // pred_check
          %p421 = pneg %p74
        $region74: #{custom_longformer_forward.5} parent=67 // pred_check_branch
          %423 = sbr.rel (%p421) target = $region76
        $region75: #{custom_longformer_forward.5} parent=67 // pred_region
          %424 = dma.done [#allocation7], 16
        $region76: #{custom_longformer_forward.5} parent=67 // pred_fallthru
          _
        %425 = sfence
        %p426 = pneg %p53
        %p427 = pneg %p50
        %p428 = pneg %p74
        %p429 = pneg %p71
        %s430 = smul.u32 8, %s30
        %p431 = scmp.lt.s32.totalorder %s29, 1
        %s432 = scalar_select %p431, %s29, 1
        %p433 = scmp.lt.s32.totalorder %s430, 15
        %s434 = scalar_select %p433, %s430, 15
        %s435 = smul.addr %s432, 16
        %s436 = sadd.s32 %s434, %s435
        %s437 = smul.addr %s436, 8
        %s438 = scalar_lea.vmem %s2, %s437
        %p439 = pneg %p102
        %p440 = pneg %p99
        %p441 = scmp.lt.s32.totalorder %s29, 1
        %s442 = scalar_select %p441, %s29, 1
        %s443 = smul.addr %s442, 16
        %s444 = smul.addr %s443, 8
        %s445 = scalar_lea.vmem %s3, %s444
        %p446 = pneg %p128
        %p447 = pneg %p125
        %p448 = pneg %p149
        %p449 = pneg %p146
        %p450 = pneg %p170
        %p451 = pneg %p167
        %p452 = pneg %p191
        %p453 = pneg %p188
        %p454 = pneg %p212
        %p455 = pneg %p209
        %p456 = pneg %p233
        %p457 = pneg %p230
        %p458 = pneg %p254
        %p459 = pneg %p251
        %p460 = pneg %p275
        %p461 = pneg %p272
        %p462 = pneg %p296
        %p463 = pneg %p293
        %p464 = pneg %p324
        %p465 = pneg %p321
        %s466 = smul.u32 8, %s30
        %p467 = scmp.lt.s32.totalorder %s29, 1
        %s468 = scalar_select %p467, %s29, 1
        %p469 = scmp.lt.s32.totalorder %s466, 15
        %s470 = scalar_select %p469, %s466, 15
        %s471 = smul.addr %s468, 16
        %s472 = sadd.s32 %s470, %s471
        %s473 = smul.addr %s472, 8
        %s474 = scalar_lea.vmem %s12, %s473
        %s475 = smul.u32 8, %s30
        %p476 = scmp.lt.s32.totalorder %s29, 1
        %s477 = scalar_select %p476, %s29, 1
        %p478 = scmp.lt.s32.totalorder %s475, 15
        %s479 = scalar_select %p478, %s475, 15
        %s480 = smul.addr %s477, 16
        %s481 = sadd.s32 %s479, %s480
        %s482 = smul.addr %s481, 8
        %s483 = scalar_lea.vmem %s2, %s482
        %s484 = smul.u32 8, %s30
        %p485 = scmp.lt.s32.totalorder %s29, 1
        %s486 = scalar_select %p485, %s29, 1
        %s487 = smul.addr %s486, 16
        %s488 = smul.addr %s487, 8
        %s489 = scalar_lea.vmem %s3, %s488
        %s490 = smul.u32 8, %s30
        %p491 = scmp.lt.s32.totalorder %s29, 1
        %s492 = scalar_select %p491, %s29, 1
        %p493 = scmp.lt.s32.totalorder %s490, 15
        %s494 = scalar_select %p493, %s490, 15
        %s495 = smul.addr %s492, 16
        %s496 = sadd.s32 %s494, %s495
        %s497 = smul.addr %s496, 8
        %s498 = scalar_lea.vmem %s12, %s497
        %s499 = smul.u32 8, %s30
        %v501 = vld [vmem:[%s483] sm:$0xff]
        %v502 = vld [vmem:[%s483 + $0x8] sm:$0xff]
        %v503 = vld [vmem:[%s483 + $0x10] sm:$0xff]
        %v504 = vld [vmem:[%s483 + $0x18] sm:$0xff]
        %v505 = vld [vmem:[%s483 + $0x20] sm:$0xff]
        %v506 = vld [vmem:[%s483 + $0x28] sm:$0xff]
        %v507 = vld [vmem:[%s483 + $0x30] sm:$0xff]
        %v508 = vld [vmem:[%s483 + $0x38] sm:$0xff]
        %v509 = vld [vmem:[%s489] sm:$0xff]
        %v510 = vld [vmem:[%s489 + $0x8] sm:$0xff]
        %v511 = vld [vmem:[%s489 + $0x10] sm:$0xff]
        %v512 = vld [vmem:[%s489 + $0x18] sm:$0xff]
        %v513 = vld [vmem:[%s489 + $0x20] sm:$0xff]
        %v514 = vld [vmem:[%s489 + $0x28] sm:$0xff]
        %v515 = vld [vmem:[%s489 + $0x30] sm:$0xff]
        %v516 = vld [vmem:[%s489 + $0x38] sm:$0xff]
        %v517 = vld [vmem:[%s489 + $0x40] sm:$0xff]
        %v518 = vld [vmem:[%s489 + $0x48] sm:$0xff]
        %v519 = vld [vmem:[%s489 + $0x50] sm:$0xff]
        %v520 = vld [vmem:[%s489 + $0x58] sm:$0xff]
        %v521 = vld [vmem:[%s489 + $0x60] sm:$0xff]
        %v522 = vld [vmem:[%s489 + $0x68] sm:$0xff]
        %v523 = vld [vmem:[%s489 + $0x70] sm:$0xff]
        %v524 = vld [vmem:[%s489 + $0x78] sm:$0xff]
        %v525 = vld [vmem:[%s4] sm:$0xff]
        %v526 = vld [vmem:[%s4 + $0x8] sm:$0xff]
        %v527 = vld [vmem:[%s4 + $0x10] sm:$0xff]
        %v528 = vld [vmem:[%s4 + $0x18] sm:$0xff]
        %v529 = vld [vmem:[%s4 + $0x20] sm:$0xff]
        %v530 = vld [vmem:[%s4 + $0x28] sm:$0xff]
        %v531 = vld [vmem:[%s4 + $0x30] sm:$0xff]
        %v532 = vld [vmem:[%s4 + $0x38] sm:$0xff]
        %v533 = vld [vmem:[%s5] sm:$0x1]
        %v535 = vlaneseq
        %v536 = vshrl.u32 %v535, 7
        %v537 = vsub.s32 0, %v536
        %v538 = vrot.slane %v533, %v537
        %vm540 = vcmask 523264
        %v542 = vsel %vm540, %v501, 0
        %v545 = vsel %vm540, %v502, 0
        %v548 = vsel %vm540, %v503, 0
        %v551 = vsel %vm540, %v504, 0
        %v554 = vsel %vm540, %v505, 0
        %v557 = vsel %vm540, %v506, 0
        %v560 = vsel %vm540, %v507, 0
        %v563 = vsel %vm540, %v508, 0
        %565 = vmatprep.subr.mxu0 0.0
        %566 = vmatpush1.msra.mxu0 %v525
        %567 = vmatprep.subr.mxu0 0.0
        %568 = vmatpush1.msra.mxu0 %v526
        %569 = vmatprep.subr.mxu0 0.0
        %570 = vmatpush1.msra.mxu0 %v527
        %571 = vmatprep.subr.mxu0 0.0
        %572 = vmatpush1.msra.mxu0 %v528
        %573 = vmatprep.subr.mxu0 0.0
        %574 = vmatpush1.msra.mxu0 %v529
        %575 = vmatprep.subr.mxu0 0.0
        %576 = vmatpush1.msra.mxu0 %v530
        %577 = vmatprep.subr.mxu0 0.0
        %578 = vmatpush1.msra.mxu0 %v531
        %579 = vmatprep.subr.mxu0 0.0
        %580 = vmatpush1.msra.mxu0 %v532
        %581 = vmatprep.subr.mxu0 0.0
        %582 = vmatpush1.msra.mxu0 0.0
        %583 = vmatprep.subr.mxu0 0.0
        %584 = vmatpush1.msra.mxu0 0.0
        %585 = vmatprep.subr.mxu0 0.0
        %586 = vmatpush1.msra.mxu0 0.0
        %587 = vmatprep.subr.mxu0 0.0
        %588 = vmatpush1.msra.mxu0 0.0
        %589 = vmatprep.subr.mxu0 0.0
        %590 = vmatpush1.msra.mxu0 0.0
        %591 = vmatprep.subr.mxu0 0.0
        %592 = vmatpush1.msra.mxu0 0.0
        %593 = vmatprep.subr.mxu0 0.0
        %594 = vmatpush1.msra.mxu0 0.0
        %595 = vmatprep.subr.mxu0 0.0
        %596 = vmatpush1.msra.mxu0 0.0
        %597 = vmatprep.subr.mxu0 0.0
        %598 = vmatpush1.msra.mxu0 0.0
        %599 = vmatprep.subr.mxu0 0.0
        %600 = vmatpush1.msra.mxu0 0.0
        %601 = vmatprep.subr.mxu0 0.0
        %602 = vmatpush1.msra.mxu0 0.0
        %603 = vmatprep.subr.mxu0 0.0
        %604 = vmatpush1.msra.mxu0 0.0
        %605 = vmatprep.subr.mxu0 0.0
        %606 = vmatpush1.msra.mxu0 0.0
        %607 = vmatprep.subr.mxu0 0.0
        %608 = vmatpush1.msra.mxu0 0.0
        %609 = vmatprep.subr.mxu0 0.0
        %610 = vmatpush1.msra.mxu0 0.0
        %611 = vmatprep.subr.mxu0 0.0
        %612 = vmatpush1.msra.mxu0 0.0
        %613 = vmatprep.subr.mxu0 0.0
        %614 = vmatpush1.msra.mxu0 0.0
        %615 = vmatprep.subr.mxu0 0.0
        %616 = vmatpush1.msra.mxu0 0.0
        %617 = vmatprep.subr.mxu0 0.0
        %618 = vmatpush1.msra.mxu0 0.0
        %619 = vmatprep.subr.mxu0 0.0
        %620 = vmatpush1.msra.mxu0 0.0
        %621 = vmatprep.subr.mxu0 0.0
        %622 = vmatpush1.msra.mxu0 0.0
        %623 = vmatprep.subr.mxu0 0.0
        %624 = vmatpush1.msra.mxu0 0.0
        %625 = vmatprep.subr.mxu0 0.0
        %626 = vmatpush1.msra.mxu0 0.0
        %627 = vmatprep.subr.mxu0 0.0
        %628 = vmatpush1.msra.mxu0 0.0
        %629 = vmatprep.mubr.f32.mxu0 0.0
        %630 = vmatmul.mubr.f32.gmra.mrb[0].mxu0 %v542
        %v631 = vpop.f32.mrb[0].mxu0
        %v632 = vadd.f32 %v538, %v631
        %v633 = vpop.f32.mrb[0].mxu0
        %634 = vmatprep.mubr.f32.mxu0 0.0
        %635 = vmatmul.mubr.f32.gmra.mrb[0].mxu0 %v545
        %v636 = vpop.f32.mrb[0].mxu0
        %v637 = vadd.f32 %v538, %v636
        %v638 = vpop.f32.mrb[0].mxu0
        %639 = vmatprep.mubr.f32.mxu0 0.0
        %640 = vmatmul.mubr.f32.gmra.mrb[0].mxu0 %v548
        %v641 = vpop.f32.mrb[0].mxu0
        %v642 = vadd.f32 %v538, %v641
        %v643 = vpop.f32.mrb[0].mxu0
        %644 = vmatprep.mubr.f32.mxu0 0.0
        %645 = vmatmul.mubr.f32.gmra.mrb[0].mxu0 %v551
        %v646 = vpop.f32.mrb[0].mxu0
        %v647 = vadd.f32 %v538, %v646
        %v648 = vpop.f32.mrb[0].mxu0
        %649 = vmatprep.mubr.f32.mxu0 0.0
        %650 = vmatmul.mubr.f32.gmra.mrb[0].mxu0 %v554
        %v651 = vpop.f32.mrb[0].mxu0
        %v652 = vadd.f32 %v538, %v651
        %v653 = vpop.f32.mrb[0].mxu0
        %654 = vmatprep.mubr.f32.mxu0 0.0
        %655 = vmatmul.mubr.f32.gmra.mrb[0].mxu0 %v557
        %v656 = vpop.f32.mrb[0].mxu0
        %v657 = vadd.f32 %v538, %v656
        %v658 = vpop.f32.mrb[0].mxu0
        %659 = vmatprep.mubr.f32.mxu0 0.0
        %660 = vmatmul.mubr.f32.gmra.mrb[0].mxu0 %v560
        %v661 = vpop.f32.mrb[0].mxu0
        %v662 = vadd.f32 %v538, %v661
        %v663 = vpop.f32.mrb[0].mxu0
        %664 = vmatprep.mubr.f32.mxu0 0.0
        %665 = vmatmul.mubr.f32.gmra.mrb[0].mxu0 %v563
        %v666 = vpop.f32.mrb[0].mxu0
        %v667 = vadd.f32 %v538, %v666
        %v668 = vpop.f32.mrb[0].mxu0
        %669 = vdwg.mxu0
        %v670 = vld [vmem:[%s6] sm:$0xff]
        %v671 = vld [vmem:[%s6 + $0x8] sm:$0xff]
        %v672 = vld [vmem:[%s6 + $0x10] sm:$0xff]
        %v673 = vld [vmem:[%s6 + $0x18] sm:$0xff]
        %v674 = vld [vmem:[%s6 + $0x20] sm:$0xff]
        %v675 = vld [vmem:[%s6 + $0x28] sm:$0xff]
        %v676 = vld [vmem:[%s6 + $0x30] sm:$0xff]
        %v677 = vld [vmem:[%s6 + $0x38] sm:$0xff]
        %v678 = vld [vmem:[%s7] sm:$0x1]
        %v680 = vlaneseq
        %v681 = vshrl.u32 %v680, 7
        %v682 = vsub.s32 0, %v681
        %v683 = vrot.slane %v678, %v682
        %v686 = vsel %vm540, %v509, 0
        %v689 = vsel %vm540, %v510, 0
        %v692 = vsel %vm540, %v511, 0
        %v695 = vsel %vm540, %v512, 0
        %v698 = vsel %vm540, %v513, 0
        %v701 = vsel %vm540, %v514, 0
        %v704 = vsel %vm540, %v515, 0
        %v707 = vsel %vm540, %v516, 0
        %v710 = vsel %vm540, %v517, 0
        %v713 = vsel %vm540, %v518, 0
        %v716 = vsel %vm540, %v519, 0
        %v719 = vsel %vm540, %v520, 0
        %v722 = vsel %vm540, %v521, 0
        %v725 = vsel %vm540, %v522, 0
        %v728 = vsel %vm540, %v523, 0
        %v731 = vsel %vm540, %v524, 0
        %733 = vmatprep.subr.mxu0 0.0
        %734 = vmatpush1.msra.mxu0 %v670
        %735 = vmatprep.subr.mxu0 0.0
        %736 = vmatpush1.msra.mxu0 %v671
        %737 = vmatprep.subr.mxu0 0.0
        %738 = vmatpush1.msra.mxu0 %v672
        %739 = vmatprep.subr.mxu0 0.0
        %740 = vmatpush1.msra.mxu0 %v673
        %741 = vmatprep.subr.mxu0 0.0
        %742 = vmatpush1.msra.mxu0 %v674
        %743 = vmatprep.subr.mxu0 0.0
        %744 = vmatpush1.msra.mxu0 %v675
        %745 = vmatprep.subr.mxu0 0.0
        %746 = vmatpush1.msra.mxu0 %v676
        %747 = vmatprep.subr.mxu0 0.0
        %748 = vmatpush1.msra.mxu0 %v677
        %749 = vmatprep.subr.mxu0 0.0
        %750 = vmatpush1.msra.mxu0 0.0
        %751 = vmatprep.subr.mxu0 0.0
        %752 = vmatpush1.msra.mxu0 0.0
        %753 = vmatprep.subr.mxu0 0.0
        %754 = vmatpush1.msra.mxu0 0.0
        %755 = vmatprep.subr.mxu0 0.0
        %756 = vmatpush1.msra.mxu0 0.0
        %757 = vmatprep.subr.mxu0 0.0
        %758 = vmatpush1.msra.mxu0 0.0
        %759 = vmatprep.subr.mxu0 0.0
        %760 = vmatpush1.msra.mxu0 0.0
        %761 = vmatprep.subr.mxu0 0.0
        %762 = vmatpush1.msra.mxu0 0.0
        %763 = vmatprep.subr.mxu0 0.0
        %764 = vmatpush1.msra.mxu0 0.0
        %765 = vmatprep.subr.mxu0 0.0
        %766 = vmatpush1.msra.mxu0 0.0
        %767 = vmatprep.subr.mxu0 0.0
        %768 = vmatpush1.msra.mxu0 0.0
        %769 = vmatprep.subr.mxu0 0.0
        %770 = vmatpush1.msra.mxu0 0.0
        %771 = vmatprep.subr.mxu0 0.0
        %772 = vmatpush1.msra.mxu0 0.0
        %773 = vmatprep.subr.mxu0 0.0
        %774 = vmatpush1.msra.mxu0 0.0
        %775 = vmatprep.subr.mxu0 0.0
        %776 = vmatpush1.msra.mxu0 0.0
        %777 = vmatprep.subr.mxu0 0.0
        %778 = vmatpush1.msra.mxu0 0.0
        %779 = vmatprep.subr.mxu0 0.0
        %780 = vmatpush1.msra.mxu0 0.0
        %781 = vmatprep.subr.mxu0 0.0
        %782 = vmatpush1.msra.mxu0 0.0
        %783 = vmatprep.subr.mxu0 0.0
        %784 = vmatpush1.msra.mxu0 0.0
        %785 = vmatprep.subr.mxu0 0.0
        %786 = vmatpush1.msra.mxu0 0.0
        %787 = vmatprep.subr.mxu0 0.0
        %788 = vmatpush1.msra.mxu0 0.0
        %789 = vmatprep.subr.mxu0 0.0
        %790 = vmatpush1.msra.mxu0 0.0
        %791 = vmatprep.subr.mxu0 0.0
        %792 = vmatpush1.msra.mxu0 0.0
        %793 = vmatprep.subr.mxu0 0.0
        %794 = vmatpush1.msra.mxu0 0.0
        %795 = vmatprep.subr.mxu0 0.0
        %796 = vmatpush1.msra.mxu0 0.0
        %797 = vmatprep.mubr.f32.mxu0 0.0
        %798 = vmatmul.mubr.f32.gmra.mrb[0].mxu0 %v686
        %v799 = vpop.f32.mrb[0].mxu0
        %v800 = vadd.f32 %v683, %v799
        %v801 = vpop.f32.mrb[0].mxu0
        %802 = vmatprep.mubr.f32.mxu0 0.0
        %803 = vmatmul.mubr.f32.gmra.mrb[0].mxu0 %v689
        %v804 = vpop.f32.mrb[0].mxu0
        %v805 = vadd.f32 %v683, %v804
        %v806 = vpop.f32.mrb[0].mxu0
        %807 = vmatprep.mubr.f32.mxu0 0.0
        %808 = vmatmul.mubr.f32.gmra.mrb[0].mxu0 %v692
        %v809 = vpop.f32.mrb[0].mxu0
        %v810 = vadd.f32 %v683, %v809
        %v811 = vpop.f32.mrb[0].mxu0
        %812 = vmatprep.mubr.f32.mxu0 0.0
        %813 = vmatmul.mubr.f32.gmra.mrb[0].mxu0 %v695
        %v814 = vpop.f32.mrb[0].mxu0
        %v815 = vadd.f32 %v683, %v814
        %v816 = vpop.f32.mrb[0].mxu0
        %817 = vmatprep.mubr.f32.mxu0 0.0
        %818 = vmatmul.mubr.f32.gmra.mrb[0].mxu0 %v698
        %v819 = vpop.f32.mrb[0].mxu0
        %v820 = vadd.f32 %v683, %v819
        %v821 = vpop.f32.mrb[0].mxu0
        %822 = vmatprep.mubr.f32.mxu0 0.0
        %823 = vmatmul.mubr.f32.gmra.mrb[0].mxu0 %v701
        %v824 = vpop.f32.mrb[0].mxu0
        %v825 = vadd.f32 %v683, %v824
        %v826 = vpop.f32.mrb[0].mxu0
        %827 = vmatprep.mubr.f32.mxu0 0.0
        %828 = vmatmul.mubr.f32.gmra.mrb[0].mxu0 %v704
        %v829 = vpop.f32.mrb[0].mxu0
        %v830 = vadd.f32 %v683, %v829
        %v831 = vpop.f32.mrb[0].mxu0
        %832 = vmatprep.mubr.f32.mxu0 0.0
        %833 = vmatmul.mubr.f32.gmra.mrb[0].mxu0 %v707
        %v834 = vpop.f32.mrb[0].mxu0
        %v835 = vadd.f32 %v683, %v834
        %v836 = vpop.f32.mrb[0].mxu0
        %837 = vmatprep.mubr.f32.mxu0 0.0
        %838 = vmatmul.mubr.f32.gmra.mrb[0].mxu0 %v710
        %v839 = vpop.f32.mrb[0].mxu0
        %v840 = vadd.f32 %v683, %v839
        %v841 = vpop.f32.mrb[0].mxu0
        %842 = vmatprep.mubr.f32.mxu0 0.0
        %843 = vmatmul.mubr.f32.gmra.mrb[0].mxu0 %v713
        %v844 = vpop.f32.mrb[0].mxu0
        %v845 = vadd.f32 %v683, %v844
        %v846 = vpop.f32.mrb[0].mxu0
        %847 = vmatprep.mubr.f32.mxu0 0.0
        %848 = vmatmul.mubr.f32.gmra.mrb[0].mxu0 %v716
        %v849 = vpop.f32.mrb[0].mxu0
        %v850 = vadd.f32 %v683, %v849
        %v851 = vpop.f32.mrb[0].mxu0
        %852 = vmatprep.mubr.f32.mxu0 0.0
        %853 = vmatmul.mubr.f32.gmra.mrb[0].mxu0 %v719
        %v854 = vpop.f32.mrb[0].mxu0
        %v855 = vadd.f32 %v683, %v854
        %v856 = vpop.f32.mrb[0].mxu0
        %857 = vmatprep.mubr.f32.mxu0 0.0
        %858 = vmatmul.mubr.f32.gmra.mrb[0].mxu0 %v722
        %v859 = vpop.f32.mrb[0].mxu0
        %v860 = vadd.f32 %v683, %v859
        %v861 = vpop.f32.mrb[0].mxu0
        %862 = vmatprep.mubr.f32.mxu0 0.0
        %863 = vmatmul.mubr.f32.gmra.mrb[0].mxu0 %v725
        %v864 = vpop.f32.mrb[0].mxu0
        %v865 = vadd.f32 %v683, %v864
        %v866 = vpop.f32.mrb[0].mxu0
        %867 = vmatprep.mubr.f32.mxu0 0.0
        %868 = vmatmul.mubr.f32.gmra.mrb[0].mxu0 %v728
        %v869 = vpop.f32.mrb[0].mxu0
        %v870 = vadd.f32 %v683, %v869
        %v871 = vpop.f32.mrb[0].mxu0
        %872 = vmatprep.mubr.f32.mxu0 0.0
        %873 = vmatmul.mubr.f32.gmra.mrb[0].mxu0 %v731
        %v874 = vpop.f32.mrb[0].mxu0
        %v875 = vadd.f32 %v683, %v874
        %v876 = vpop.f32.mrb[0].mxu0
        %877 = vdwg.mxu0
        %878 = vst [vmem:[#allocation2] sm:$0xff] %v800
        %879 = vst [vmem:[#allocation2 + $0x8] sm:$0xff] %v805
        %880 = vst [vmem:[#allocation2 + $0x10] sm:$0xff] %v810
        %881 = vst [vmem:[#allocation2 + $0x18] sm:$0xff] %v815
        %882 = vst [vmem:[#allocation2 + $0x20] sm:$0xff] %v820
        %883 = vst [vmem:[#allocation2 + $0x28] sm:$0xff] %v825
        %884 = vst [vmem:[#allocation2 + $0x30] sm:$0xff] %v830
        %885 = vst [vmem:[#allocation2 + $0x38] sm:$0xff] %v835
        %886 = vst [vmem:[#allocation2 + $0x40] sm:$0xff] %v840
        %887 = vst [vmem:[#allocation2 + $0x48] sm:$0xff] %v845
        %888 = vst [vmem:[#allocation2 + $0x50] sm:$0xff] %v850
        %889 = vst [vmem:[#allocation2 + $0x58] sm:$0xff] %v855
        %890 = vst [vmem:[#allocation2 + $0x60] sm:$0xff] %v860
        %891 = vst [vmem:[#allocation2 + $0x68] sm:$0xff] %v865
        %892 = vst [vmem:[#allocation2 + $0x70] sm:$0xff] %v870
        %893 = vst [vmem:[#allocation2 + $0x78] sm:$0xff] %v875
        %s894 = smul.u32 %s30, 64
        %s895 = sld [smem:[#allocation4]]
        %s896 = sld [smem:[#allocation6]]
        %v897 = vld [vmem:[#allocation2] sm:$0xff]
        %v898 = vld [vmem:[#allocation2 + $0x8] sm:$0xff]
        %v899 = vld [vmem:[#allocation2 + $0x10] sm:$0xff]
        %v900 = vld [vmem:[#allocation2 + $0x18] sm:$0xff]
        %v901 = vld [vmem:[#allocation2 + $0x20] sm:$0xff]
        %v902 = vld [vmem:[#allocation2 + $0x28] sm:$0xff]
        %v903 = vld [vmem:[#allocation2 + $0x30] sm:$0xff]
        %v904 = vld [vmem:[#allocation2 + $0x38] sm:$0xff]
        %v905 = vld [vmem:[#allocation2 + $0x40] sm:$0xff]
        %v906 = vld [vmem:[#allocation2 + $0x48] sm:$0xff]
        %v907 = vld [vmem:[#allocation2 + $0x50] sm:$0xff]
        %v908 = vld [vmem:[#allocation2 + $0x58] sm:$0xff]
        %v909 = vld [vmem:[#allocation2 + $0x60] sm:$0xff]
        %v910 = vld [vmem:[#allocation2 + $0x68] sm:$0xff]
        %v911 = vld [vmem:[#allocation2 + $0x70] sm:$0xff]
        %v912 = vld [vmem:[#allocation2 + $0x78] sm:$0xff]
        %v913 = vpack.c.bf16 %v637, %v632
        %v914 = vpack.c.bf16 %v647, %v642
        %v915 = vpack.c.bf16 %v657, %v652
        %v916 = vpack.c.bf16 %v667, %v662
        %v917 = vpack.c.bf16 %v898, %v897
        %v918 = vpack.c.bf16 %v900, %v899
        %v919 = vpack.c.bf16 %v902, %v901
        %v920 = vpack.c.bf16 %v904, %v903
        %v921 = vpack.c.bf16 %v906, %v905
        %v922 = vpack.c.bf16 %v908, %v907
        %v923 = vpack.c.bf16 %v910, %v909
        %v924 = vpack.c.bf16 %v912, %v911
        %vm925 = vcmask 130048
        %v927 = vsel %vm925, %v913, 0
        %v930 = vsel %vm925, %v914, 0
        %v933 = vsel %vm925, %v915, 0
        %v936 = vsel %vm925, %v916, 0
        %v939 = vsel %vm925, %v917, 0
        %v942 = vsel %vm925, %v918, 0
        %v945 = vsel %vm925, %v919, 0
        %v948 = vsel %vm925, %v920, 0
        %v951 = vsel %vm925, %v921, 0
        %v954 = vsel %vm925, %v922, 0
        %v957 = vsel %vm925, %v923, 0
        %v960 = vsel %vm925, %v924, 0
        %962 = vmatprep.subr.bf16.mxu0 0
        %963 = vmatpush1.bf16.xpose.msra.mxu0 %v939
        %964 = vmatprep.subr.bf16.mxu0 0
        %965 = vmatpush1.bf16.xpose.msra.mxu0 %v942
        %966 = vmatprep.subr.bf16.mxu0 0
        %967 = vmatpush1.bf16.xpose.msra.mxu0 %v945
        %968 = vmatprep.subr.bf16.mxu0 0
        %969 = vmatpush1.bf16.xpose.msra.mxu0 %v948
        %970 = vmatprep.subr.bf16.mxu0 0
        %971 = vmatpush1.bf16.xpose.msra.mxu0 %v951
        %972 = vmatprep.subr.bf16.mxu0 0
        %973 = vmatpush1.bf16.xpose.msra.mxu0 %v954
        %974 = vmatprep.subr.bf16.mxu0 0
        %975 = vmatpush1.bf16.xpose.msra.mxu0 %v957
        %976 = vmatprep.subr.bf16.mxu0 0
        %977 = vmatpush1.bf16.xpose.msra.mxu0 %v960
        %978 = vmatprep.subr.bf16.mxu0 0
        %979 = vmatpush1.bf16.xpose.msra.mxu0 0
        %980 = vmatprep.subr.bf16.mxu0 0
        %981 = vmatpush1.bf16.xpose.msra.mxu0 0
        %982 = vmatprep.subr.bf16.mxu0 0
        %983 = vmatpush1.bf16.xpose.msra.mxu0 0
        %984 = vmatprep.subr.bf16.mxu0 0
        %985 = vmatpush1.bf16.xpose.msra.mxu0 0
        %986 = vmatprep.subr.bf16.mxu0 0
        %987 = vmatpush1.bf16.xpose.msra.mxu0 0
        %988 = vmatprep.subr.bf16.mxu0 0
        %989 = vmatpush1.bf16.xpose.msra.mxu0 0
        %990 = vmatprep.subr.bf16.mxu0 0
        %991 = vmatpush1.bf16.xpose.msra.mxu0 0
        %992 = vmatprep.subr.bf16.mxu0 0
        %993 = vmatpush1.bf16.xpose.msra.mxu0 0
        %994 = vmatprep.mubr.bf16.mxu0 0
        %995 = vmatmul.mubr.bf16.gmra.mrb[0].mxu0 %v927
        %v996 = vpop.f32.mrb[0].mxu0
        %v997 = vadd.f32 0.0, %v996
        %v998 = vpop.f32.mrb[0].mxu0
        %v999 = vpop.f32.mrb[0].mxu0
        %v1000 = vadd.f32 0.0, %v999
        %v1001 = vpop.f32.mrb[0].mxu0
        %1002 = vmatprep.mubr.bf16.mxu0 0
        %1003 = vmatmul.mubr.bf16.gmra.mrb[0].mxu0 %v930
        %v1004 = vpop.f32.mrb[0].mxu0
        %v1005 = vadd.f32 0.0, %v1004
        %v1006 = vpop.f32.mrb[0].mxu0
        %v1007 = vpop.f32.mrb[0].mxu0
        %v1008 = vadd.f32 0.0, %v1007
        %v1009 = vpop.f32.mrb[0].mxu0
        %1010 = vmatprep.mubr.bf16.mxu0 0
        %1011 = vmatmul.mubr.bf16.gmra.mrb[0].mxu0 %v933
        %v1012 = vpop.f32.mrb[0].mxu0
        %v1013 = vadd.f32 0.0, %v1012
        %v1014 = vpop.f32.mrb[0].mxu0
        %v1015 = vpop.f32.mrb[0].mxu0
        %v1016 = vadd.f32 0.0, %v1015
        %v1017 = vpop.f32.mrb[0].mxu0
        %1018 = vmatprep.mubr.bf16.mxu0 0
        %1019 = vmatmul.mubr.bf16.gmra.mrb[0].mxu0 %v936
        %v1020 = vpop.f32.mrb[0].mxu0
        %v1021 = vadd.f32 0.0, %v1020
        %v1022 = vpop.f32.mrb[0].mxu0
        %v1023 = vpop.f32.mrb[0].mxu0
        %v1024 = vadd.f32 0.0, %v1023
        %v1025 = vpop.f32.mrb[0].mxu0
        %1026 = vdwg.mxu0
        %v1027 = vlaneseq
        %v1028 = vshrl.u32 %v1027, 7
        %v1029 = vadd.s32 %v1028, 8
        %v1030 = vadd.s32 %v1028, 16
        %v1031 = vadd.s32 %v1028, 24
        %v1032 = vadd.s32 %v1028, 32
        %v1033 = vadd.s32 %v1028, 40
        %v1034 = vadd.s32 %v1028, 48
        %v1035 = vadd.s32 %v1028, 56
        %v1036 = vstv %s894
        %v1037 = vadd.s32 %v1028, %v1036
        %v1038 = vadd.s32 %v1029, %v1036
        %v1039 = vadd.s32 %v1030, %v1036
        %v1040 = vadd.s32 %v1031, %v1036
        %v1041 = vadd.s32 %v1032, %v1036
        %v1042 = vadd.s32 %v1033, %v1036
        %v1043 = vadd.s32 %v1034, %v1036
        %v1044 = vadd.s32 %v1035, %v1036
        %v1045 = vlaneseq
        %v1046 = vand.u32 %v1045, 127
        %v1047 = vsub.s32 %v1037, %v1046
        %v1048 = vsub.s32 %v1038, %v1046
        %v1049 = vsub.s32 %v1039, %v1046
        %v1050 = vsub.s32 %v1040, %v1046
        %v1051 = vsub.s32 %v1041, %v1046
        %v1052 = vsub.s32 %v1042, %v1046
        %v1053 = vsub.s32 %v1043, %v1046
        %v1054 = vsub.s32 %v1044, %v1046
        %vm1055 = vcmp.lt.s32.totalorder %v1047, 0
        %v1056 = vsub.s32 0, %v1047
        %v1057 = vsel %vm1055, %v1056, %v1047
        %vm1058 = vcmp.lt.s32.totalorder %v1048, 0
        %v1059 = vsub.s32 0, %v1048
        %v1060 = vsel %vm1058, %v1059, %v1048
        %vm1061 = vcmp.lt.s32.totalorder %v1049, 0
        %v1062 = vsub.s32 0, %v1049
        %v1063 = vsel %vm1061, %v1062, %v1049
        %vm1064 = vcmp.lt.s32.totalorder %v1050, 0
        %v1065 = vsub.s32 0, %v1050
        %v1066 = vsel %vm1064, %v1065, %v1050
        %vm1067 = vcmp.lt.s32.totalorder %v1051, 0
        %v1068 = vsub.s32 0, %v1051
        %v1069 = vsel %vm1067, %v1068, %v1051
        %vm1070 = vcmp.lt.s32.totalorder %v1052, 0
        %v1071 = vsub.s32 0, %v1052
        %v1072 = vsel %vm1070, %v1071, %v1052
        %vm1073 = vcmp.lt.s32.totalorder %v1053, 0
        %v1074 = vsub.s32 0, %v1053
        %v1075 = vsel %vm1073, %v1074, %v1053
        %vm1076 = vcmp.lt.s32.totalorder %v1054, 0
        %v1077 = vsub.s32 0, %v1054
        %v1078 = vsel %vm1076, %v1077, %v1054
        %v1079 = vcvt.s32.f32 %v1057
        %v1080 = vcvt.s32.f32 %v1060
        %v1081 = vcvt.s32.f32 %v1063
        %v1082 = vcvt.s32.f32 %v1066
        %v1083 = vcvt.s32.f32 %v1069
        %v1084 = vcvt.s32.f32 %v1072
        %v1085 = vcvt.s32.f32 %v1075
        %v1086 = vcvt.s32.f32 %v1078
        %v1087 = vstv %s896
        %vm1088 = vcmp.gt.f32.partialorder %v1079, %v1087
        %vm1089 = vcmp.gt.f32.partialorder %v1080, %v1087
        %vm1090 = vcmp.gt.f32.partialorder %v1081, %v1087
        %vm1091 = vcmp.gt.f32.partialorder %v1082, %v1087
        %vm1092 = vcmp.gt.f32.partialorder %v1083, %v1087
        %vm1093 = vcmp.gt.f32.partialorder %v1084, %v1087
        %vm1094 = vcmp.gt.f32.partialorder %v1085, %v1087
        %vm1095 = vcmp.gt.f32.partialorder %v1086, %v1087
        %v1096 = vsel %vm1088, -1e+30, %v997
        %v1097 = vsel %vm1089, -1e+30, %v1000
        %v1098 = vsel %vm1090, -1e+30, %v1005
        %v1099 = vsel %vm1091, -1e+30, %v1008
        %v1100 = vsel %vm1092, -1e+30, %v1013
        %v1101 = vsel %vm1093, -1e+30, %v1016
        %v1102 = vsel %vm1094, -1e+30, %v1021
        %v1103 = vsel %vm1095, -1e+30, %v1024
        %s1104 = ssub.f32 %s895, 1.0
        %v1105 = vstv %s1104
        %v1106 = vrcp.pop %v1105
        %s1107 = vtos %v1106
        %v1108 = vstv %s1104
        %v1109 = vmul.f32 %v1096, %v1108
        %v1110 = vmul.f32 %v1097, %v1108
        %v1111 = vmul.f32 %v1098, %v1108
        %v1112 = vmul.f32 %v1099, %v1108
        %v1113 = vmul.f32 %v1100, %v1108
        %v1114 = vmul.f32 %v1101, %v1108
        %v1115 = vmul.f32 %v1102, %v1108
        %v1116 = vmul.f32 %v1103, %v1108
        %1117 = vmax.xlane.f32.xlu0 %v1109
        %v1118 = vpop.xlane.xlu0 %1117
        %1119 = vmax.xlane.f32.xlu0 %v1110
        %v1120 = vpop.xlane.xlu0 %1119
        %1121 = vmax.xlane.f32.xlu0 %v1111
        %v1122 = vpop.xlane.xlu0 %1121
        %1123 = vmax.xlane.f32.xlu0 %v1112
        %v1124 = vpop.xlane.xlu0 %1123
        %1125 = vmax.xlane.f32.xlu0 %v1113
        %v1126 = vpop.xlane.xlu0 %1125
        %1127 = vmax.xlane.f32.xlu0 %v1114
        %v1128 = vpop.xlane.xlu0 %1127
        %1129 = vmax.xlane.f32.xlu0 %v1115
        %v1130 = vpop.xlane.xlu0 %1129
        %1131 = vmax.xlane.f32.xlu0 %v1116
        %v1132 = vpop.xlane.xlu0 %1131
        %v1133 = vsub.f32 %v1118, 1.0
        %v1134 = vsub.f32 %v1120, 1.0
        %v1135 = vsub.f32 %v1122, 1.0
        %v1136 = vsub.f32 %v1124, 1.0
        %v1137 = vsub.f32 %v1126, 1.0
        %v1138 = vsub.f32 %v1128, 1.0
        %v1139 = vsub.f32 %v1130, 1.0
        %v1140 = vsub.f32 %v1132, 1.0
        %s1141 = smul.f32 %s1104, -4.8520303
        %v1142 = vstv %s1141
        %v1143 = vmul.f32 %v1142, 1.442695
        %v1144 = vpow.pop %v1143
        %s1145 = vtos %v1144
        %s1146 = ssub.f32 1.0, %s1145
        loop: start=0, step=1, limit=23
        $region77: #{custom_longformer_forward.5} parent=67 // loop_pre_header
          _
        $region78: #{custom_longformer_forward.5} parent=67 // loop_header
          %s1148 = sphi 0, %s1152
          %p1149 = scmp.ge.s32.totalorder %s1148, 23
          %v1153 = vphi %v1133, %v1285
          %v1154 = vphi %v1134, %v1286
          %v1155 = vphi %v1135, %v1287
          %v1156 = vphi %v1136, %v1288
          %v1157 = vphi %v1137, %v1289
          %v1158 = vphi %v1138, %v1290
          %v1159 = vphi %v1139, %v1291
          %v1160 = vphi %v1140, %v1292
          %s1161 = sphi %s1146, %s1170
          %v1162 = vphi %v1133, %v1172
          %v1163 = vphi %v1134, %v1173
          %v1164 = vphi %v1135, %v1174
          %v1165 = vphi %v1136, %v1175
          %v1166 = vphi %v1137, %v1176
          %v1167 = vphi %v1138, %v1177
          %v1168 = vphi %v1139, %v1178
          %v1169 = vphi %v1140, %v1179
        $region79: #{custom_longformer_forward.5} parent=67 // loop_header_branch
          %1151 = sbr.rel (%p1149) target = $region83
        $region80: #{custom_longformer_forward.5} parent=67 // loop_body
          %s1170 = smul.f32 %s1161, 0.5
          %v1171 = vstv %s1170
          %v1172 = vadd.f32 %v1153, %v1171
          %v1173 = vadd.f32 %v1154, %v1171
          %v1174 = vadd.f32 %v1155, %v1171
          %v1175 = vadd.f32 %v1156, %v1171
          %v1176 = vadd.f32 %v1157, %v1171
          %v1177 = vadd.f32 %v1158, %v1171
          %v1178 = vadd.f32 %v1159, %v1171
          %v1179 = vadd.f32 %v1160, %v1171
          %v1180 = vsub.f32 %v1109, %v1172
          %v1181 = vsub.f32 %v1110, %v1173
          %v1182 = vsub.f32 %v1111, %v1174
          %v1183 = vsub.f32 %v1112, %v1175
          %v1184 = vsub.f32 %v1113, %v1176
          %v1185 = vsub.f32 %v1114, %v1177
          %v1186 = vsub.f32 %v1115, %v1178
          %v1187 = vsub.f32 %v1116, %v1179
          %v1188 = vmax.f32 %v1180, 0.0
          %v1189 = vmax.f32 %v1181, 0.0
          %v1190 = vmax.f32 %v1182, 0.0
          %v1191 = vmax.f32 %v1183, 0.0
          %v1192 = vmax.f32 %v1184, 0.0
          %v1193 = vmax.f32 %v1185, 0.0
          %v1194 = vmax.f32 %v1186, 0.0
          %v1195 = vmax.f32 %v1187, 0.0
          %vm1196 = vcmp.gt.f32.partialorder %v1188, 0.0
          %vm1197 = vcmp.gt.f32.partialorder %v1189, 0.0
          %vm1198 = vcmp.gt.f32.partialorder %v1190, 0.0
          %vm1199 = vcmp.gt.f32.partialorder %v1191, 0.0
          %vm1200 = vcmp.gt.f32.partialorder %v1192, 0.0
          %vm1201 = vcmp.gt.f32.partialorder %v1193, 0.0
          %vm1202 = vcmp.gt.f32.partialorder %v1194, 0.0
          %vm1203 = vcmp.gt.f32.partialorder %v1195, 0.0
          %v1204 = vsel %vm1196, %v1188, 1.0
          %v1205 = vsel %vm1197, %v1189, 1.0
          %v1206 = vsel %vm1198, %v1190, 1.0
          %v1207 = vsel %vm1199, %v1191, 1.0
          %v1208 = vsel %vm1200, %v1192, 1.0
          %v1209 = vsel %vm1201, %v1193, 1.0
          %v1210 = vsel %vm1202, %v1194, 1.0
          %v1211 = vsel %vm1203, %v1195, 1.0
          %v1212 = vlog2.pop %v1204
          %v1213 = vmul.f32 %v1212, 0.6931472
          %v1214 = vlog2.pop %v1205
          %v1215 = vmul.f32 %v1214, 0.6931472
          %v1216 = vlog2.pop %v1206
          %v1217 = vmul.f32 %v1216, 0.6931472
          %v1218 = vlog2.pop %v1207
          %v1219 = vmul.f32 %v1218, 0.6931472
          %v1220 = vlog2.pop %v1208
          %v1221 = vmul.f32 %v1220, 0.6931472
          %v1222 = vlog2.pop %v1209
          %v1223 = vmul.f32 %v1222, 0.6931472
          %v1224 = vlog2.pop %v1210
          %v1225 = vmul.f32 %v1224, 0.6931472
          %v1226 = vlog2.pop %v1211
          %v1227 = vmul.f32 %v1226, 0.6931472
          %v1228 = vstv %s1107
          %v1229 = vmul.f32 %v1228, %v1213
          %v1230 = vmul.f32 %v1228, %v1215
          %v1231 = vmul.f32 %v1228, %v1217
          %v1232 = vmul.f32 %v1228, %v1219
          %v1233 = vmul.f32 %v1228, %v1221
          %v1234 = vmul.f32 %v1228, %v1223
          %v1235 = vmul.f32 %v1228, %v1225
          %v1236 = vmul.f32 %v1228, %v1227
          %v1237 = vmul.f32 %v1229, 1.442695
          %v1238 = vpow.pop %v1237
          %v1239 = vmul.f32 %v1230, 1.442695
          %v1240 = vpow.pop %v1239
          %v1241 = vmul.f32 %v1231, 1.442695
          %v1242 = vpow.pop %v1241
          %v1243 = vmul.f32 %v1232, 1.442695
          %v1244 = vpow.pop %v1243
          %v1245 = vmul.f32 %v1233, 1.442695
          %v1246 = vpow.pop %v1245
          %v1247 = vmul.f32 %v1234, 1.442695
          %v1248 = vpow.pop %v1247
          %v1249 = vmul.f32 %v1235, 1.442695
          %v1250 = vpow.pop %v1249
          %v1251 = vmul.f32 %v1236, 1.442695
          %v1252 = vpow.pop %v1251
          %v1253 = vsel %vm1196, %v1238, 0.0
          %v1254 = vsel %vm1197, %v1240, 0.0
          %v1255 = vsel %vm1198, %v1242, 0.0
          %v1256 = vsel %vm1199, %v1244, 0.0
          %v1257 = vsel %vm1200, %v1246, 0.0
          %v1258 = vsel %vm1201, %v1248, 0.0
          %v1259 = vsel %vm1202, %v1250, 0.0
          %v1260 = vsel %vm1203, %v1252, 0.0
          %1261 = vadd.xlane.f32.xlu0 %v1253
          %v1262 = vpop.xlane.xlu0 %1261
          %1263 = vadd.xlane.f32.xlu0 %v1254
          %v1264 = vpop.xlane.xlu0 %1263
          %1265 = vadd.xlane.f32.xlu0 %v1255
          %v1266 = vpop.xlane.xlu0 %1265
          %1267 = vadd.xlane.f32.xlu0 %v1256
          %v1268 = vpop.xlane.xlu0 %1267
          %1269 = vadd.xlane.f32.xlu0 %v1257
          %v1270 = vpop.xlane.xlu0 %1269
          %1271 = vadd.xlane.f32.xlu0 %v1258
          %v1272 = vpop.xlane.xlu0 %1271
          %1273 = vadd.xlane.f32.xlu0 %v1259
          %v1274 = vpop.xlane.xlu0 %1273
          %1275 = vadd.xlane.f32.xlu0 %v1260
          %v1276 = vpop.xlane.xlu0 %1275
          %vm1277 = vcmp.ge.f32.partialorder %v1262, 1.0
          %vm1278 = vcmp.ge.f32.partialorder %v1264, 1.0
          %vm1279 = vcmp.ge.f32.partialorder %v1266, 1.0
          %vm1280 = vcmp.ge.f32.partialorder %v1268, 1.0
          %vm1281 = vcmp.ge.f32.partialorder %v1270, 1.0
          %vm1282 = vcmp.ge.f32.partialorder %v1272, 1.0
          %vm1283 = vcmp.ge.f32.partialorder %v1274, 1.0
          %vm1284 = vcmp.ge.f32.partialorder %v1276, 1.0
          %v1285 = vsel %vm1277, %v1172, %v1153
          %v1286 = vsel %vm1278, %v1173, %v1154
          %v1287 = vsel %vm1279, %v1174, %v1155
          %v1288 = vsel %vm1280, %v1175, %v1156
          %v1289 = vsel %vm1281, %v1176, %v1157
          %v1290 = vsel %vm1282, %v1177, %v1158
          %v1291 = vsel %vm1283, %v1178, %v1159
          %v1292 = vsel %vm1284, %v1179, %v1160
        $region81: #{custom_longformer_forward.5} parent=67 // loop_footer
          %s1152 = sadd.s32 1, %s1148
        $region82: #{custom_longformer_forward.5} parent=67 // loop_footer_branch
          %1147 = sbr.rel target = $region78
        $region83: #{custom_longformer_forward.5} parent=67 // loop_exit
          _
        %v1293 = vsub.f32 %v1109, %v1162
        %v1294 = vsub.f32 %v1110, %v1163
        %v1295 = vsub.f32 %v1111, %v1164
        %v1296 = vsub.f32 %v1112, %v1165
        %v1297 = vsub.f32 %v1113, %v1166
        %v1298 = vsub.f32 %v1114, %v1167
        %v1299 = vsub.f32 %v1115, %v1168
        %v1300 = vsub.f32 %v1116, %v1169
        %v1301 = vmax.f32 %v1293, 0.0
        %v1302 = vmax.f32 %v1294, 0.0
        %v1303 = vmax.f32 %v1295, 0.0
        %v1304 = vmax.f32 %v1296, 0.0
        %v1305 = vmax.f32 %v1297, 0.0
        %v1306 = vmax.f32 %v1298, 0.0
        %v1307 = vmax.f32 %v1299, 0.0
        %v1308 = vmax.f32 %v1300, 0.0
        %vm1309 = vcmp.gt.f32.partialorder %v1301, 0.0
        %vm1310 = vcmp.gt.f32.partialorder %v1302, 0.0
        %vm1311 = vcmp.gt.f32.partialorder %v1303, 0.0
        %vm1312 = vcmp.gt.f32.partialorder %v1304, 0.0
        %vm1313 = vcmp.gt.f32.partialorder %v1305, 0.0
        %vm1314 = vcmp.gt.f32.partialorder %v1306, 0.0
        %vm1315 = vcmp.gt.f32.partialorder %v1307, 0.0
        %vm1316 = vcmp.gt.f32.partialorder %v1308, 0.0
        %v1317 = vsel %vm1309, %v1301, 1.0
        %v1318 = vsel %vm1310, %v1302, 1.0
        %v1319 = vsel %vm1311, %v1303, 1.0
        %v1320 = vsel %vm1312, %v1304, 1.0
        %v1321 = vsel %vm1313, %v1305, 1.0
        %v1322 = vsel %vm1314, %v1306, 1.0
        %v1323 = vsel %vm1315, %v1307, 1.0
        %v1324 = vsel %vm1316, %v1308, 1.0
        %v1325 = vlog2.pop %v1317
        %v1326 = vmul.f32 %v1325, 0.6931472
        %v1327 = vlog2.pop %v1318
        %v1328 = vmul.f32 %v1327, 0.6931472
        %v1329 = vlog2.pop %v1319
        %v1330 = vmul.f32 %v1329, 0.6931472
        %v1331 = vlog2.pop %v1320
        %v1332 = vmul.f32 %v1331, 0.6931472
        %v1333 = vlog2.pop %v1321
        %v1334 = vmul.f32 %v1333, 0.6931472
        %v1335 = vlog2.pop %v1322
        %v1336 = vmul.f32 %v1335, 0.6931472
        %v1337 = vlog2.pop %v1323
        %v1338 = vmul.f32 %v1337, 0.6931472
        %v1339 = vlog2.pop %v1324
        %v1340 = vmul.f32 %v1339, 0.6931472
        %v1341 = vstv %s1107
        %v1342 = vmul.f32 %v1341, %v1326
        %v1343 = vmul.f32 %v1341, %v1328
        %v1344 = vmul.f32 %v1341, %v1330
        %v1345 = vmul.f32 %v1341, %v1332
        %v1346 = vmul.f32 %v1341, %v1334
        %v1347 = vmul.f32 %v1341, %v1336
        %v1348 = vmul.f32 %v1341, %v1338
        %v1349 = vmul.f32 %v1341, %v1340
        %v1350 = vmul.f32 %v1342, 1.442695
        %v1351 = vpow.pop %v1350
        %v1352 = vmul.f32 %v1343, 1.442695
        %v1353 = vpow.pop %v1352
        %v1354 = vmul.f32 %v1344, 1.442695
        %v1355 = vpow.pop %v1354
        %v1356 = vmul.f32 %v1345, 1.442695
        %v1357 = vpow.pop %v1356
        %v1358 = vmul.f32 %v1346, 1.442695
        %v1359 = vpow.pop %v1358
        %v1360 = vmul.f32 %v1347, 1.442695
        %v1361 = vpow.pop %v1360
        %v1362 = vmul.f32 %v1348, 1.442695
        %v1363 = vpow.pop %v1362
        %v1364 = vmul.f32 %v1349, 1.442695
        %v1365 = vpow.pop %v1364
        %v1366 = vsel %vm1309, %v1351, 0.0
        %v1367 = vsel %vm1310, %v1353, 0.0
        %v1368 = vsel %vm1311, %v1355, 0.0
        %v1369 = vsel %vm1312, %v1357, 0.0
        %v1370 = vsel %vm1313, %v1359, 0.0
        %v1371 = vsel %vm1314, %v1361, 0.0
        %v1372 = vsel %vm1315, %v1363, 0.0
        %v1373 = vsel %vm1316, %v1365, 0.0
        %1374 = vadd.xlane.f32.xlu0 %v1366
        %v1375 = vpop.xlane.xlu0 %1374
        %1376 = vadd.xlane.f32.xlu0 %v1367
        %v1377 = vpop.xlane.xlu0 %1376
        %1378 = vadd.xlane.f32.xlu0 %v1368
        %v1379 = vpop.xlane.xlu0 %1378
        %1380 = vadd.xlane.f32.xlu0 %v1369
        %v1381 = vpop.xlane.xlu0 %1380
        %1382 = vadd.xlane.f32.xlu0 %v1370
        %v1383 = vpop.xlane.xlu0 %1382
        %1384 = vadd.xlane.f32.xlu0 %v1371
        %v1385 = vpop.xlane.xlu0 %1384
        %1386 = vadd.xlane.f32.xlu0 %v1372
        %v1387 = vpop.xlane.xlu0 %1386
        %1388 = vadd.xlane.f32.xlu0 %v1373
        %v1389 = vpop.xlane.xlu0 %1388
        %v1390 = vrcp.pop %v1375
        %v1391 = vrcp.pop %v1377
        %v1392 = vrcp.pop %v1379
        %v1393 = vrcp.pop %v1381
        %v1394 = vrcp.pop %v1383
        %v1395 = vrcp.pop %v1385
        %v1396 = vrcp.pop %v1387
        %v1397 = vrcp.pop %v1389
        %v1398 = vmul.f32 %v1366, %v1390
        %v1399 = vmul.f32 %v1367, %v1391
        %v1400 = vmul.f32 %v1368, %v1392
        %v1401 = vmul.f32 %v1369, %v1393
        %v1402 = vmul.f32 %v1370, %v1394
        %v1403 = vmul.f32 %v1371, %v1395
        %v1404 = vmul.f32 %v1372, %v1396
        %v1405 = vmul.f32 %v1373, %v1397
        %v1406 = vpack.c.bf16 %v1399, %v1398
        %v1407 = vpack.c.bf16 %v1401, %v1400
        %v1408 = vpack.c.bf16 %v1403, %v1402
        %v1409 = vpack.c.bf16 %v1405, %v1404
        %1418 = vrot.lane.b32.xlu0 %v917, 64
        %v1419 = vpop.permute.xlu0 %1418
        %1420 = vrot.lane.b32.xlu0 %v918, 64
        %v1421 = vpop.permute.xlu0 %1420
        %1422 = vrot.lane.b32.xlu0 %v919, 64
        %v1423 = vpop.permute.xlu0 %1422
        %1424 = vrot.lane.b32.xlu0 %v920, 64
        %v1425 = vpop.permute.xlu0 %1424
        %1426 = vrot.lane.b32.xlu0 %v921, 64
        %v1427 = vpop.permute.xlu0 %1426
        %1428 = vrot.lane.b32.xlu0 %v922, 64
        %v1429 = vpop.permute.xlu0 %1428
        %1430 = vrot.lane.b32.xlu0 %v923, 64
        %v1431 = vpop.permute.xlu0 %1430
        %1432 = vrot.lane.b32.xlu0 %v924, 64
        %v1433 = vpop.permute.xlu0 %1432
        %1442 = vmatprep.subr.bf16.mxu0 0
        %1443 = vmatpush1.bf16.msra.mxu0 %v1419
        %1444 = vmatprep.subr.bf16.mxu0 0
        %1445 = vmatpush1.bf16.msra.mxu0 %v1421
        %1446 = vmatprep.subr.bf16.mxu0 0
        %1447 = vmatpush1.bf16.msra.mxu0 %v1423
        %1448 = vmatprep.subr.bf16.mxu0 0
        %1449 = vmatpush1.bf16.msra.mxu0 %v1425
        %1450 = vmatprep.subr.bf16.mxu0 0
        %1451 = vmatpush1.bf16.msra.mxu0 %v1427
        %1452 = vmatprep.subr.bf16.mxu0 0
        %1453 = vmatpush1.bf16.msra.mxu0 %v1429
        %1454 = vmatprep.subr.bf16.mxu0 0
        %1455 = vmatpush1.bf16.msra.mxu0 %v1431
        %1456 = vmatprep.subr.bf16.mxu0 0
        %1457 = vmatpush1.bf16.msra.mxu0 %v1433
        %1458 = vmatprep.subr.bf16.mxu0 0
        %1459 = vmatpush1.bf16.msra.mxu0 0
        %1460 = vmatprep.subr.bf16.mxu0 0
        %1461 = vmatpush1.bf16.msra.mxu0 0
        %1462 = vmatprep.subr.bf16.mxu0 0
        %1463 = vmatpush1.bf16.msra.mxu0 0
        %1464 = vmatprep.subr.bf16.mxu0 0
        %1465 = vmatpush1.bf16.msra.mxu0 0
        %1466 = vmatprep.subr.bf16.mxu0 0
        %1467 = vmatpush1.bf16.msra.mxu0 0
        %1468 = vmatprep.subr.bf16.mxu0 0
        %1469 = vmatpush1.bf16.msra.mxu0 0
        %1470 = vmatprep.subr.bf16.mxu0 0
        %1471 = vmatpush1.bf16.msra.mxu0 0
        %1472 = vmatprep.subr.bf16.mxu0 0
        %1473 = vmatpush1.bf16.msra.mxu0 0
        %1474 = vmatprep.mubr.bf16.mxu0 0
        %1475 = vmatmul.mubr.bf16.gmra.mrb[0].mxu0 %v1406
        %v1476 = vpop.f32.mrb[0].mxu0
        %v1477 = vadd.f32 0.0, %v1476
        %v1478 = vpop.f32.mrb[0].mxu0
        %v1479 = vpop.f32.mrb[0].mxu0
        %v1480 = vadd.f32 0.0, %v1479
        %v1481 = vpop.f32.mrb[0].mxu0
        %1482 = vmatprep.mubr.bf16.mxu0 0
        %1483 = vmatmul.mubr.bf16.gmra.mrb[0].mxu0 %v1407
        %v1484 = vpop.f32.mrb[0].mxu0
        %v1485 = vadd.f32 0.0, %v1484
        %v1486 = vpop.f32.mrb[0].mxu0
        %v1487 = vpop.f32.mrb[0].mxu0
        %v1488 = vadd.f32 0.0, %v1487
        %v1489 = vpop.f32.mrb[0].mxu0
        %1490 = vmatprep.mubr.bf16.mxu0 0
        %1491 = vmatmul.mubr.bf16.gmra.mrb[0].mxu0 %v1408
        %v1492 = vpop.f32.mrb[0].mxu0
        %v1493 = vadd.f32 0.0, %v1492
        %v1494 = vpop.f32.mrb[0].mxu0
        %v1495 = vpop.f32.mrb[0].mxu0
        %v1496 = vadd.f32 0.0, %v1495
        %v1497 = vpop.f32.mrb[0].mxu0
        %1498 = vmatprep.mubr.bf16.mxu0 0
        %1499 = vmatmul.mubr.bf16.gmra.mrb[0].mxu0 %v1409
        %v1500 = vpop.f32.mrb[0].mxu0
        %v1501 = vadd.f32 0.0, %v1500
        %v1502 = vpop.f32.mrb[0].mxu0
        %v1503 = vpop.f32.mrb[0].mxu0
        %v1504 = vadd.f32 0.0, %v1503
        %v1505 = vpop.f32.mrb[0].mxu0
        %1506 = vdwg.mxu0
        %1507 = vst.msk [vmem:[#allocation3] sm:$0xff] %vm925, %v1477
        %1508 = vst.msk [vmem:[#allocation3 + $0x8] sm:$0xff] %vm925, %v1480
        %1509 = vst.msk [vmem:[#allocation3 + $0x10] sm:$0xff] %vm925, %v1485
        %1510 = vst.msk [vmem:[#allocation3 + $0x18] sm:$0xff] %vm925, %v1488
        %1511 = vst.msk [vmem:[#allocation3 + $0x20] sm:$0xff] %vm925, %v1493
        %1512 = vst.msk [vmem:[#allocation3 + $0x28] sm:$0xff] %vm925, %v1496
        %1513 = vst.msk [vmem:[#allocation3 + $0x30] sm:$0xff] %vm925, %v1501
        %1514 = vst.msk [vmem:[#allocation3 + $0x38] sm:$0xff] %vm925, %v1504
        %s1515 = sld [smem:[#allocation4 + $0x1]]
        %s1516 = sld [smem:[#allocation6 + $0x1]]
        %v1517 = vld [vmem:[#allocation2] sm:$0xff]
        %v1518 = vld [vmem:[#allocation2 + $0x8] sm:$0xff]
        %v1519 = vld [vmem:[#allocation2 + $0x10] sm:$0xff]
        %v1520 = vld [vmem:[#allocation2 + $0x18] sm:$0xff]
        %v1521 = vld [vmem:[#allocation2 + $0x20] sm:$0xff]
        %v1522 = vld [vmem:[#allocation2 + $0x28] sm:$0xff]
        %v1523 = vld [vmem:[#allocation2 + $0x30] sm:$0xff]
        %v1524 = vld [vmem:[#allocation2 + $0x38] sm:$0xff]
        %v1525 = vld [vmem:[#allocation2 + $0x40] sm:$0xff]
        %v1526 = vld [vmem:[#allocation2 + $0x48] sm:$0xff]
        %v1527 = vld [vmem:[#allocation2 + $0x50] sm:$0xff]
        %v1528 = vld [vmem:[#allocation2 + $0x58] sm:$0xff]
        %v1529 = vld [vmem:[#allocation2 + $0x60] sm:$0xff]
        %v1530 = vld [vmem:[#allocation2 + $0x68] sm:$0xff]
        %v1531 = vld [vmem:[#allocation2 + $0x70] sm:$0xff]
        %v1532 = vld [vmem:[#allocation2 + $0x78] sm:$0xff]
        %v1533 = vpack.c.bf16 %v1518, %v1517
        %v1534 = vpack.c.bf16 %v1520, %v1519
        %v1535 = vpack.c.bf16 %v1522, %v1521
        %v1536 = vpack.c.bf16 %v1524, %v1523
        %v1537 = vpack.c.bf16 %v1526, %v1525
        %v1538 = vpack.c.bf16 %v1528, %v1527
        %v1539 = vpack.c.bf16 %v1530, %v1529
        %v1540 = vpack.c.bf16 %v1532, %v1531
        %1545 = vrot.lane.b32.xlu0 %v913, 112
        %v1546 = vpop.permute.xlu0 %1545
        %1547 = vrot.lane.b32.xlu0 %v914, 112
        %v1548 = vpop.permute.xlu0 %1547
        %1549 = vrot.lane.b32.xlu0 %v915, 112
        %v1550 = vpop.permute.xlu0 %1549
        %1551 = vrot.lane.b32.xlu0 %v916, 112
        %v1552 = vpop.permute.xlu0 %1551
        %1561 = vrot.lane.b32.xlu0 %v1533, 112
        %v1562 = vpop.permute.xlu0 %1561
        %1563 = vrot.lane.b32.xlu0 %v1534, 112
        %v1564 = vpop.permute.xlu0 %1563
        %1565 = vrot.lane.b32.xlu0 %v1535, 112
        %v1566 = vpop.permute.xlu0 %1565
        %1567 = vrot.lane.b32.xlu0 %v1536, 112
        %v1568 = vpop.permute.xlu0 %1567
        %1569 = vrot.lane.b32.xlu0 %v1537, 112
        %v1570 = vpop.permute.xlu0 %1569
        %1571 = vrot.lane.b32.xlu0 %v1538, 112
        %v1572 = vpop.permute.xlu0 %1571
        %1573 = vrot.lane.b32.xlu0 %v1539, 112
        %v1574 = vpop.permute.xlu0 %1573
        %1575 = vrot.lane.b32.xlu0 %v1540, 112
        %v1576 = vpop.permute.xlu0 %1575
        %v1578 = vsel %vm925, %v1546, 0
        %v1581 = vsel %vm925, %v1548, 0
        %v1584 = vsel %vm925, %v1550, 0
        %v1587 = vsel %vm925, %v1552, 0
        %v1590 = vsel %vm925, %v1562, 0
        %v1593 = vsel %vm925, %v1564, 0
        %v1596 = vsel %vm925, %v1566, 0
        %v1599 = vsel %vm925, %v1568, 0
        %v1602 = vsel %vm925, %v1570, 0
        %v1605 = vsel %vm925, %v1572, 0
        %v1608 = vsel %vm925, %v1574, 0
        %v1611 = vsel %vm925, %v1576, 0
        %1613 = vmatprep.subr.bf16.mxu0 0
        %1614 = vmatpush1.bf16.xpose.msra.mxu0 %v1590
        %1615 = vmatprep.subr.bf16.mxu0 0
        %1616 = vmatpush1.bf16.xpose.msra.mxu0 %v1593
        %1617 = vmatprep.subr.bf16.mxu0 0
        %1618 = vmatpush1.bf16.xpose.msra.mxu0 %v1596
        %1619 = vmatprep.subr.bf16.mxu0 0
        %1620 = vmatpush1.bf16.xpose.msra.mxu0 %v1599
        %1621 = vmatprep.subr.bf16.mxu0 0
        %1622 = vmatpush1.bf16.xpose.msra.mxu0 %v1602
        %1623 = vmatprep.subr.bf16.mxu0 0
        %1624 = vmatpush1.bf16.xpose.msra.mxu0 %v1605
        %1625 = vmatprep.subr.bf16.mxu0 0
        %1626 = vmatpush1.bf16.xpose.msra.mxu0 %v1608
        %1627 = vmatprep.subr.bf16.mxu0 0
        %1628 = vmatpush1.bf16.xpose.msra.mxu0 %v1611
        %1629 = vmatprep.subr.bf16.mxu0 0
        %1630 = vmatpush1.bf16.xpose.msra.mxu0 0
        %1631 = vmatprep.subr.bf16.mxu0 0
        %1632 = vmatpush1.bf16.xpose.msra.mxu0 0
        %1633 = vmatprep.subr.bf16.mxu0 0
        %1634 = vmatpush1.bf16.xpose.msra.mxu0 0
        %1635 = vmatprep.subr.bf16.mxu0 0
        %1636 = vmatpush1.bf16.xpose.msra.mxu0 0
        %1637 = vmatprep.subr.bf16.mxu0 0
        %1638 = vmatpush1.bf16.xpose.msra.mxu0 0
        %1639 = vmatprep.subr.bf16.mxu0 0
        %1640 = vmatpush1.bf16.xpose.msra.mxu0 0
        %1641 = vmatprep.subr.bf16.mxu0 0
        %1642 = vmatpush1.bf16.xpose.msra.mxu0 0
        %1643 = vmatprep.subr.bf16.mxu0 0
        %1644 = vmatpush1.bf16.xpose.msra.mxu0 0
        %1645 = vmatprep.mubr.bf16.mxu0 0
        %1646 = vmatmul.mubr.bf16.gmra.mrb[0].mxu0 %v1578
        %v1647 = vpop.f32.mrb[0].mxu0
        %v1648 = vadd.f32 0.0, %v1647
        %v1649 = vpop.f32.mrb[0].mxu0
        %v1650 = vpop.f32.mrb[0].mxu0
        %v1651 = vadd.f32 0.0, %v1650
        %v1652 = vpop.f32.mrb[0].mxu0
        %1653 = vmatprep.mubr.bf16.mxu0 0
        %1654 = vmatmul.mubr.bf16.gmra.mrb[0].mxu0 %v1581
        %v1655 = vpop.f32.mrb[0].mxu0
        %v1656 = vadd.f32 0.0, %v1655
        %v1657 = vpop.f32.mrb[0].mxu0
        %v1658 = vpop.f32.mrb[0].mxu0
        %v1659 = vadd.f32 0.0, %v1658
        %v1660 = vpop.f32.mrb[0].mxu0
        %1661 = vmatprep.mubr.bf16.mxu0 0
        %1662 = vmatmul.mubr.bf16.gmra.mrb[0].mxu0 %v1584
        %v1663 = vpop.f32.mrb[0].mxu0
        %v1664 = vadd.f32 0.0, %v1663
        %v1665 = vpop.f32.mrb[0].mxu0
        %v1666 = vpop.f32.mrb[0].mxu0
        %v1667 = vadd.f32 0.0, %v1666
        %v1668 = vpop.f32.mrb[0].mxu0
        %1669 = vmatprep.mubr.bf16.mxu0 0
        %1670 = vmatmul.mubr.bf16.gmra.mrb[0].mxu0 %v1587
        %v1671 = vpop.f32.mrb[0].mxu0
        %v1672 = vadd.f32 0.0, %v1671
        %v1673 = vpop.f32.mrb[0].mxu0
        %v1674 = vpop.f32.mrb[0].mxu0
        %v1675 = vadd.f32 0.0, %v1674
        %v1676 = vpop.f32.mrb[0].mxu0
        %1677 = vdwg.mxu0
        %v1678 = vstv %s1516
        %vm1679 = vcmp.gt.f32.partialorder %v1079, %v1678
        %vm1680 = vcmp.gt.f32.partialorder %v1080, %v1678
        %vm1681 = vcmp.gt.f32.partialorder %v1081, %v1678
        %vm1682 = vcmp.gt.f32.partialorder %v1082, %v1678
        %vm1683 = vcmp.gt.f32.partialorder %v1083, %v1678
        %vm1684 = vcmp.gt.f32.partialorder %v1084, %v1678
        %vm1685 = vcmp.gt.f32.partialorder %v1085, %v1678
        %vm1686 = vcmp.gt.f32.partialorder %v1086, %v1678
        %v1687 = vsel %vm1679, -1e+30, %v1648
        %v1688 = vsel %vm1680, -1e+30, %v1651
        %v1689 = vsel %vm1681, -1e+30, %v1656
        %v1690 = vsel %vm1682, -1e+30, %v1659
        %v1691 = vsel %vm1683, -1e+30, %v1664
        %v1692 = vsel %vm1684, -1e+30, %v1667
        %v1693 = vsel %vm1685, -1e+30, %v1672
        %v1694 = vsel %vm1686, -1e+30, %v1675
        %s1695 = ssub.f32 %s1515, 1.0
        %v1696 = vstv %s1695
        %v1697 = vrcp.pop %v1696
        %s1698 = vtos %v1697
        %v1699 = vstv %s1695
        %v1700 = vmul.f32 %v1687, %v1699
        %v1701 = vmul.f32 %v1688, %v1699
        %v1702 = vmul.f32 %v1689, %v1699
        %v1703 = vmul.f32 %v1690, %v1699
        %v1704 = vmul.f32 %v1691, %v1699
        %v1705 = vmul.f32 %v1692, %v1699
        %v1706 = vmul.f32 %v1693, %v1699
        %v1707 = vmul.f32 %v1694, %v1699
        %1708 = vmax.xlane.f32.xlu0 %v1700
        %v1709 = vpop.xlane.xlu0 %1708
        %1710 = vmax.xlane.f32.xlu0 %v1701
        %v1711 = vpop.xlane.xlu0 %1710
        %1712 = vmax.xlane.f32.xlu0 %v1702
        %v1713 = vpop.xlane.xlu0 %1712
        %1714 = vmax.xlane.f32.xlu0 %v1703
        %v1715 = vpop.xlane.xlu0 %1714
        %1716 = vmax.xlane.f32.xlu0 %v1704
        %v1717 = vpop.xlane.xlu0 %1716
        %1718 = vmax.xlane.f32.xlu0 %v1705
        %v1719 = vpop.xlane.xlu0 %1718
        %1720 = vmax.xlane.f32.xlu0 %v1706
        %v1721 = vpop.xlane.xlu0 %1720
        %1722 = vmax.xlane.f32.xlu0 %v1707
        %v1723 = vpop.xlane.xlu0 %1722
        %v1724 = vsub.f32 %v1709, 1.0
        %v1725 = vsub.f32 %v1711, 1.0
        %v1726 = vsub.f32 %v1713, 1.0
        %v1727 = vsub.f32 %v1715, 1.0
        %v1728 = vsub.f32 %v1717, 1.0
        %v1729 = vsub.f32 %v1719, 1.0
        %v1730 = vsub.f32 %v1721, 1.0
        %v1731 = vsub.f32 %v1723, 1.0
        %s1732 = smul.f32 %s1695, -4.8520303
        %v1733 = vstv %s1732
        %v1734 = vmul.f32 %v1733, 1.442695
        %v1735 = vpow.pop %v1734
        %s1736 = vtos %v1735
        %s1737 = ssub.f32 1.0, %s1736
        loop: start=0, step=1, limit=23
        $region84: #{custom_longformer_forward.5} parent=67 // loop_pre_header
          _
        $region85: #{custom_longformer_forward.5} parent=67 // loop_header
          %s1739 = sphi 0, %s1743
          %p1740 = scmp.ge.s32.totalorder %s1739, 23
          %v1744 = vphi %v1724, %v1876
          %v1745 = vphi %v1725, %v1877
          %v1746 = vphi %v1726, %v1878
          %v1747 = vphi %v1727, %v1879
          %v1748 = vphi %v1728, %v1880
          %v1749 = vphi %v1729, %v1881
          %v1750 = vphi %v1730, %v1882
          %v1751 = vphi %v1731, %v1883
          %s1752 = sphi %s1737, %s1761
          %v1753 = vphi %v1724, %v1763
          %v1754 = vphi %v1725, %v1764
          %v1755 = vphi %v1726, %v1765
          %v1756 = vphi %v1727, %v1766
          %v1757 = vphi %v1728, %v1767
          %v1758 = vphi %v1729, %v1768
          %v1759 = vphi %v1730, %v1769
          %v1760 = vphi %v1731, %v1770
        $region86: #{custom_longformer_forward.5} parent=67 // loop_header_branch
          %1742 = sbr.rel (%p1740) target = $region90
        $region87: #{custom_longformer_forward.5} parent=67 // loop_body
          %s1761 = smul.f32 %s1752, 0.5
          %v1762 = vstv %s1761
          %v1763 = vadd.f32 %v1744, %v1762
          %v1764 = vadd.f32 %v1745, %v1762
          %v1765 = vadd.f32 %v1746, %v1762
          %v1766 = vadd.f32 %v1747, %v1762
          %v1767 = vadd.f32 %v1748, %v1762
          %v1768 = vadd.f32 %v1749, %v1762
          %v1769 = vadd.f32 %v1750, %v1762
          %v1770 = vadd.f32 %v1751, %v1762
          %v1771 = vsub.f32 %v1700, %v1763
          %v1772 = vsub.f32 %v1701, %v1764
          %v1773 = vsub.f32 %v1702, %v1765
          %v1774 = vsub.f32 %v1703, %v1766
          %v1775 = vsub.f32 %v1704, %v1767
          %v1776 = vsub.f32 %v1705, %v1768
          %v1777 = vsub.f32 %v1706, %v1769
          %v1778 = vsub.f32 %v1707, %v1770
          %v1779 = vmax.f32 %v1771, 0.0
          %v1780 = vmax.f32 %v1772, 0.0
          %v1781 = vmax.f32 %v1773, 0.0
          %v1782 = vmax.f32 %v1774, 0.0
          %v1783 = vmax.f32 %v1775, 0.0
          %v1784 = vmax.f32 %v1776, 0.0
          %v1785 = vmax.f32 %v1777, 0.0
          %v1786 = vmax.f32 %v1778, 0.0
          %vm1787 = vcmp.gt.f32.partialorder %v1779, 0.0
          %vm1788 = vcmp.gt.f32.partialorder %v1780, 0.0
          %vm1789 = vcmp.gt.f32.partialorder %v1781, 0.0
          %vm1790 = vcmp.gt.f32.partialorder %v1782, 0.0
          %vm1791 = vcmp.gt.f32.partialorder %v1783, 0.0
          %vm1792 = vcmp.gt.f32.partialorder %v1784, 0.0
          %vm1793 = vcmp.gt.f32.partialorder %v1785, 0.0
          %vm1794 = vcmp.gt.f32.partialorder %v1786, 0.0
          %v1795 = vsel %vm1787, %v1779, 1.0
          %v1796 = vsel %vm1788, %v1780, 1.0
          %v1797 = vsel %vm1789, %v1781, 1.0
          %v1798 = vsel %vm1790, %v1782, 1.0
          %v1799 = vsel %vm1791, %v1783, 1.0
          %v1800 = vsel %vm1792, %v1784, 1.0
          %v1801 = vsel %vm1793, %v1785, 1.0
          %v1802 = vsel %vm1794, %v1786, 1.0
          %v1803 = vlog2.pop %v1795
          %v1804 = vmul.f32 %v1803, 0.6931472
          %v1805 = vlog2.pop %v1796
          %v1806 = vmul.f32 %v1805, 0.6931472
          %v1807 = vlog2.pop %v1797
          %v1808 = vmul.f32 %v1807, 0.6931472
          %v1809 = vlog2.pop %v1798
          %v1810 = vmul.f32 %v1809, 0.6931472
          %v1811 = vlog2.pop %v1799
          %v1812 = vmul.f32 %v1811, 0.6931472
          %v1813 = vlog2.pop %v1800
          %v1814 = vmul.f32 %v1813, 0.6931472
          %v1815 = vlog2.pop %v1801
          %v1816 = vmul.f32 %v1815, 0.6931472
          %v1817 = vlog2.pop %v1802
          %v1818 = vmul.f32 %v1817, 0.6931472
          %v1819 = vstv %s1698
          %v1820 = vmul.f32 %v1819, %v1804
          %v1821 = vmul.f32 %v1819, %v1806
          %v1822 = vmul.f32 %v1819, %v1808
          %v1823 = vmul.f32 %v1819, %v1810
          %v1824 = vmul.f32 %v1819, %v1812
          %v1825 = vmul.f32 %v1819, %v1814
          %v1826 = vmul.f32 %v1819, %v1816
          %v1827 = vmul.f32 %v1819, %v1818
          %v1828 = vmul.f32 %v1820, 1.442695
          %v1829 = vpow.pop %v1828
          %v1830 = vmul.f32 %v1821, 1.442695
          %v1831 = vpow.pop %v1830
          %v1832 = vmul.f32 %v1822, 1.442695
          %v1833 = vpow.pop %v1832
          %v1834 = vmul.f32 %v1823, 1.442695
          %v1835 = vpow.pop %v1834
          %v1836 = vmul.f32 %v1824, 1.442695
          %v1837 = vpow.pop %v1836
          %v1838 = vmul.f32 %v1825, 1.442695
          %v1839 = vpow.pop %v1838
          %v1840 = vmul.f32 %v1826, 1.442695
          %v1841 = vpow.pop %v1840
          %v1842 = vmul.f32 %v1827, 1.442695
          %v1843 = vpow.pop %v1842
          %v1844 = vsel %vm1787, %v1829, 0.0
          %v1845 = vsel %vm1788, %v1831, 0.0
          %v1846 = vsel %vm1789, %v1833, 0.0
          %v1847 = vsel %vm1790, %v1835, 0.0
          %v1848 = vsel %vm1791, %v1837, 0.0
          %v1849 = vsel %vm1792, %v1839, 0.0
          %v1850 = vsel %vm1793, %v1841, 0.0
          %v1851 = vsel %vm1794, %v1843, 0.0
          %1852 = vadd.xlane.f32.xlu0 %v1844
          %v1853 = vpop.xlane.xlu0 %1852
          %1854 = vadd.xlane.f32.xlu0 %v1845
          %v1855 = vpop.xlane.xlu0 %1854
          %1856 = vadd.xlane.f32.xlu0 %v1846
          %v1857 = vpop.xlane.xlu0 %1856
          %1858 = vadd.xlane.f32.xlu0 %v1847
          %v1859 = vpop.xlane.xlu0 %1858
          %1860 = vadd.xlane.f32.xlu0 %v1848
          %v1861 = vpop.xlane.xlu0 %1860
          %1862 = vadd.xlane.f32.xlu0 %v1849
          %v1863 = vpop.xlane.xlu0 %1862
          %1864 = vadd.xlane.f32.xlu0 %v1850
          %v1865 = vpop.xlane.xlu0 %1864
          %1866 = vadd.xlane.f32.xlu0 %v1851
          %v1867 = vpop.xlane.xlu0 %1866
          %vm1868 = vcmp.ge.f32.partialorder %v1853, 1.0
          %vm1869 = vcmp.ge.f32.partialorder %v1855, 1.0
          %vm1870 = vcmp.ge.f32.partialorder %v1857, 1.0
          %vm1871 = vcmp.ge.f32.partialorder %v1859, 1.0
          %vm1872 = vcmp.ge.f32.partialorder %v1861, 1.0
          %vm1873 = vcmp.ge.f32.partialorder %v1863, 1.0
          %vm1874 = vcmp.ge.f32.partialorder %v1865, 1.0
          %vm1875 = vcmp.ge.f32.partialorder %v1867, 1.0
          %v1876 = vsel %vm1868, %v1763, %v1744
          %v1877 = vsel %vm1869, %v1764, %v1745
          %v1878 = vsel %vm1870, %v1765, %v1746
          %v1879 = vsel %vm1871, %v1766, %v1747
          %v1880 = vsel %vm1872, %v1767, %v1748
          %v1881 = vsel %vm1873, %v1768, %v1749
          %v1882 = vsel %vm1874, %v1769, %v1750
          %v1883 = vsel %vm1875, %v1770, %v1751
        $region88: #{custom_longformer_forward.5} parent=67 // loop_footer
          %s1743 = sadd.s32 1, %s1739
        $region89: #{custom_longformer_forward.5} parent=67 // loop_footer_branch
          %1738 = sbr.rel target = $region85
        $region90: #{custom_longformer_forward.5} parent=67 // loop_exit
          _
        %v1884 = vsub.f32 %v1700, %v1753
        %v1885 = vsub.f32 %v1701, %v1754
        %v1886 = vsub.f32 %v1702, %v1755
        %v1887 = vsub.f32 %v1703, %v1756
        %v1888 = vsub.f32 %v1704, %v1757
        %v1889 = vsub.f32 %v1705, %v1758
        %v1890 = vsub.f32 %v1706, %v1759
        %v1891 = vsub.f32 %v1707, %v1760
        %v1892 = vmax.f32 %v1884, 0.0
        %v1893 = vmax.f32 %v1885, 0.0
        %v1894 = vmax.f32 %v1886, 0.0
        %v1895 = vmax.f32 %v1887, 0.0
        %v1896 = vmax.f32 %v1888, 0.0
        %v1897 = vmax.f32 %v1889, 0.0
        %v1898 = vmax.f32 %v1890, 0.0
        %v1899 = vmax.f32 %v1891, 0.0
        %vm1900 = vcmp.gt.f32.partialorder %v1892, 0.0
        %vm1901 = vcmp.gt.f32.partialorder %v1893, 0.0
        %vm1902 = vcmp.gt.f32.partialorder %v1894, 0.0
        %vm1903 = vcmp.gt.f32.partialorder %v1895, 0.0
        %vm1904 = vcmp.gt.f32.partialorder %v1896, 0.0
        %vm1905 = vcmp.gt.f32.partialorder %v1897, 0.0
        %vm1906 = vcmp.gt.f32.partialorder %v1898, 0.0
        %vm1907 = vcmp.gt.f32.partialorder %v1899, 0.0
        %v1908 = vsel %vm1900, %v1892, 1.0
        %v1909 = vsel %vm1901, %v1893, 1.0
        %v1910 = vsel %vm1902, %v1894, 1.0
        %v1911 = vsel %vm1903, %v1895, 1.0
        %v1912 = vsel %vm1904, %v1896, 1.0
        %v1913 = vsel %vm1905, %v1897, 1.0
        %v1914 = vsel %vm1906, %v1898, 1.0
        %v1915 = vsel %vm1907, %v1899, 1.0
        %v1916 = vlog2.pop %v1908
        %v1917 = vmul.f32 %v1916, 0.6931472
        %v1918 = vlog2.pop %v1909
        %v1919 = vmul.f32 %v1918, 0.6931472
        %v1920 = vlog2.pop %v1910
        %v1921 = vmul.f32 %v1920, 0.6931472
        %v1922 = vlog2.pop %v1911
        %v1923 = vmul.f32 %v1922, 0.6931472
        %v1924 = vlog2.pop %v1912
        %v1925 = vmul.f32 %v1924, 0.6931472
        %v1926 = vlog2.pop %v1913
        %v1927 = vmul.f32 %v1926, 0.6931472
        %v1928 = vlog2.pop %v1914
        %v1929 = vmul.f32 %v1928, 0.6931472
        %v1930 = vlog2.pop %v1915
        %v1931 = vmul.f32 %v1930, 0.6931472
        %v1932 = vstv %s1698
        %v1933 = vmul.f32 %v1932, %v1917
        %v1934 = vmul.f32 %v1932, %v1919
        %v1935 = vmul.f32 %v1932, %v1921
        %v1936 = vmul.f32 %v1932, %v1923
        %v1937 = vmul.f32 %v1932, %v1925
        %v1938 = vmul.f32 %v1932, %v1927
        %v1939 = vmul.f32 %v1932, %v1929
        %v1940 = vmul.f32 %v1932, %v1931
        %v1941 = vmul.f32 %v1933, 1.442695
        %v1942 = vpow.pop %v1941
        %v1943 = vmul.f32 %v1934, 1.442695
        %v1944 = vpow.pop %v1943
        %v1945 = vmul.f32 %v1935, 1.442695
        %v1946 = vpow.pop %v1945
        %v1947 = vmul.f32 %v1936, 1.442695
        %v1948 = vpow.pop %v1947
        %v1949 = vmul.f32 %v1937, 1.442695
        %v1950 = vpow.pop %v1949
        %v1951 = vmul.f32 %v1938, 1.442695
        %v1952 = vpow.pop %v1951
        %v1953 = vmul.f32 %v1939, 1.442695
        %v1954 = vpow.pop %v1953
        %v1955 = vmul.f32 %v1940, 1.442695
        %v1956 = vpow.pop %v1955
        %v1957 = vsel %vm1900, %v1942, 0.0
        %v1958 = vsel %vm1901, %v1944, 0.0
        %v1959 = vsel %vm1902, %v1946, 0.0
        %v1960 = vsel %vm1903, %v1948, 0.0
        %v1961 = vsel %vm1904, %v1950, 0.0
        %v1962 = vsel %vm1905, %v1952, 0.0
        %v1963 = vsel %vm1906, %v1954, 0.0
        %v1964 = vsel %vm1907, %v1956, 0.0
        %1965 = vadd.xlane.f32.xlu0 %v1957
        %v1966 = vpop.xlane.xlu0 %1965
        %1967 = vadd.xlane.f32.xlu0 %v1958
        %v1968 = vpop.xlane.xlu0 %1967
        %1969 = vadd.xlane.f32.xlu0 %v1959
        %v1970 = vpop.xlane.xlu0 %1969
        %1971 = vadd.xlane.f32.xlu0 %v1960
        %v1972 = vpop.xlane.xlu0 %1971
        %1973 = vadd.xlane.f32.xlu0 %v1961
        %v1974 = vpop.xlane.xlu0 %1973
        %1975 = vadd.xlane.f32.xlu0 %v1962
        %v1976 = vpop.xlane.xlu0 %1975
        %1977 = vadd.xlane.f32.xlu0 %v1963
        %v1978 = vpop.xlane.xlu0 %1977
        %1979 = vadd.xlane.f32.xlu0 %v1964
        %v1980 = vpop.xlane.xlu0 %1979
        %v1981 = vrcp.pop %v1966
        %v1982 = vrcp.pop %v1968
        %v1983 = vrcp.pop %v1970
        %v1984 = vrcp.pop %v1972
        %v1985 = vrcp.pop %v1974
        %v1986 = vrcp.pop %v1976
        %v1987 = vrcp.pop %v1978
        %v1988 = vrcp.pop %v1980
        %v1989 = vmul.f32 %v1957, %v1981
        %v1990 = vmul.f32 %v1958, %v1982
        %v1991 = vmul.f32 %v1959, %v1983
        %v1992 = vmul.f32 %v1960, %v1984
        %v1993 = vmul.f32 %v1961, %v1985
        %v1994 = vmul.f32 %v1962, %v1986
        %v1995 = vmul.f32 %v1963, %v1987
        %v1996 = vmul.f32 %v1964, %v1988
        %v1997 = vpack.c.bf16 %v1990, %v1989
        %v1998 = vpack.c.bf16 %v1992, %v1991
        %v1999 = vpack.c.bf16 %v1994, %v1993
        %v2000 = vpack.c.bf16 %v1996, %v1995
        %2001 = vrot.lane.b32.xlu0 %v1533, 48
        %v2002 = vpop.permute.xlu0 %2001
        %2003 = vrot.lane.b32.xlu0 %v1534, 48
        %v2004 = vpop.permute.xlu0 %2003
        %2005 = vrot.lane.b32.xlu0 %v1535, 48
        %v2006 = vpop.permute.xlu0 %2005
        %2007 = vrot.lane.b32.xlu0 %v1536, 48
        %v2008 = vpop.permute.xlu0 %2007
        %2009 = vrot.lane.b32.xlu0 %v1537, 48
        %v2010 = vpop.permute.xlu0 %2009
        %2011 = vrot.lane.b32.xlu0 %v1538, 48
        %v2012 = vpop.permute.xlu0 %2011
        %2013 = vrot.lane.b32.xlu0 %v1539, 48
        %v2014 = vpop.permute.xlu0 %2013
        %2015 = vrot.lane.b32.xlu0 %v1540, 48
        %v2016 = vpop.permute.xlu0 %2015
        %2025 = vmatprep.subr.bf16.mxu0 0
        %2026 = vmatpush1.bf16.msra.mxu0 %v2002
        %2027 = vmatprep.subr.bf16.mxu0 0
        %2028 = vmatpush1.bf16.msra.mxu0 %v2004
        %2029 = vmatprep.subr.bf16.mxu0 0
        %2030 = vmatpush1.bf16.msra.mxu0 %v2006
        %2031 = vmatprep.subr.bf16.mxu0 0
        %2032 = vmatpush1.bf16.msra.mxu0 %v2008
        %2033 = vmatprep.subr.bf16.mxu0 0
        %2034 = vmatpush1.bf16.msra.mxu0 %v2010
        %2035 = vmatprep.subr.bf16.mxu0 0
        %2036 = vmatpush1.bf16.msra.mxu0 %v2012
        %2037 = vmatprep.subr.bf16.mxu0 0
        %2038 = vmatpush1.bf16.msra.mxu0 %v2014
        %2039 = vmatprep.subr.bf16.mxu0 0
        %2040 = vmatpush1.bf16.msra.mxu0 %v2016
        %2041 = vmatprep.subr.bf16.mxu0 0
        %2042 = vmatpush1.bf16.msra.mxu0 0
        %2043 = vmatprep.subr.bf16.mxu0 0
        %2044 = vmatpush1.bf16.msra.mxu0 0
        %2045 = vmatprep.subr.bf16.mxu0 0
        %2046 = vmatpush1.bf16.msra.mxu0 0
        %2047 = vmatprep.subr.bf16.mxu0 0
        %2048 = vmatpush1.bf16.msra.mxu0 0
        %2049 = vmatprep.subr.bf16.mxu0 0
        %2050 = vmatpush1.bf16.msra.mxu0 0
        %2051 = vmatprep.subr.bf16.mxu0 0
        %2052 = vmatpush1.bf16.msra.mxu0 0
        %2053 = vmatprep.subr.bf16.mxu0 0
        %2054 = vmatpush1.bf16.msra.mxu0 0
        %2055 = vmatprep.subr.bf16.mxu0 0
        %2056 = vmatpush1.bf16.msra.mxu0 0
        %2057 = vmatprep.mubr.bf16.mxu0 0
        %2058 = vmatmul.mubr.bf16.gmra.mrb[0].mxu0 %v1997
        %v2059 = vpop.f32.mrb[0].mxu0
        %v2060 = vadd.f32 0.0, %v2059
        %v2061 = vpop.f32.mrb[0].mxu0
        %v2062 = vpop.f32.mrb[0].mxu0
        %v2063 = vadd.f32 0.0, %v2062
        %v2064 = vpop.f32.mrb[0].mxu0
        %2065 = vmatprep.mubr.bf16.mxu0 0
        %2066 = vmatmul.mubr.bf16.gmra.mrb[0].mxu0 %v1998
        %v2067 = vpop.f32.mrb[0].mxu0
        %v2068 = vadd.f32 0.0, %v2067
        %v2069 = vpop.f32.mrb[0].mxu0
        %v2070 = vpop.f32.mrb[0].mxu0
        %v2071 = vadd.f32 0.0, %v2070
        %v2072 = vpop.f32.mrb[0].mxu0
        %2073 = vmatprep.mubr.bf16.mxu0 0
        %2074 = vmatmul.mubr.bf16.gmra.mrb[0].mxu0 %v1999
        %v2075 = vpop.f32.mrb[0].mxu0
        %v2076 = vadd.f32 0.0, %v2075
        %v2077 = vpop.f32.mrb[0].mxu0
        %v2078 = vpop.f32.mrb[0].mxu0
        %v2079 = vadd.f32 0.0, %v2078
        %v2080 = vpop.f32.mrb[0].mxu0
        %2081 = vmatprep.mubr.bf16.mxu0 0
        %2082 = vmatmul.mubr.bf16.gmra.mrb[0].mxu0 %v2000
        %v2083 = vpop.f32.mrb[0].mxu0
        %v2084 = vadd.f32 0.0, %v2083
        %v2085 = vpop.f32.mrb[0].mxu0
        %v2086 = vpop.f32.mrb[0].mxu0
        %v2087 = vadd.f32 0.0, %v2086
        %v2088 = vpop.f32.mrb[0].mxu0
        %2089 = vdwg.mxu0
        %2098 = vrot.lane.b32.xlu0 %v2060, 16
        %v2099 = vpop.permute.xlu0 %2098
        %2100 = vrot.lane.b32.xlu0 %v2063, 16
        %v2101 = vpop.permute.xlu0 %2100
        %2102 = vrot.lane.b32.xlu0 %v2068, 16
        %v2103 = vpop.permute.xlu0 %2102
        %2104 = vrot.lane.b32.xlu0 %v2071, 16
        %v2105 = vpop.permute.xlu0 %2104
        %2106 = vrot.lane.b32.xlu0 %v2076, 16
        %v2107 = vpop.permute.xlu0 %2106
        %2108 = vrot.lane.b32.xlu0 %v2079, 16
        %v2109 = vpop.permute.xlu0 %2108
        %2110 = vrot.lane.b32.xlu0 %v2084, 16
        %v2111 = vpop.permute.xlu0 %2110
        %2112 = vrot.lane.b32.xlu0 %v2087, 16
        %v2113 = vpop.permute.xlu0 %2112
        %vm2122 = vcmask 261248
        %2123 = vst.msk [vmem:[#allocation3] sm:$0xff] %vm2122, %v2099
        %2124 = vst.msk [vmem:[#allocation3 + $0x8] sm:$0xff] %vm2122, %v2101
        %2125 = vst.msk [vmem:[#allocation3 + $0x10] sm:$0xff] %vm2122, %v2103
        %2126 = vst.msk [vmem:[#allocation3 + $0x18] sm:$0xff] %vm2122, %v2105
        %2127 = vst.msk [vmem:[#allocation3 + $0x20] sm:$0xff] %vm2122, %v2107
        %2128 = vst.msk [vmem:[#allocation3 + $0x28] sm:$0xff] %vm2122, %v2109
        %2129 = vst.msk [vmem:[#allocation3 + $0x30] sm:$0xff] %vm2122, %v2111
        %2130 = vst.msk [vmem:[#allocation3 + $0x38] sm:$0xff] %vm2122, %v2113
        %s2131 = sld [smem:[#allocation4 + $0x2]]
        %s2132 = sld [smem:[#allocation6 + $0x2]]
        %v2133 = vld [vmem:[#allocation2] sm:$0xff]
        %v2134 = vld [vmem:[#allocation2 + $0x8] sm:$0xff]
        %v2135 = vld [vmem:[#allocation2 + $0x10] sm:$0xff]
        %v2136 = vld [vmem:[#allocation2 + $0x18] sm:$0xff]
        %v2137 = vld [vmem:[#allocation2 + $0x20] sm:$0xff]
        %v2138 = vld [vmem:[#allocation2 + $0x28] sm:$0xff]
        %v2139 = vld [vmem:[#allocation2 + $0x30] sm:$0xff]
        %v2140 = vld [vmem:[#allocation2 + $0x38] sm:$0xff]
        %v2141 = vld [vmem:[#allocation2 + $0x40] sm:$0xff]
        %v2142 = vld [vmem:[#allocation2 + $0x48] sm:$0xff]
        %v2143 = vld [vmem:[#allocation2 + $0x50] sm:$0xff]
        %v2144 = vld [vmem:[#allocation2 + $0x58] sm:$0xff]
        %v2145 = vld [vmem:[#allocation2 + $0x60] sm:$0xff]
        %v2146 = vld [vmem:[#allocation2 + $0x68] sm:$0xff]
        %v2147 = vld [vmem:[#allocation2 + $0x70] sm:$0xff]
        %v2148 = vld [vmem:[#allocation2 + $0x78] sm:$0xff]
        %v2149 = vpack.c.bf16 %v2134, %v2133
        %v2150 = vpack.c.bf16 %v2136, %v2135
        %v2151 = vpack.c.bf16 %v2138, %v2137
        %v2152 = vpack.c.bf16 %v2140, %v2139
        %v2153 = vpack.c.bf16 %v2142, %v2141
        %v2154 = vpack.c.bf16 %v2144, %v2143
        %v2155 = vpack.c.bf16 %v2146, %v2145
        %v2156 = vpack.c.bf16 %v2148, %v2147
        %2157 = vrot.lane.b32.xlu0 %v913, 96
        %v2158 = vpop.permute.xlu0 %2157
        %2159 = vrot.lane.b32.xlu0 %v914, 96
        %v2160 = vpop.permute.xlu0 %2159
        %2161 = vrot.lane.b32.xlu0 %v915, 96
        %v2162 = vpop.permute.xlu0 %2161
        %2163 = vrot.lane.b32.xlu0 %v916, 96
        %v2164 = vpop.permute.xlu0 %2163
        %2173 = vrot.lane.b32.xlu0 %v2149, 96
        %v2174 = vpop.permute.xlu0 %2173
        %2175 = vrot.lane.b32.xlu0 %v2150, 96
        %v2176 = vpop.permute.xlu0 %2175
        %2177 = vrot.lane.b32.xlu0 %v2151, 96
        %v2178 = vpop.permute.xlu0 %2177
        %2179 = vrot.lane.b32.xlu0 %v2152, 96
        %v2180 = vpop.permute.xlu0 %2179
        %2181 = vrot.lane.b32.xlu0 %v2153, 96
        %v2182 = vpop.permute.xlu0 %2181
        %2183 = vrot.lane.b32.xlu0 %v2154, 96
        %v2184 = vpop.permute.xlu0 %2183
        %2185 = vrot.lane.b32.xlu0 %v2155, 96
        %v2186 = vpop.permute.xlu0 %2185
        %2187 = vrot.lane.b32.xlu0 %v2156, 96
        %v2188 = vpop.permute.xlu0 %2187
        %v2190 = vsel %vm925, %v2158, 0
        %v2193 = vsel %vm925, %v2160, 0
        %v2196 = vsel %vm925, %v2162, 0
        %v2199 = vsel %vm925, %v2164, 0
        %v2202 = vsel %vm925, %v2174, 0
        %v2205 = vsel %vm925, %v2176, 0
        %v2208 = vsel %vm925, %v2178, 0
        %v2211 = vsel %vm925, %v2180, 0
        %v2214 = vsel %vm925, %v2182, 0
        %v2217 = vsel %vm925, %v2184, 0
        %v2220 = vsel %vm925, %v2186, 0
        %v2223 = vsel %vm925, %v2188, 0
        %2225 = vmatprep.subr.bf16.mxu0 0
        %2226 = vmatpush1.bf16.xpose.msra.mxu0 %v2202
        %2227 = vmatprep.subr.bf16.mxu0 0
        %2228 = vmatpush1.bf16.xpose.msra.mxu0 %v2205
        %2229 = vmatprep.subr.bf16.mxu0 0
        %2230 = vmatpush1.bf16.xpose.msra.mxu0 %v2208
        %2231 = vmatprep.subr.bf16.mxu0 0
        %2232 = vmatpush1.bf16.xpose.msra.mxu0 %v2211
        %2233 = vmatprep.subr.bf16.mxu0 0
        %2234 = vmatpush1.bf16.xpose.msra.mxu0 %v2214
        %2235 = vmatprep.subr.bf16.mxu0 0
        %2236 = vmatpush1.bf16.xpose.msra.mxu0 %v2217
        %2237 = vmatprep.subr.bf16.mxu0 0
        %2238 = vmatpush1.bf16.xpose.msra.mxu0 %v2220
        %2239 = vmatprep.subr.bf16.mxu0 0
        %2240 = vmatpush1.bf16.xpose.msra.mxu0 %v2223
        %2241 = vmatprep.subr.bf16.mxu0 0
        %2242 = vmatpush1.bf16.xpose.msra.mxu0 0
        %2243 = vmatprep.subr.bf16.mxu0 0
        %2244 = vmatpush1.bf16.xpose.msra.mxu0 0
        %2245 = vmatprep.subr.bf16.mxu0 0
        %2246 = vmatpush1.bf16.xpose.msra.mxu0 0
        %2247 = vmatprep.subr.bf16.mxu0 0
        %2248 = vmatpush1.bf16.xpose.msra.mxu0 0
        %2249 = vmatprep.subr.bf16.mxu0 0
        %2250 = vmatpush1.bf16.xpose.msra.mxu0 0
        %2251 = vmatprep.subr.bf16.mxu0 0
        %2252 = vmatpush1.bf16.xpose.msra.mxu0 0
        %2253 = vmatprep.subr.bf16.mxu0 0
        %2254 = vmatpush1.bf16.xpose.msra.mxu0 0
        %2255 = vmatprep.subr.bf16.mxu0 0
        %2256 = vmatpush1.bf16.xpose.msra.mxu0 0
        %2257 = vmatprep.mubr.bf16.mxu0 0
        %2258 = vmatmul.mubr.bf16.gmra.mrb[0].mxu0 %v2190
        %v2259 = vpop.f32.mrb[0].mxu0
        %v2260 = vadd.f32 0.0, %v2259
        %v2261 = vpop.f32.mrb[0].mxu0
        %v2262 = vpop.f32.mrb[0].mxu0
        %v2263 = vadd.f32 0.0, %v2262
        %v2264 = vpop.f32.mrb[0].mxu0
        %2265 = vmatprep.mubr.bf16.mxu0 0
        %2266 = vmatmul.mubr.bf16.gmra.mrb[0].mxu0 %v2193
        %v2267 = vpop.f32.mrb[0].mxu0
        %v2268 = vadd.f32 0.0, %v2267
        %v2269 = vpop.f32.mrb[0].mxu0
        %v2270 = vpop.f32.mrb[0].mxu0
        %v2271 = vadd.f32 0.0, %v2270
        %v2272 = vpop.f32.mrb[0].mxu0
        %2273 = vmatprep.mubr.bf16.mxu0 0
        %2274 = vmatmul.mubr.bf16.gmra.mrb[0].mxu0 %v2196
        %v2275 = vpop.f32.mrb[0].mxu0
        %v2276 = vadd.f32 0.0, %v2275
        %v2277 = vpop.f32.mrb[0].mxu0
        %v2278 = vpop.f32.mrb[0].mxu0
        %v2279 = vadd.f32 0.0, %v2278
        %v2280 = vpop.f32.mrb[0].mxu0
        %2281 = vmatprep.mubr.bf16.mxu0 0
        %2282 = vmatmul.mubr.bf16.gmra.mrb[0].mxu0 %v2199
        %v2283 = vpop.f32.mrb[0].mxu0
        %v2284 = vadd.f32 0.0, %v2283
        %v2285 = vpop.f32.mrb[0].mxu0
        %v2286 = vpop.f32.mrb[0].mxu0
        %v2287 = vadd.f32 0.0, %v2286
        %v2288 = vpop.f32.mrb[0].mxu0
        %2289 = vdwg.mxu0
        %v2290 = vstv %s2132
        %vm2291 = vcmp.gt.f32.partialorder %v1079, %v2290
        %vm2292 = vcmp.gt.f32.partialorder %v1080, %v2290
        %vm2293 = vcmp.gt.f32.partialorder %v1081, %v2290
        %vm2294 = vcmp.gt.f32.partialorder %v1082, %v2290
        %vm2295 = vcmp.gt.f32.partialorder %v1083, %v2290
        %vm2296 = vcmp.gt.f32.partialorder %v1084, %v2290
        %vm2297 = vcmp.gt.f32.partialorder %v1085, %v2290
        %vm2298 = vcmp.gt.f32.partialorder %v1086, %v2290
        %v2299 = vsel %vm2291, -1e+30, %v2260
        %v2300 = vsel %vm2292, -1e+30, %v2263
        %v2301 = vsel %vm2293, -1e+30, %v2268
        %v2302 = vsel %vm2294, -1e+30, %v2271
        %v2303 = vsel %vm2295, -1e+30, %v2276
        %v2304 = vsel %vm2296, -1e+30, %v2279
        %v2305 = vsel %vm2297, -1e+30, %v2284
        %v2306 = vsel %vm2298, -1e+30, %v2287
        %s2307 = ssub.f32 %s2131, 1.0
        %v2308 = vstv %s2307
        %v2309 = vrcp.pop %v2308
        %s2310 = vtos %v2309
        %v2311 = vstv %s2307
        %v2312 = vmul.f32 %v2299, %v2311
        %v2313 = vmul.f32 %v2300, %v2311
        %v2314 = vmul.f32 %v2301, %v2311
        %v2315 = vmul.f32 %v2302, %v2311
        %v2316 = vmul.f32 %v2303, %v2311
        %v2317 = vmul.f32 %v2304, %v2311
        %v2318 = vmul.f32 %v2305, %v2311
        %v2319 = vmul.f32 %v2306, %v2311
        %2320 = vmax.xlane.f32.xlu0 %v2312
        %v2321 = vpop.xlane.xlu0 %2320
        %2322 = vmax.xlane.f32.xlu0 %v2313
        %v2323 = vpop.xlane.xlu0 %2322
        %2324 = vmax.xlane.f32.xlu0 %v2314
        %v2325 = vpop.xlane.xlu0 %2324
        %2326 = vmax.xlane.f32.xlu0 %v2315
        %v2327 = vpop.xlane.xlu0 %2326
        %2328 = vmax.xlane.f32.xlu0 %v2316
        %v2329 = vpop.xlane.xlu0 %2328
        %2330 = vmax.xlane.f32.xlu0 %v2317
        %v2331 = vpop.xlane.xlu0 %2330
        %2332 = vmax.xlane.f32.xlu0 %v2318
        %v2333 = vpop.xlane.xlu0 %2332
        %2334 = vmax.xlane.f32.xlu0 %v2319
        %v2335 = vpop.xlane.xlu0 %2334
        %v2336 = vsub.f32 %v2321, 1.0
        %v2337 = vsub.f32 %v2323, 1.0
        %v2338 = vsub.f32 %v2325, 1.0
        %v2339 = vsub.f32 %v2327, 1.0
        %v2340 = vsub.f32 %v2329, 1.0
        %v2341 = vsub.f32 %v2331, 1.0
        %v2342 = vsub.f32 %v2333, 1.0
        %v2343 = vsub.f32 %v2335, 1.0
        %s2344 = smul.f32 %s2307, -4.8520303
        %v2345 = vstv %s2344
        %v2346 = vmul.f32 %v2345, 1.442695
        %v2347 = vpow.pop %v2346
        %s2348 = vtos %v2347
        %s2349 = ssub.f32 1.0, %s2348
        loop: start=0, step=1, limit=23
        $region91: #{custom_longformer_forward.5} parent=67 // loop_pre_header
          _
        $region92: #{custom_longformer_forward.5} parent=67 // loop_header
          %s2351 = sphi 0, %s2355
          %p2352 = scmp.ge.s32.totalorder %s2351, 23
          %v2356 = vphi %v2336, %v2488
          %v2357 = vphi %v2337, %v2489
          %v2358 = vphi %v2338, %v2490
          %v2359 = vphi %v2339, %v2491
          %v2360 = vphi %v2340, %v2492
          %v2361 = vphi %v2341, %v2493
          %v2362 = vphi %v2342, %v2494
          %v2363 = vphi %v2343, %v2495
          %s2364 = sphi %s2349, %s2373
          %v2365 = vphi %v2336, %v2375
          %v2366 = vphi %v2337, %v2376
          %v2367 = vphi %v2338, %v2377
          %v2368 = vphi %v2339, %v2378
          %v2369 = vphi %v2340, %v2379
          %v2370 = vphi %v2341, %v2380
          %v2371 = vphi %v2342, %v2381
          %v2372 = vphi %v2343, %v2382
        $region93: #{custom_longformer_forward.5} parent=67 // loop_header_branch
          %2354 = sbr.rel (%p2352) target = $region97
        $region94: #{custom_longformer_forward.5} parent=67 // loop_body
          %s2373 = smul.f32 %s2364, 0.5
          %v2374 = vstv %s2373
          %v2375 = vadd.f32 %v2356, %v2374
          %v2376 = vadd.f32 %v2357, %v2374
          %v2377 = vadd.f32 %v2358, %v2374
          %v2378 = vadd.f32 %v2359, %v2374
          %v2379 = vadd.f32 %v2360, %v2374
          %v2380 = vadd.f32 %v2361, %v2374
          %v2381 = vadd.f32 %v2362, %v2374
          %v2382 = vadd.f32 %v2363, %v2374
          %v2383 = vsub.f32 %v2312, %v2375
          %v2384 = vsub.f32 %v2313, %v2376
          %v2385 = vsub.f32 %v2314, %v2377
          %v2386 = vsub.f32 %v2315, %v2378
          %v2387 = vsub.f32 %v2316, %v2379
          %v2388 = vsub.f32 %v2317, %v2380
          %v2389 = vsub.f32 %v2318, %v2381
          %v2390 = vsub.f32 %v2319, %v2382
          %v2391 = vmax.f32 %v2383, 0.0
          %v2392 = vmax.f32 %v2384, 0.0
          %v2393 = vmax.f32 %v2385, 0.0
          %v2394 = vmax.f32 %v2386, 0.0
          %v2395 = vmax.f32 %v2387, 0.0
          %v2396 = vmax.f32 %v2388, 0.0
          %v2397 = vmax.f32 %v2389, 0.0
          %v2398 = vmax.f32 %v2390, 0.0
          %vm2399 = vcmp.gt.f32.partialorder %v2391, 0.0
          %vm2400 = vcmp.gt.f32.partialorder %v2392, 0.0
          %vm2401 = vcmp.gt.f32.partialorder %v2393, 0.0
          %vm2402 = vcmp.gt.f32.partialorder %v2394, 0.0
          %vm2403 = vcmp.gt.f32.partialorder %v2395, 0.0
          %vm2404 = vcmp.gt.f32.partialorder %v2396, 0.0
          %vm2405 = vcmp.gt.f32.partialorder %v2397, 0.0
          %vm2406 = vcmp.gt.f32.partialorder %v2398, 0.0
          %v2407 = vsel %vm2399, %v2391, 1.0
          %v2408 = vsel %vm2400, %v2392, 1.0
          %v2409 = vsel %vm2401, %v2393, 1.0
          %v2410 = vsel %vm2402, %v2394, 1.0
          %v2411 = vsel %vm2403, %v2395, 1.0
          %v2412 = vsel %vm2404, %v2396, 1.0
          %v2413 = vsel %vm2405, %v2397, 1.0
          %v2414 = vsel %vm2406, %v2398, 1.0
          %v2415 = vlog2.pop %v2407
          %v2416 = vmul.f32 %v2415, 0.6931472
          %v2417 = vlog2.pop %v2408
          %v2418 = vmul.f32 %v2417, 0.6931472
          %v2419 = vlog2.pop %v2409
          %v2420 = vmul.f32 %v2419, 0.6931472
          %v2421 = vlog2.pop %v2410
          %v2422 = vmul.f32 %v2421, 0.6931472
          %v2423 = vlog2.pop %v2411
          %v2424 = vmul.f32 %v2423, 0.6931472
          %v2425 = vlog2.pop %v2412
          %v2426 = vmul.f32 %v2425, 0.6931472
          %v2427 = vlog2.pop %v2413
          %v2428 = vmul.f32 %v2427, 0.6931472
          %v2429 = vlog2.pop %v2414
          %v2430 = vmul.f32 %v2429, 0.6931472
          %v2431 = vstv %s2310
          %v2432 = vmul.f32 %v2431, %v2416
          %v2433 = vmul.f32 %v2431, %v2418
          %v2434 = vmul.f32 %v2431, %v2420
          %v2435 = vmul.f32 %v2431, %v2422
          %v2436 = vmul.f32 %v2431, %v2424
          %v2437 = vmul.f32 %v2431, %v2426
          %v2438 = vmul.f32 %v2431, %v2428
          %v2439 = vmul.f32 %v2431, %v2430
          %v2440 = vmul.f32 %v2432, 1.442695
          %v2441 = vpow.pop %v2440
          %v2442 = vmul.f32 %v2433, 1.442695
          %v2443 = vpow.pop %v2442
          %v2444 = vmul.f32 %v2434, 1.442695
          %v2445 = vpow.pop %v2444
          %v2446 = vmul.f32 %v2435, 1.442695
          %v2447 = vpow.pop %v2446
          %v2448 = vmul.f32 %v2436, 1.442695
          %v2449 = vpow.pop %v2448
          %v2450 = vmul.f32 %v2437, 1.442695
          %v2451 = vpow.pop %v2450
          %v2452 = vmul.f32 %v2438, 1.442695
          %v2453 = vpow.pop %v2452
          %v2454 = vmul.f32 %v2439, 1.442695
          %v2455 = vpow.pop %v2454
          %v2456 = vsel %vm2399, %v2441, 0.0
          %v2457 = vsel %vm2400, %v2443, 0.0
          %v2458 = vsel %vm2401, %v2445, 0.0
          %v2459 = vsel %vm2402, %v2447, 0.0
          %v2460 = vsel %vm2403, %v2449, 0.0
          %v2461 = vsel %vm2404, %v2451, 0.0
          %v2462 = vsel %vm2405, %v2453, 0.0
          %v2463 = vsel %vm2406, %v2455, 0.0
          %2464 = vadd.xlane.f32.xlu0 %v2456
          %v2465 = vpop.xlane.xlu0 %2464
          %2466 = vadd.xlane.f32.xlu0 %v2457
          %v2467 = vpop.xlane.xlu0 %2466
          %2468 = vadd.xlane.f32.xlu0 %v2458
          %v2469 = vpop.xlane.xlu0 %2468
          %2470 = vadd.xlane.f32.xlu0 %v2459
          %v2471 = vpop.xlane.xlu0 %2470
          %2472 = vadd.xlane.f32.xlu0 %v2460
          %v2473 = vpop.xlane.xlu0 %2472
          %2474 = vadd.xlane.f32.xlu0 %v2461
          %v2475 = vpop.xlane.xlu0 %2474
          %2476 = vadd.xlane.f32.xlu0 %v2462
          %v2477 = vpop.xlane.xlu0 %2476
          %2478 = vadd.xlane.f32.xlu0 %v2463
          %v2479 = vpop.xlane.xlu0 %2478
          %vm2480 = vcmp.ge.f32.partialorder %v2465, 1.0
          %vm2481 = vcmp.ge.f32.partialorder %v2467, 1.0
          %vm2482 = vcmp.ge.f32.partialorder %v2469, 1.0
          %vm2483 = vcmp.ge.f32.partialorder %v2471, 1.0
          %vm2484 = vcmp.ge.f32.partialorder %v2473, 1.0
          %vm2485 = vcmp.ge.f32.partialorder %v2475, 1.0
          %vm2486 = vcmp.ge.f32.partialorder %v2477, 1.0
          %vm2487 = vcmp.ge.f32.partialorder %v2479, 1.0
          %v2488 = vsel %vm2480, %v2375, %v2356
          %v2489 = vsel %vm2481, %v2376, %v2357
          %v2490 = vsel %vm2482, %v2377, %v2358
          %v2491 = vsel %vm2483, %v2378, %v2359
          %v2492 = vsel %vm2484, %v2379, %v2360
          %v2493 = vsel %vm2485, %v2380, %v2361
          %v2494 = vsel %vm2486, %v2381, %v2362
          %v2495 = vsel %vm2487, %v2382, %v2363
        $region95: #{custom_longformer_forward.5} parent=67 // loop_footer
          %s2355 = sadd.s32 1, %s2351
        $region96: #{custom_longformer_forward.5} parent=67 // loop_footer_branch
          %2350 = sbr.rel target = $region92
        $region97: #{custom_longformer_forward.5} parent=67 // loop_exit
          _
        %v2496 = vsub.f32 %v2312, %v2365
        %v2497 = vsub.f32 %v2313, %v2366
        %v2498 = vsub.f32 %v2314, %v2367
        %v2499 = vsub.f32 %v2315, %v2368
        %v2500 = vsub.f32 %v2316, %v2369
        %v2501 = vsub.f32 %v2317, %v2370
        %v2502 = vsub.f32 %v2318, %v2371
        %v2503 = vsub.f32 %v2319, %v2372
        %v2504 = vmax.f32 %v2496, 0.0
        %v2505 = vmax.f32 %v2497, 0.0
        %v2506 = vmax.f32 %v2498, 0.0
        %v2507 = vmax.f32 %v2499, 0.0
        %v2508 = vmax.f32 %v2500, 0.0
        %v2509 = vmax.f32 %v2501, 0.0
        %v2510 = vmax.f32 %v2502, 0.0
        %v2511 = vmax.f32 %v2503, 0.0
        %vm2512 = vcmp.gt.f32.partialorder %v2504, 0.0
        %vm2513 = vcmp.gt.f32.partialorder %v2505, 0.0
        %vm2514 = vcmp.gt.f32.partialorder %v2506, 0.0
        %vm2515 = vcmp.gt.f32.partialorder %v2507, 0.0
        %vm2516 = vcmp.gt.f32.partialorder %v2508, 0.0
        %vm2517 = vcmp.gt.f32.partialorder %v2509, 0.0
        %vm2518 = vcmp.gt.f32.partialorder %v2510, 0.0
        %vm2519 = vcmp.gt.f32.partialorder %v2511, 0.0
        %v2520 = vsel %vm2512, %v2504, 1.0
        %v2521 = vsel %vm2513, %v2505, 1.0
        %v2522 = vsel %vm2514, %v2506, 1.0
        %v2523 = vsel %vm2515, %v2507, 1.0
        %v2524 = vsel %vm2516, %v2508, 1.0
        %v2525 = vsel %vm2517, %v2509, 1.0
        %v2526 = vsel %vm2518, %v2510, 1.0
        %v2527 = vsel %vm2519, %v2511, 1.0
        %v2528 = vlog2.pop %v2520
        %v2529 = vmul.f32 %v2528, 0.6931472
        %v2530 = vlog2.pop %v2521
        %v2531 = vmul.f32 %v2530, 0.6931472
        %v2532 = vlog2.pop %v2522
        %v2533 = vmul.f32 %v2532, 0.6931472
        %v2534 = vlog2.pop %v2523
        %v2535 = vmul.f32 %v2534, 0.6931472
        %v2536 = vlog2.pop %v2524
        %v2537 = vmul.f32 %v2536, 0.6931472
        %v2538 = vlog2.pop %v2525
        %v2539 = vmul.f32 %v2538, 0.6931472
        %v2540 = vlog2.pop %v2526
        %v2541 = vmul.f32 %v2540, 0.6931472
        %v2542 = vlog2.pop %v2527
        %v2543 = vmul.f32 %v2542, 0.6931472
        %v2544 = vstv %s2310
        %v2545 = vmul.f32 %v2544, %v2529
        %v2546 = vmul.f32 %v2544, %v2531
        %v2547 = vmul.f32 %v2544, %v2533
        %v2548 = vmul.f32 %v2544, %v2535
        %v2549 = vmul.f32 %v2544, %v2537
        %v2550 = vmul.f32 %v2544, %v2539
        %v2551 = vmul.f32 %v2544, %v2541
        %v2552 = vmul.f32 %v2544, %v2543
        %v2553 = vmul.f32 %v2545, 1.442695
        %v2554 = vpow.pop %v2553
        %v2555 = vmul.f32 %v2546, 1.442695
        %v2556 = vpow.pop %v2555
        %v2557 = vmul.f32 %v2547, 1.442695
        %v2558 = vpow.pop %v2557
        %v2559 = vmul.f32 %v2548, 1.442695
        %v2560 = vpow.pop %v2559
        %v2561 = vmul.f32 %v2549, 1.442695
        %v2562 = vpow.pop %v2561
        %v2563 = vmul.f32 %v2550, 1.442695
        %v2564 = vpow.pop %v2563
        %v2565 = vmul.f32 %v2551, 1.442695
        %v2566 = vpow.pop %v2565
        %v2567 = vmul.f32 %v2552, 1.442695
        %v2568 = vpow.pop %v2567
        %v2569 = vsel %vm2512, %v2554, 0.0
        %v2570 = vsel %vm2513, %v2556, 0.0
        %v2571 = vsel %vm2514, %v2558, 0.0
        %v2572 = vsel %vm2515, %v2560, 0.0
        %v2573 = vsel %vm2516, %v2562, 0.0
        %v2574 = vsel %vm2517, %v2564, 0.0
        %v2575 = vsel %vm2518, %v2566, 0.0
        %v2576 = vsel %vm2519, %v2568, 0.0
        %2577 = vadd.xlane.f32.xlu0 %v2569
        %v2578 = vpop.xlane.xlu0 %2577
        %2579 = vadd.xlane.f32.xlu0 %v2570
        %v2580 = vpop.xlane.xlu0 %2579
        %2581 = vadd.xlane.f32.xlu0 %v2571
        %v2582 = vpop.xlane.xlu0 %2581
        %2583 = vadd.xlane.f32.xlu0 %v2572
        %v2584 = vpop.xlane.xlu0 %2583
        %2585 = vadd.xlane.f32.xlu0 %v2573
        %v2586 = vpop.xlane.xlu0 %2585
        %2587 = vadd.xlane.f32.xlu0 %v2574
        %v2588 = vpop.xlane.xlu0 %2587
        %2589 = vadd.xlane.f32.xlu0 %v2575
        %v2590 = vpop.xlane.xlu0 %2589
        %2591 = vadd.xlane.f32.xlu0 %v2576
        %v2592 = vpop.xlane.xlu0 %2591
        %v2593 = vrcp.pop %v2578
        %v2594 = vrcp.pop %v2580
        %v2595 = vrcp.pop %v2582
        %v2596 = vrcp.pop %v2584
        %v2597 = vrcp.pop %v2586
        %v2598 = vrcp.pop %v2588
        %v2599 = vrcp.pop %v2590
        %v2600 = vrcp.pop %v2592
        %v2601 = vmul.f32 %v2569, %v2593
        %v2602 = vmul.f32 %v2570, %v2594
        %v2603 = vmul.f32 %v2571, %v2595
        %v2604 = vmul.f32 %v2572, %v2596
        %v2605 = vmul.f32 %v2573, %v2597
        %v2606 = vmul.f32 %v2574, %v2598
        %v2607 = vmul.f32 %v2575, %v2599
        %v2608 = vmul.f32 %v2576, %v2600
        %v2609 = vpack.c.bf16 %v2602, %v2601
        %v2610 = vpack.c.bf16 %v2604, %v2603
        %v2611 = vpack.c.bf16 %v2606, %v2605
        %v2612 = vpack.c.bf16 %v2608, %v2607
        %2613 = vrot.lane.b32.xlu0 %v2149, 32
        %v2614 = vpop.permute.xlu0 %2613
        %2615 = vrot.lane.b32.xlu0 %v2150, 32
        %v2616 = vpop.permute.xlu0 %2615
        %2617 = vrot.lane.b32.xlu0 %v2151, 32
        %v2618 = vpop.permute.xlu0 %2617
        %2619 = vrot.lane.b32.xlu0 %v2152, 32
        %v2620 = vpop.permute.xlu0 %2619
        %2621 = vrot.lane.b32.xlu0 %v2153, 32
        %v2622 = vpop.permute.xlu0 %2621
        %2623 = vrot.lane.b32.xlu0 %v2154, 32
        %v2624 = vpop.permute.xlu0 %2623
        %2625 = vrot.lane.b32.xlu0 %v2155, 32
        %v2626 = vpop.permute.xlu0 %2625
        %2627 = vrot.lane.b32.xlu0 %v2156, 32
        %v2628 = vpop.permute.xlu0 %2627
        %2637 = vmatprep.subr.bf16.mxu0 0
        %2638 = vmatpush1.bf16.msra.mxu0 %v2614
        %2639 = vmatprep.subr.bf16.mxu0 0
        %2640 = vmatpush1.bf16.msra.mxu0 %v2616
        %2641 = vmatprep.subr.bf16.mxu0 0
        %2642 = vmatpush1.bf16.msra.mxu0 %v2618
        %2643 = vmatprep.subr.bf16.mxu0 0
        %2644 = vmatpush1.bf16.msra.mxu0 %v2620
        %2645 = vmatprep.subr.bf16.mxu0 0
        %2646 = vmatpush1.bf16.msra.mxu0 %v2622
        %2647 = vmatprep.subr.bf16.mxu0 0
        %2648 = vmatpush1.bf16.msra.mxu0 %v2624
        %2649 = vmatprep.subr.bf16.mxu0 0
        %2650 = vmatpush1.bf16.msra.mxu0 %v2626
        %2651 = vmatprep.subr.bf16.mxu0 0
        %2652 = vmatpush1.bf16.msra.mxu0 %v2628
        %2653 = vmatprep.subr.bf16.mxu0 0
        %2654 = vmatpush1.bf16.msra.mxu0 0
        %2655 = vmatprep.subr.bf16.mxu0 0
        %2656 = vmatpush1.bf16.msra.mxu0 0
        %2657 = vmatprep.subr.bf16.mxu0 0
        %2658 = vmatpush1.bf16.msra.mxu0 0
        %2659 = vmatprep.subr.bf16.mxu0 0
        %2660 = vmatpush1.bf16.msra.mxu0 0
        %2661 = vmatprep.subr.bf16.mxu0 0
        %2662 = vmatpush1.bf16.msra.mxu0 0
        %2663 = vmatprep.subr.bf16.mxu0 0
        %2664 = vmatpush1.bf16.msra.mxu0 0
        %2665 = vmatprep.subr.bf16.mxu0 0
        %2666 = vmatpush1.bf16.msra.mxu0 0
        %2667 = vmatprep.subr.bf16.mxu0 0
        %2668 = vmatpush1.bf16.msra.mxu0 0
        %2669 = vmatprep.mubr.bf16.mxu0 0
        %2670 = vmatmul.mubr.bf16.gmra.mrb[0].mxu0 %v2609
        %v2671 = vpop.f32.mrb[0].mxu0
        %v2672 = vadd.f32 0.0, %v2671
        %v2673 = vpop.f32.mrb[0].mxu0
        %v2674 = vpop.f32.mrb[0].mxu0
        %v2675 = vadd.f32 0.0, %v2674
        %v2676 = vpop.f32.mrb[0].mxu0
        %2677 = vmatprep.mubr.bf16.mxu0 0
        %2678 = vmatmul.mubr.bf16.gmra.mrb[0].mxu0 %v2610
        %v2679 = vpop.f32.mrb[0].mxu0
        %v2680 = vadd.f32 0.0, %v2679
        %v2681 = vpop.f32.mrb[0].mxu0
        %v2682 = vpop.f32.mrb[0].mxu0
        %v2683 = vadd.f32 0.0, %v2682
        %v2684 = vpop.f32.mrb[0].mxu0
        %2685 = vmatprep.mubr.bf16.mxu0 0
        %2686 = vmatmul.mubr.bf16.gmra.mrb[0].mxu0 %v2611
        %v2687 = vpop.f32.mrb[0].mxu0
        %v2688 = vadd.f32 0.0, %v2687
        %v2689 = vpop.f32.mrb[0].mxu0
        %v2690 = vpop.f32.mrb[0].mxu0
        %v2691 = vadd.f32 0.0, %v2690
        %v2692 = vpop.f32.mrb[0].mxu0
        %2693 = vmatprep.mubr.bf16.mxu0 0
        %2694 = vmatmul.mubr.bf16.gmra.mrb[0].mxu0 %v2612
        %v2695 = vpop.f32.mrb[0].mxu0
        %v2696 = vadd.f32 0.0, %v2695
        %v2697 = vpop.f32.mrb[0].mxu0
        %v2698 = vpop.f32.mrb[0].mxu0
        %v2699 = vadd.f32 0.0, %v2698
        %v2700 = vpop.f32.mrb[0].mxu0
        %2701 = vdwg.mxu0
        %2710 = vrot.lane.b32.xlu0 %v2672, 32
        %v2711 = vpop.permute.xlu0 %2710
        %2712 = vrot.lane.b32.xlu0 %v2675, 32
        %v2713 = vpop.permute.xlu0 %2712
        %2714 = vrot.lane.b32.xlu0 %v2680, 32
        %v2715 = vpop.permute.xlu0 %2714
        %2716 = vrot.lane.b32.xlu0 %v2683, 32
        %v2717 = vpop.permute.xlu0 %2716
        %2718 = vrot.lane.b32.xlu0 %v2688, 32
        %v2719 = vpop.permute.xlu0 %2718
        %2720 = vrot.lane.b32.xlu0 %v2691, 32
        %v2721 = vpop.permute.xlu0 %2720
        %2722 = vrot.lane.b32.xlu0 %v2696, 32
        %v2723 = vpop.permute.xlu0 %2722
        %2724 = vrot.lane.b32.xlu0 %v2699, 32
        %v2725 = vpop.permute.xlu0 %2724
        %vm2734 = vcmask 392448
        %2735 = vst.msk [vmem:[#allocation3] sm:$0xff] %vm2734, %v2711
        %2736 = vst.msk [vmem:[#allocation3 + $0x8] sm:$0xff] %vm2734, %v2713
        %2737 = vst.msk [vmem:[#allocation3 + $0x10] sm:$0xff] %vm2734, %v2715
        %2738 = vst.msk [vmem:[#allocation3 + $0x18] sm:$0xff] %vm2734, %v2717
        %2739 = vst.msk [vmem:[#allocation3 + $0x20] sm:$0xff] %vm2734, %v2719
        %2740 = vst.msk [vmem:[#allocation3 + $0x28] sm:$0xff] %vm2734, %v2721
        %2741 = vst.msk [vmem:[#allocation3 + $0x30] sm:$0xff] %vm2734, %v2723
        %2742 = vst.msk [vmem:[#allocation3 + $0x38] sm:$0xff] %vm2734, %v2725
        %s2743 = sld [smem:[#allocation4 + $0x3]]
        %s2744 = sld [smem:[#allocation6 + $0x3]]
        %v2745 = vld [vmem:[#allocation2] sm:$0xff]
        %v2746 = vld [vmem:[#allocation2 + $0x8] sm:$0xff]
        %v2747 = vld [vmem:[#allocation2 + $0x10] sm:$0xff]
        %v2748 = vld [vmem:[#allocation2 + $0x18] sm:$0xff]
        %v2749 = vld [vmem:[#allocation2 + $0x20] sm:$0xff]
        %v2750 = vld [vmem:[#allocation2 + $0x28] sm:$0xff]
        %v2751 = vld [vmem:[#allocation2 + $0x30] sm:$0xff]
        %v2752 = vld [vmem:[#allocation2 + $0x38] sm:$0xff]
        %v2753 = vld [vmem:[#allocation2 + $0x40] sm:$0xff]
        %v2754 = vld [vmem:[#allocation2 + $0x48] sm:$0xff]
        %v2755 = vld [vmem:[#allocation2 + $0x50] sm:$0xff]
        %v2756 = vld [vmem:[#allocation2 + $0x58] sm:$0xff]
        %v2757 = vld [vmem:[#allocation2 + $0x60] sm:$0xff]
        %v2758 = vld [vmem:[#allocation2 + $0x68] sm:$0xff]
        %v2759 = vld [vmem:[#allocation2 + $0x70] sm:$0xff]
        %v2760 = vld [vmem:[#allocation2 + $0x78] sm:$0xff]
        %v2761 = vpack.c.bf16 %v2746, %v2745
        %v2762 = vpack.c.bf16 %v2748, %v2747
        %v2763 = vpack.c.bf16 %v2750, %v2749
        %v2764 = vpack.c.bf16 %v2752, %v2751
        %v2765 = vpack.c.bf16 %v2754, %v2753
        %v2766 = vpack.c.bf16 %v2756, %v2755
        %v2767 = vpack.c.bf16 %v2758, %v2757
        %v2768 = vpack.c.bf16 %v2760, %v2759
        %2769 = vrot.lane.b32.xlu0 %v913, 80
        %v2770 = vpop.permute.xlu0 %2769
        %2771 = vrot.lane.b32.xlu0 %v914, 80
        %v2772 = vpop.permute.xlu0 %2771
        %2773 = vrot.lane.b32.xlu0 %v915, 80
        %v2774 = vpop.permute.xlu0 %2773
        %2775 = vrot.lane.b32.xlu0 %v916, 80
        %v2776 = vpop.permute.xlu0 %2775
        %2785 = vrot.lane.b32.xlu0 %v2761, 80
        %v2786 = vpop.permute.xlu0 %2785
        %2787 = vrot.lane.b32.xlu0 %v2762, 80
        %v2788 = vpop.permute.xlu0 %2787
        %2789 = vrot.lane.b32.xlu0 %v2763, 80
        %v2790 = vpop.permute.xlu0 %2789
        %2791 = vrot.lane.b32.xlu0 %v2764, 80
        %v2792 = vpop.permute.xlu0 %2791
        %2793 = vrot.lane.b32.xlu0 %v2765, 80
        %v2794 = vpop.permute.xlu0 %2793
        %2795 = vrot.lane.b32.xlu0 %v2766, 80
        %v2796 = vpop.permute.xlu0 %2795
        %2797 = vrot.lane.b32.xlu0 %v2767, 80
        %v2798 = vpop.permute.xlu0 %2797
        %2799 = vrot.lane.b32.xlu0 %v2768, 80
        %v2800 = vpop.permute.xlu0 %2799
        %v2802 = vsel %vm925, %v2770, 0
        %v2805 = vsel %vm925, %v2772, 0
        %v2808 = vsel %vm925, %v2774, 0
        %v2811 = vsel %vm925, %v2776, 0
        %v2814 = vsel %vm925, %v2786, 0
        %v2817 = vsel %vm925, %v2788, 0
        %v2820 = vsel %vm925, %v2790, 0
        %v2823 = vsel %vm925, %v2792, 0
        %v2826 = vsel %vm925, %v2794, 0
        %v2829 = vsel %vm925, %v2796, 0
        %v2832 = vsel %vm925, %v2798, 0
        %v2835 = vsel %vm925, %v2800, 0
        %2837 = vmatprep.subr.bf16.mxu0 0
        %2838 = vmatpush1.bf16.xpose.msra.mxu0 %v2814
        %2839 = vmatprep.subr.bf16.mxu0 0
        %2840 = vmatpush1.bf16.xpose.msra.mxu0 %v2817
        %2841 = vmatprep.subr.bf16.mxu0 0
        %2842 = vmatpush1.bf16.xpose.msra.mxu0 %v2820
        %2843 = vmatprep.subr.bf16.mxu0 0
        %2844 = vmatpush1.bf16.xpose.msra.mxu0 %v2823
        %2845 = vmatprep.subr.bf16.mxu0 0
        %2846 = vmatpush1.bf16.xpose.msra.mxu0 %v2826
        %2847 = vmatprep.subr.bf16.mxu0 0
        %2848 = vmatpush1.bf16.xpose.msra.mxu0 %v2829
        %2849 = vmatprep.subr.bf16.mxu0 0
        %2850 = vmatpush1.bf16.xpose.msra.mxu0 %v2832
        %2851 = vmatprep.subr.bf16.mxu0 0
        %2852 = vmatpush1.bf16.xpose.msra.mxu0 %v2835
        %2853 = vmatprep.subr.bf16.mxu0 0
        %2854 = vmatpush1.bf16.xpose.msra.mxu0 0
        %2855 = vmatprep.subr.bf16.mxu0 0
        %2856 = vmatpush1.bf16.xpose.msra.mxu0 0
        %2857 = vmatprep.subr.bf16.mxu0 0
        %2858 = vmatpush1.bf16.xpose.msra.mxu0 0
        %2859 = vmatprep.subr.bf16.mxu0 0
        %2860 = vmatpush1.bf16.xpose.msra.mxu0 0
        %2861 = vmatprep.subr.bf16.mxu0 0
        %2862 = vmatpush1.bf16.xpose.msra.mxu0 0
        %2863 = vmatprep.subr.bf16.mxu0 0
        %2864 = vmatpush1.bf16.xpose.msra.mxu0 0
        %2865 = vmatprep.subr.bf16.mxu0 0
        %2866 = vmatpush1.bf16.xpose.msra.mxu0 0
        %2867 = vmatprep.subr.bf16.mxu0 0
        %2868 = vmatpush1.bf16.xpose.msra.mxu0 0
        %2869 = vmatprep.mubr.bf16.mxu0 0
        %2870 = vmatmul.mubr.bf16.gmra.mrb[0].mxu0 %v2802
        %v2871 = vpop.f32.mrb[0].mxu0
        %v2872 = vadd.f32 0.0, %v2871
        %v2873 = vpop.f32.mrb[0].mxu0
        %v2874 = vpop.f32.mrb[0].mxu0
        %v2875 = vadd.f32 0.0, %v2874
        %v2876 = vpop.f32.mrb[0].mxu0
        %2877 = vmatprep.mubr.bf16.mxu0 0
        %2878 = vmatmul.mubr.bf16.gmra.mrb[0].mxu0 %v2805
        %v2879 = vpop.f32.mrb[0].mxu0
        %v2880 = vadd.f32 0.0, %v2879
        %v2881 = vpop.f32.mrb[0].mxu0
        %v2882 = vpop.f32.mrb[0].mxu0
        %v2883 = vadd.f32 0.0, %v2882
        %v2884 = vpop.f32.mrb[0].mxu0
        %2885 = vmatprep.mubr.bf16.mxu0 0
        %2886 = vmatmul.mubr.bf16.gmra.mrb[0].mxu0 %v2808
        %v2887 = vpop.f32.mrb[0].mxu0
        %v2888 = vadd.f32 0.0, %v2887
        %v2889 = vpop.f32.mrb[0].mxu0
        %v2890 = vpop.f32.mrb[0].mxu0
        %v2891 = vadd.f32 0.0, %v2890
        %v2892 = vpop.f32.mrb[0].mxu0
        %2893 = vmatprep.mubr.bf16.mxu0 0
        %2894 = vmatmul.mubr.bf16.gmra.mrb[0].mxu0 %v2811
        %v2895 = vpop.f32.mrb[0].mxu0
        %v2896 = vadd.f32 0.0, %v2895
        %v2897 = vpop.f32.mrb[0].mxu0
        %v2898 = vpop.f32.mrb[0].mxu0
        %v2899 = vadd.f32 0.0, %v2898
        %v2900 = vpop.f32.mrb[0].mxu0
        %2901 = vdwg.mxu0
        %v2902 = vstv %s2744
        %vm2903 = vcmp.gt.f32.partialorder %v1079, %v2902
        %vm2904 = vcmp.gt.f32.partialorder %v1080, %v2902
        %vm2905 = vcmp.gt.f32.partialorder %v1081, %v2902
        %vm2906 = vcmp.gt.f32.partialorder %v1082, %v2902
        %vm2907 = vcmp.gt.f32.partialorder %v1083, %v2902
        %vm2908 = vcmp.gt.f32.partialorder %v1084, %v2902
        %vm2909 = vcmp.gt.f32.partialorder %v1085, %v2902
        %vm2910 = vcmp.gt.f32.partialorder %v1086, %v2902
        %v2911 = vsel %vm2903, -1e+30, %v2872
        %v2912 = vsel %vm2904, -1e+30, %v2875
        %v2913 = vsel %vm2905, -1e+30, %v2880
        %v2914 = vsel %vm2906, -1e+30, %v2883
        %v2915 = vsel %vm2907, -1e+30, %v2888
        %v2916 = vsel %vm2908, -1e+30, %v2891
        %v2917 = vsel %vm2909, -1e+30, %v2896
        %v2918 = vsel %vm2910, -1e+30, %v2899
        %s2919 = ssub.f32 %s2743, 1.0
        %v2920 = vstv %s2919
        %v2921 = vrcp.pop %v2920
        %s2922 = vtos %v2921
        %v2923 = vstv %s2919
        %v2924 = vmul.f32 %v2911, %v2923
        %v2925 = vmul.f32 %v2912, %v2923
        %v2926 = vmul.f32 %v2913, %v2923
        %v2927 = vmul.f32 %v2914, %v2923
        %v2928 = vmul.f32 %v2915, %v2923
        %v2929 = vmul.f32 %v2916, %v2923
        %v2930 = vmul.f32 %v2917, %v2923
        %v2931 = vmul.f32 %v2918, %v2923
        %2932 = vmax.xlane.f32.xlu0 %v2924
        %v2933 = vpop.xlane.xlu0 %2932
        %2934 = vmax.xlane.f32.xlu0 %v2925
        %v2935 = vpop.xlane.xlu0 %2934
        %2936 = vmax.xlane.f32.xlu0 %v2926
        %v2937 = vpop.xlane.xlu0 %2936
        %2938 = vmax.xlane.f32.xlu0 %v2927
        %v2939 = vpop.xlane.xlu0 %2938
        %2940 = vmax.xlane.f32.xlu0 %v2928
        %v2941 = vpop.xlane.xlu0 %2940
        %2942 = vmax.xlane.f32.xlu0 %v2929
        %v2943 = vpop.xlane.xlu0 %2942
        %2944 = vmax.xlane.f32.xlu0 %v2930
        %v2945 = vpop.xlane.xlu0 %2944
        %2946 = vmax.xlane.f32.xlu0 %v2931
        %v2947 = vpop.xlane.xlu0 %2946
        %v2948 = vsub.f32 %v2933, 1.0
        %v2949 = vsub.f32 %v2935, 1.0
        %v2950 = vsub.f32 %v2937, 1.0
        %v2951 = vsub.f32 %v2939, 1.0
        %v2952 = vsub.f32 %v2941, 1.0
        %v2953 = vsub.f32 %v2943, 1.0
        %v2954 = vsub.f32 %v2945, 1.0
        %v2955 = vsub.f32 %v2947, 1.0
        %s2956 = smul.f32 %s2919, -4.8520303
        %v2957 = vstv %s2956
        %v2958 = vmul.f32 %v2957, 1.442695
        %v2959 = vpow.pop %v2958
        %s2960 = vtos %v2959
        %s2961 = ssub.f32 1.0, %s2960
        loop: start=0, step=1, limit=23
        $region98: #{custom_longformer_forward.5} parent=67 // loop_pre_header
          _
        $region99: #{custom_longformer_forward.5} parent=67 // loop_header
          %s2963 = sphi 0, %s2967
          %p2964 = scmp.ge.s32.totalorder %s2963, 23
          %v2968 = vphi %v2948, %v3100
          %v2969 = vphi %v2949, %v3101
          %v2970 = vphi %v2950, %v3102
          %v2971 = vphi %v2951, %v3103
          %v2972 = vphi %v2952, %v3104
          %v2973 = vphi %v2953, %v3105
          %v2974 = vphi %v2954, %v3106
          %v2975 = vphi %v2955, %v3107
          %s2976 = sphi %s2961, %s2985
          %v2977 = vphi %v2948, %v2987
          %v2978 = vphi %v2949, %v2988
          %v2979 = vphi %v2950, %v2989
          %v2980 = vphi %v2951, %v2990
          %v2981 = vphi %v2952, %v2991
          %v2982 = vphi %v2953, %v2992
          %v2983 = vphi %v2954, %v2993
          %v2984 = vphi %v2955, %v2994
        $region100: #{custom_longformer_forward.5} parent=67 // loop_header_branch
          %2966 = sbr.rel (%p2964) target = $region104
        $region101: #{custom_longformer_forward.5} parent=67 // loop_body
          %s2985 = smul.f32 %s2976, 0.5
          %v2986 = vstv %s2985
          %v2987 = vadd.f32 %v2968, %v2986
          %v2988 = vadd.f32 %v2969, %v2986
          %v2989 = vadd.f32 %v2970, %v2986
          %v2990 = vadd.f32 %v2971, %v2986
          %v2991 = vadd.f32 %v2972, %v2986
          %v2992 = vadd.f32 %v2973, %v2986
          %v2993 = vadd.f32 %v2974, %v2986
          %v2994 = vadd.f32 %v2975, %v2986
          %v2995 = vsub.f32 %v2924, %v2987
          %v2996 = vsub.f32 %v2925, %v2988
          %v2997 = vsub.f32 %v2926, %v2989
          %v2998 = vsub.f32 %v2927, %v2990
          %v2999 = vsub.f32 %v2928, %v2991
          %v3000 = vsub.f32 %v2929, %v2992
          %v3001 = vsub.f32 %v2930, %v2993
          %v3002 = vsub.f32 %v2931, %v2994
          %v3003 = vmax.f32 %v2995, 0.0
          %v3004 = vmax.f32 %v2996, 0.0
          %v3005 = vmax.f32 %v2997, 0.0
          %v3006 = vmax.f32 %v2998, 0.0
          %v3007 = vmax.f32 %v2999, 0.0
          %v3008 = vmax.f32 %v3000, 0.0
          %v3009 = vmax.f32 %v3001, 0.0
          %v3010 = vmax.f32 %v3002, 0.0
          %vm3011 = vcmp.gt.f32.partialorder %v3003, 0.0
          %vm3012 = vcmp.gt.f32.partialorder %v3004, 0.0
          %vm3013 = vcmp.gt.f32.partialorder %v3005, 0.0
          %vm3014 = vcmp.gt.f32.partialorder %v3006, 0.0
          %vm3015 = vcmp.gt.f32.partialorder %v3007, 0.0
          %vm3016 = vcmp.gt.f32.partialorder %v3008, 0.0
          %vm3017 = vcmp.gt.f32.partialorder %v3009, 0.0
          %vm3018 = vcmp.gt.f32.partialorder %v3010, 0.0
          %v3019 = vsel %vm3011, %v3003, 1.0
          %v3020 = vsel %vm3012, %v3004, 1.0
          %v3021 = vsel %vm3013, %v3005, 1.0
          %v3022 = vsel %vm3014, %v3006, 1.0
          %v3023 = vsel %vm3015, %v3007, 1.0
          %v3024 = vsel %vm3016, %v3008, 1.0
          %v3025 = vsel %vm3017, %v3009, 1.0
          %v3026 = vsel %vm3018, %v3010, 1.0
          %v3027 = vlog2.pop %v3019
          %v3028 = vmul.f32 %v3027, 0.6931472
          %v3029 = vlog2.pop %v3020
          %v3030 = vmul.f32 %v3029, 0.6931472
          %v3031 = vlog2.pop %v3021
          %v3032 = vmul.f32 %v3031, 0.6931472
          %v3033 = vlog2.pop %v3022
          %v3034 = vmul.f32 %v3033, 0.6931472
          %v3035 = vlog2.pop %v3023
          %v3036 = vmul.f32 %v3035, 0.6931472
          %v3037 = vlog2.pop %v3024
          %v3038 = vmul.f32 %v3037, 0.6931472
          %v3039 = vlog2.pop %v3025
          %v3040 = vmul.f32 %v3039, 0.6931472
          %v3041 = vlog2.pop %v3026
          %v3042 = vmul.f32 %v3041, 0.6931472
          %v3043 = vstv %s2922
          %v3044 = vmul.f32 %v3043, %v3028
          %v3045 = vmul.f32 %v3043, %v3030
          %v3046 = vmul.f32 %v3043, %v3032
          %v3047 = vmul.f32 %v3043, %v3034
          %v3048 = vmul.f32 %v3043, %v3036
          %v3049 = vmul.f32 %v3043, %v3038
          %v3050 = vmul.f32 %v3043, %v3040
          %v3051 = vmul.f32 %v3043, %v3042
          %v3052 = vmul.f32 %v3044, 1.442695
          %v3053 = vpow.pop %v3052
          %v3054 = vmul.f32 %v3045, 1.442695
          %v3055 = vpow.pop %v3054
          %v3056 = vmul.f32 %v3046, 1.442695
          %v3057 = vpow.pop %v3056
          %v3058 = vmul.f32 %v3047, 1.442695
          %v3059 = vpow.pop %v3058
          %v3060 = vmul.f32 %v3048, 1.442695
          %v3061 = vpow.pop %v3060
          %v3062 = vmul.f32 %v3049, 1.442695
          %v3063 = vpow.pop %v3062
          %v3064 = vmul.f32 %v3050, 1.442695
          %v3065 = vpow.pop %v3064
          %v3066 = vmul.f32 %v3051, 1.442695
          %v3067 = vpow.pop %v3066
          %v3068 = vsel %vm3011, %v3053, 0.0
          %v3069 = vsel %vm3012, %v3055, 0.0
          %v3070 = vsel %vm3013, %v3057, 0.0
          %v3071 = vsel %vm3014, %v3059, 0.0
          %v3072 = vsel %vm3015, %v3061, 0.0
          %v3073 = vsel %vm3016, %v3063, 0.0
          %v3074 = vsel %vm3017, %v3065, 0.0
          %v3075 = vsel %vm3018, %v3067, 0.0
          %3076 = vadd.xlane.f32.xlu0 %v3068
          %v3077 = vpop.xlane.xlu0 %3076
          %3078 = vadd.xlane.f32.xlu0 %v3069
          %v3079 = vpop.xlane.xlu0 %3078
          %3080 = vadd.xlane.f32.xlu0 %v3070
          %v3081 = vpop.xlane.xlu0 %3080
          %3082 = vadd.xlane.f32.xlu0 %v3071
          %v3083 = vpop.xlane.xlu0 %3082
          %3084 = vadd.xlane.f32.xlu0 %v3072
          %v3085 = vpop.xlane.xlu0 %3084
          %3086 = vadd.xlane.f32.xlu0 %v3073
          %v3087 = vpop.xlane.xlu0 %3086
          %3088 = vadd.xlane.f32.xlu0 %v3074
          %v3089 = vpop.xlane.xlu0 %3088
          %3090 = vadd.xlane.f32.xlu0 %v3075
          %v3091 = vpop.xlane.xlu0 %3090
          %vm3092 = vcmp.ge.f32.partialorder %v3077, 1.0
          %vm3093 = vcmp.ge.f32.partialorder %v3079, 1.0
          %vm3094 = vcmp.ge.f32.partialorder %v3081, 1.0
          %vm3095 = vcmp.ge.f32.partialorder %v3083, 1.0
          %vm3096 = vcmp.ge.f32.partialorder %v3085, 1.0
          %vm3097 = vcmp.ge.f32.partialorder %v3087, 1.0
          %vm3098 = vcmp.ge.f32.partialorder %v3089, 1.0
          %vm3099 = vcmp.ge.f32.partialorder %v3091, 1.0
          %v3100 = vsel %vm3092, %v2987, %v2968
          %v3101 = vsel %vm3093, %v2988, %v2969
          %v3102 = vsel %vm3094, %v2989, %v2970
          %v3103 = vsel %vm3095, %v2990, %v2971
          %v3104 = vsel %vm3096, %v2991, %v2972
          %v3105 = vsel %vm3097, %v2992, %v2973
          %v3106 = vsel %vm3098, %v2993, %v2974
          %v3107 = vsel %vm3099, %v2994, %v2975
        $region102: #{custom_longformer_forward.5} parent=67 // loop_footer
          %s2967 = sadd.s32 1, %s2963
        $region103: #{custom_longformer_forward.5} parent=67 // loop_footer_branch
          %2962 = sbr.rel target = $region99
        $region104: #{custom_longformer_forward.5} parent=67 // loop_exit
          _
        %v3108 = vsub.f32 %v2924, %v2977
        %v3109 = vsub.f32 %v2925, %v2978
        %v3110 = vsub.f32 %v2926, %v2979
        %v3111 = vsub.f32 %v2927, %v2980
        %v3112 = vsub.f32 %v2928, %v2981
        %v3113 = vsub.f32 %v2929, %v2982
        %v3114 = vsub.f32 %v2930, %v2983
        %v3115 = vsub.f32 %v2931, %v2984
        %v3116 = vmax.f32 %v3108, 0.0
        %v3117 = vmax.f32 %v3109, 0.0
        %v3118 = vmax.f32 %v3110, 0.0
        %v3119 = vmax.f32 %v3111, 0.0
        %v3120 = vmax.f32 %v3112, 0.0
        %v3121 = vmax.f32 %v3113, 0.0
        %v3122 = vmax.f32 %v3114, 0.0
        %v3123 = vmax.f32 %v3115, 0.0
        %vm3124 = vcmp.gt.f32.partialorder %v3116, 0.0
        %vm3125 = vcmp.gt.f32.partialorder %v3117, 0.0
        %vm3126 = vcmp.gt.f32.partialorder %v3118, 0.0
        %vm3127 = vcmp.gt.f32.partialorder %v3119, 0.0
        %vm3128 = vcmp.gt.f32.partialorder %v3120, 0.0
        %vm3129 = vcmp.gt.f32.partialorder %v3121, 0.0
        %vm3130 = vcmp.gt.f32.partialorder %v3122, 0.0
        %vm3131 = vcmp.gt.f32.partialorder %v3123, 0.0
        %v3132 = vsel %vm3124, %v3116, 1.0
        %v3133 = vsel %vm3125, %v3117, 1.0
        %v3134 = vsel %vm3126, %v3118, 1.0
        %v3135 = vsel %vm3127, %v3119, 1.0
        %v3136 = vsel %vm3128, %v3120, 1.0
        %v3137 = vsel %vm3129, %v3121, 1.0
        %v3138 = vsel %vm3130, %v3122, 1.0
        %v3139 = vsel %vm3131, %v3123, 1.0
        %v3140 = vlog2.pop %v3132
        %v3141 = vmul.f32 %v3140, 0.6931472
        %v3142 = vlog2.pop %v3133
        %v3143 = vmul.f32 %v3142, 0.6931472
        %v3144 = vlog2.pop %v3134
        %v3145 = vmul.f32 %v3144, 0.6931472
        %v3146 = vlog2.pop %v3135
        %v3147 = vmul.f32 %v3146, 0.6931472
        %v3148 = vlog2.pop %v3136
        %v3149 = vmul.f32 %v3148, 0.6931472
        %v3150 = vlog2.pop %v3137
        %v3151 = vmul.f32 %v3150, 0.6931472
        %v3152 = vlog2.pop %v3138
        %v3153 = vmul.f32 %v3152, 0.6931472
        %v3154 = vlog2.pop %v3139
        %v3155 = vmul.f32 %v3154, 0.6931472
        %v3156 = vstv %s2922
        %v3157 = vmul.f32 %v3156, %v3141
        %v3158 = vmul.f32 %v3156, %v3143
        %v3159 = vmul.f32 %v3156, %v3145
        %v3160 = vmul.f32 %v3156, %v3147
        %v3161 = vmul.f32 %v3156, %v3149
        %v3162 = vmul.f32 %v3156, %v3151
        %v3163 = vmul.f32 %v3156, %v3153
        %v3164 = vmul.f32 %v3156, %v3155
        %v3165 = vmul.f32 %v3157, 1.442695
        %v3166 = vpow.pop %v3165
        %v3167 = vmul.f32 %v3158, 1.442695
        %v3168 = vpow.pop %v3167
        %v3169 = vmul.f32 %v3159, 1.442695
        %v3170 = vpow.pop %v3169
        %v3171 = vmul.f32 %v3160, 1.442695
        %v3172 = vpow.pop %v3171
        %v3173 = vmul.f32 %v3161, 1.442695
        %v3174 = vpow.pop %v3173
        %v3175 = vmul.f32 %v3162, 1.442695
        %v3176 = vpow.pop %v3175
        %v3177 = vmul.f32 %v3163, 1.442695
        %v3178 = vpow.pop %v3177
        %v3179 = vmul.f32 %v3164, 1.442695
        %v3180 = vpow.pop %v3179
        %v3181 = vsel %vm3124, %v3166, 0.0
        %v3182 = vsel %vm3125, %v3168, 0.0
        %v3183 = vsel %vm3126, %v3170, 0.0
        %v3184 = vsel %vm3127, %v3172, 0.0
        %v3185 = vsel %vm3128, %v3174, 0.0
        %v3186 = vsel %vm3129, %v3176, 0.0
        %v3187 = vsel %vm3130, %v3178, 0.0
        %v3188 = vsel %vm3131, %v3180, 0.0
        %3189 = vadd.xlane.f32.xlu0 %v3181
        %v3190 = vpop.xlane.xlu0 %3189
        %3191 = vadd.xlane.f32.xlu0 %v3182
        %v3192 = vpop.xlane.xlu0 %3191
        %3193 = vadd.xlane.f32.xlu0 %v3183
        %v3194 = vpop.xlane.xlu0 %3193
        %3195 = vadd.xlane.f32.xlu0 %v3184
        %v3196 = vpop.xlane.xlu0 %3195
        %3197 = vadd.xlane.f32.xlu0 %v3185
        %v3198 = vpop.xlane.xlu0 %3197
        %3199 = vadd.xlane.f32.xlu0 %v3186
        %v3200 = vpop.xlane.xlu0 %3199
        %3201 = vadd.xlane.f32.xlu0 %v3187
        %v3202 = vpop.xlane.xlu0 %3201
        %3203 = vadd.xlane.f32.xlu0 %v3188
        %v3204 = vpop.xlane.xlu0 %3203
        %v3205 = vrcp.pop %v3190
        %v3206 = vrcp.pop %v3192
        %v3207 = vrcp.pop %v3194
        %v3208 = vrcp.pop %v3196
        %v3209 = vrcp.pop %v3198
        %v3210 = vrcp.pop %v3200
        %v3211 = vrcp.pop %v3202
        %v3212 = vrcp.pop %v3204
        %v3213 = vmul.f32 %v3181, %v3205
        %v3214 = vmul.f32 %v3182, %v3206
        %v3215 = vmul.f32 %v3183, %v3207
        %v3216 = vmul.f32 %v3184, %v3208
        %v3217 = vmul.f32 %v3185, %v3209
        %v3218 = vmul.f32 %v3186, %v3210
        %v3219 = vmul.f32 %v3187, %v3211
        %v3220 = vmul.f32 %v3188, %v3212
        %v3221 = vpack.c.bf16 %v3214, %v3213
        %v3222 = vpack.c.bf16 %v3216, %v3215
        %v3223 = vpack.c.bf16 %v3218, %v3217
        %v3224 = vpack.c.bf16 %v3220, %v3219
        %3225 = vrot.lane.b32.xlu0 %v2761, 16
        %v3226 = vpop.permute.xlu0 %3225
        %3227 = vrot.lane.b32.xlu0 %v2762, 16
        %v3228 = vpop.permute.xlu0 %3227
        %3229 = vrot.lane.b32.xlu0 %v2763, 16
        %v3230 = vpop.permute.xlu0 %3229
        %3231 = vrot.lane.b32.xlu0 %v2764, 16
        %v3232 = vpop.permute.xlu0 %3231
        %3233 = vrot.lane.b32.xlu0 %v2765, 16
        %v3234 = vpop.permute.xlu0 %3233
        %3235 = vrot.lane.b32.xlu0 %v2766, 16
        %v3236 = vpop.permute.xlu0 %3235
        %3237 = vrot.lane.b32.xlu0 %v2767, 16
        %v3238 = vpop.permute.xlu0 %3237
        %3239 = vrot.lane.b32.xlu0 %v2768, 16
        %v3240 = vpop.permute.xlu0 %3239
        %3249 = vmatprep.subr.bf16.mxu0 0
        %3250 = vmatpush1.bf16.msra.mxu0 %v3226
        %3251 = vmatprep.subr.bf16.mxu0 0
        %3252 = vmatpush1.bf16.msra.mxu0 %v3228
        %3253 = vmatprep.subr.bf16.mxu0 0
        %3254 = vmatpush1.bf16.msra.mxu0 %v3230
        %3255 = vmatprep.subr.bf16.mxu0 0
        %3256 = vmatpush1.bf16.msra.mxu0 %v3232
        %3257 = vmatprep.subr.bf16.mxu0 0
        %3258 = vmatpush1.bf16.msra.mxu0 %v3234
        %3259 = vmatprep.subr.bf16.mxu0 0
        %3260 = vmatpush1.bf16.msra.mxu0 %v3236
        %3261 = vmatprep.subr.bf16.mxu0 0
        %3262 = vmatpush1.bf16.msra.mxu0 %v3238
        %3263 = vmatprep.subr.bf16.mxu0 0
        %3264 = vmatpush1.bf16.msra.mxu0 %v3240
        %3265 = vmatprep.subr.bf16.mxu0 0
        %3266 = vmatpush1.bf16.msra.mxu0 0
        %3267 = vmatprep.subr.bf16.mxu0 0
        %3268 = vmatpush1.bf16.msra.mxu0 0
        %3269 = vmatprep.subr.bf16.mxu0 0
        %3270 = vmatpush1.bf16.msra.mxu0 0
        %3271 = vmatprep.subr.bf16.mxu0 0
        %3272 = vmatpush1.bf16.msra.mxu0 0
        %3273 = vmatprep.subr.bf16.mxu0 0
        %3274 = vmatpush1.bf16.msra.mxu0 0
        %3275 = vmatprep.subr.bf16.mxu0 0
        %3276 = vmatpush1.bf16.msra.mxu0 0
        %3277 = vmatprep.subr.bf16.mxu0 0
        %3278 = vmatpush1.bf16.msra.mxu0 0
        %3279 = vmatprep.subr.bf16.mxu0 0
        %3280 = vmatpush1.bf16.msra.mxu0 0
        %3281 = vmatprep.mubr.bf16.mxu0 0
        %3282 = vmatmul.mubr.bf16.gmra.mrb[0].mxu0 %v3221
        %v3283 = vpop.f32.mrb[0].mxu0
        %v3284 = vadd.f32 0.0, %v3283
        %v3285 = vpop.f32.mrb[0].mxu0
        %v3286 = vpop.f32.mrb[0].mxu0
        %v3287 = vadd.f32 0.0, %v3286
        %v3288 = vpop.f32.mrb[0].mxu0
        %3289 = vmatprep.mubr.bf16.mxu0 0
        %3290 = vmatmul.mubr.bf16.gmra.mrb[0].mxu0 %v3222
        %v3291 = vpop.f32.mrb[0].mxu0
        %v3292 = vadd.f32 0.0, %v3291
        %v3293 = vpop.f32.mrb[0].mxu0
        %v3294 = vpop.f32.mrb[0].mxu0
        %v3295 = vadd.f32 0.0, %v3294
        %v3296 = vpop.f32.mrb[0].mxu0
        %3297 = vmatprep.mubr.bf16.mxu0 0
        %3298 = vmatmul.mubr.bf16.gmra.mrb[0].mxu0 %v3223
        %v3299 = vpop.f32.mrb[0].mxu0
        %v3300 = vadd.f32 0.0, %v3299
        %v3301 = vpop.f32.mrb[0].mxu0
        %v3302 = vpop.f32.mrb[0].mxu0
        %v3303 = vadd.f32 0.0, %v3302
        %v3304 = vpop.f32.mrb[0].mxu0
        %3305 = vmatprep.mubr.bf16.mxu0 0
        %3306 = vmatmul.mubr.bf16.gmra.mrb[0].mxu0 %v3224
        %v3307 = vpop.f32.mrb[0].mxu0
        %v3308 = vadd.f32 0.0, %v3307
        %v3309 = vpop.f32.mrb[0].mxu0
        %v3310 = vpop.f32.mrb[0].mxu0
        %v3311 = vadd.f32 0.0, %v3310
        %v3312 = vpop.f32.mrb[0].mxu0
        %3313 = vdwg.mxu0
        %3322 = vrot.lane.b32.xlu0 %v3284, 48
        %v3323 = vpop.permute.xlu0 %3322
        %3324 = vrot.lane.b32.xlu0 %v3287, 48
        %v3325 = vpop.permute.xlu0 %3324
        %3326 = vrot.lane.b32.xlu0 %v3292, 48
        %v3327 = vpop.permute.xlu0 %3326
        %3328 = vrot.lane.b32.xlu0 %v3295, 48
        %v3329 = vpop.permute.xlu0 %3328
        %3330 = vrot.lane.b32.xlu0 %v3300, 48
        %v3331 = vpop.permute.xlu0 %3330
        %3332 = vrot.lane.b32.xlu0 %v3303, 48
        %v3333 = vpop.permute.xlu0 %3332
        %3334 = vrot.lane.b32.xlu0 %v3308, 48
        %v3335 = vpop.permute.xlu0 %3334
        %3336 = vrot.lane.b32.xlu0 %v3311, 48
        %v3337 = vpop.permute.xlu0 %3336
        %vm3346 = vcmask 523648
        %3347 = vst.msk [vmem:[#allocation3] sm:$0xff] %vm3346, %v3323
        %3348 = vst.msk [vmem:[#allocation3 + $0x8] sm:$0xff] %vm3346, %v3325
        %3349 = vst.msk [vmem:[#allocation3 + $0x10] sm:$0xff] %vm3346, %v3327
        %3350 = vst.msk [vmem:[#allocation3 + $0x18] sm:$0xff] %vm3346, %v3329
        %3351 = vst.msk [vmem:[#allocation3 + $0x20] sm:$0xff] %vm3346, %v3331
        %3352 = vst.msk [vmem:[#allocation3 + $0x28] sm:$0xff] %vm3346, %v3333
        %3353 = vst.msk [vmem:[#allocation3 + $0x30] sm:$0xff] %vm3346, %v3335
        %3354 = vst.msk [vmem:[#allocation3 + $0x38] sm:$0xff] %vm3346, %v3337
        %v3355 = vld [vmem:[#allocation3] sm:$0xff]
        %v3356 = vld [vmem:[#allocation3 + $0x8] sm:$0xff]
        %v3357 = vld [vmem:[#allocation3 + $0x10] sm:$0xff]
        %v3358 = vld [vmem:[#allocation3 + $0x18] sm:$0xff]
        %v3359 = vld [vmem:[#allocation3 + $0x20] sm:$0xff]
        %v3360 = vld [vmem:[#allocation3 + $0x28] sm:$0xff]
        %v3361 = vld [vmem:[#allocation3 + $0x30] sm:$0xff]
        %v3362 = vld [vmem:[#allocation3 + $0x38] sm:$0xff]
        %v3363 = vsel %vm540, %v3355, 0.0
        %3364 = vadd.xlane.f32.xlu0 %v3363
        %v3365 = vpop.xlane.xlu0 %3364
        %v3366 = vsel %vm540, %v3356, 0.0
        %3367 = vadd.xlane.f32.xlu0 %v3366
        %v3368 = vpop.xlane.xlu0 %3367
        %v3369 = vsel %vm540, %v3357, 0.0
        %3370 = vadd.xlane.f32.xlu0 %v3369
        %v3371 = vpop.xlane.xlu0 %3370
        %v3372 = vsel %vm540, %v3358, 0.0
        %3373 = vadd.xlane.f32.xlu0 %v3372
        %v3374 = vpop.xlane.xlu0 %3373
        %v3375 = vsel %vm540, %v3359, 0.0
        %3376 = vadd.xlane.f32.xlu0 %v3375
        %v3377 = vpop.xlane.xlu0 %3376
        %v3378 = vsel %vm540, %v3360, 0.0
        %3379 = vadd.xlane.f32.xlu0 %v3378
        %v3380 = vpop.xlane.xlu0 %3379
        %v3381 = vsel %vm540, %v3361, 0.0
        %3382 = vadd.xlane.f32.xlu0 %v3381
        %v3383 = vpop.xlane.xlu0 %3382
        %v3384 = vsel %vm540, %v3362, 0.0
        %3385 = vadd.xlane.f32.xlu0 %v3384
        %v3386 = vpop.xlane.xlu0 %3385
        %v3387 = vrcp.pop 64.0
        %v3388 = vmul.f32 %v3365, %v3387
        %v3389 = vmul.f32 %v3368, %v3387
        %v3390 = vmul.f32 %v3371, %v3387
        %v3391 = vmul.f32 %v3374, %v3387
        %v3392 = vmul.f32 %v3377, %v3387
        %v3393 = vmul.f32 %v3380, %v3387
        %v3394 = vmul.f32 %v3383, %v3387
        %v3395 = vmul.f32 %v3386, %v3387
        %v3396 = vsub.f32 %v3355, %v3388
        %v3397 = vsub.f32 %v3356, %v3389
        %v3398 = vsub.f32 %v3357, %v3390
        %v3399 = vsub.f32 %v3358, %v3391
        %v3400 = vsub.f32 %v3359, %v3392
        %v3401 = vsub.f32 %v3360, %v3393
        %v3402 = vsub.f32 %v3361, %v3394
        %v3403 = vsub.f32 %v3362, %v3395
        %v3404 = vmul.f32 %v3396, %v3396
        %v3405 = vmul.f32 %v3397, %v3397
        %v3406 = vmul.f32 %v3398, %v3398
        %v3407 = vmul.f32 %v3399, %v3399
        %v3408 = vmul.f32 %v3400, %v3400
        %v3409 = vmul.f32 %v3401, %v3401
        %v3410 = vmul.f32 %v3402, %v3402
        %v3411 = vmul.f32 %v3403, %v3403
        %v3412 = vsel %vm540, %v3404, 0.0
        %3413 = vadd.xlane.f32.xlu0 %v3412
        %v3414 = vpop.xlane.xlu0 %3413
        %v3415 = vsel %vm540, %v3405, 0.0
        %3416 = vadd.xlane.f32.xlu0 %v3415
        %v3417 = vpop.xlane.xlu0 %3416
        %v3418 = vsel %vm540, %v3406, 0.0
        %3419 = vadd.xlane.f32.xlu0 %v3418
        %v3420 = vpop.xlane.xlu0 %3419
        %v3421 = vsel %vm540, %v3407, 0.0
        %3422 = vadd.xlane.f32.xlu0 %v3421
        %v3423 = vpop.xlane.xlu0 %3422
        %v3424 = vsel %vm540, %v3408, 0.0
        %3425 = vadd.xlane.f32.xlu0 %v3424
        %v3426 = vpop.xlane.xlu0 %3425
        %v3427 = vsel %vm540, %v3409, 0.0
        %3428 = vadd.xlane.f32.xlu0 %v3427
        %v3429 = vpop.xlane.xlu0 %3428
        %v3430 = vsel %vm540, %v3410, 0.0
        %3431 = vadd.xlane.f32.xlu0 %v3430
        %v3432 = vpop.xlane.xlu0 %3431
        %v3433 = vsel %vm540, %v3411, 0.0
        %3434 = vadd.xlane.f32.xlu0 %v3433
        %v3435 = vpop.xlane.xlu0 %3434
        %v3436 = vmul.f32 %v3414, %v3387
        %v3437 = vmul.f32 %v3417, %v3387
        %v3438 = vmul.f32 %v3420, %v3387
        %v3439 = vmul.f32 %v3423, %v3387
        %v3440 = vmul.f32 %v3426, %v3387
        %v3441 = vmul.f32 %v3429, %v3387
        %v3442 = vmul.f32 %v3432, %v3387
        %v3443 = vmul.f32 %v3435, %v3387
        %v3444 = vadd.f32 %v3436, 1e-05
        %v3445 = vadd.f32 %v3437, 1e-05
        %v3446 = vadd.f32 %v3438, 1e-05
        %v3447 = vadd.f32 %v3439, 1e-05
        %v3448 = vadd.f32 %v3440, 1e-05
        %v3449 = vadd.f32 %v3441, 1e-05
        %v3450 = vadd.f32 %v3442, 1e-05
        %v3451 = vadd.f32 %v3443, 1e-05
        %v3452 = vrsqrt.pop %v3444
        %v3453 = vrsqrt.pop %v3445
        %v3454 = vrsqrt.pop %v3446
        %v3455 = vrsqrt.pop %v3447
        %v3456 = vrsqrt.pop %v3448
        %v3457 = vrsqrt.pop %v3449
        %v3458 = vrsqrt.pop %v3450
        %v3459 = vrsqrt.pop %v3451
        %v3460 = vmul.f32 %v3396, %v3452
        %v3461 = vmul.f32 %v3397, %v3453
        %v3462 = vmul.f32 %v3398, %v3454
        %v3463 = vmul.f32 %v3399, %v3455
        %v3464 = vmul.f32 %v3400, %v3456
        %v3465 = vmul.f32 %v3401, %v3457
        %v3466 = vmul.f32 %v3402, %v3458
        %v3467 = vmul.f32 %v3403, %v3459
        %v3468 = vld [vmem:[%s8] sm:$0x1]
        %v3470 = vlaneseq
        %v3471 = vshrl.u32 %v3470, 7
        %v3472 = vsub.s32 0, %v3471
        %v3473 = vrot.slane %v3468, %v3472
        %v3475 = vmul.f32 %v3460, %v3473
        %v3476 = vmul.f32 %v3461, %v3473
        %v3477 = vmul.f32 %v3462, %v3473
        %v3478 = vmul.f32 %v3463, %v3473
        %v3479 = vmul.f32 %v3464, %v3473
        %v3480 = vmul.f32 %v3465, %v3473
        %v3481 = vmul.f32 %v3466, %v3473
        %v3482 = vmul.f32 %v3467, %v3473
        %v3483 = vld [vmem:[%s9] sm:$0x1]
        %v3485 = vlaneseq
        %v3486 = vshrl.u32 %v3485, 7
        %v3487 = vsub.s32 0, %v3486
        %v3488 = vrot.slane %v3483, %v3487
        %v3490 = vadd.f32 %v3475, %v3488
        %v3491 = vadd.f32 %v3476, %v3488
        %v3492 = vadd.f32 %v3477, %v3488
        %v3493 = vadd.f32 %v3478, %v3488
        %v3494 = vadd.f32 %v3479, %v3488
        %v3495 = vadd.f32 %v3480, %v3488
        %v3496 = vadd.f32 %v3481, %v3488
        %v3497 = vadd.f32 %v3482, %v3488
        %v3498 = vld [vmem:[%s10] sm:$0xff]
        %v3499 = vld [vmem:[%s10 + $0x8] sm:$0xff]
        %v3500 = vld [vmem:[%s10 + $0x10] sm:$0xff]
        %v3501 = vld [vmem:[%s10 + $0x18] sm:$0xff]
        %v3502 = vld [vmem:[%s10 + $0x20] sm:$0xff]
        %v3503 = vld [vmem:[%s10 + $0x28] sm:$0xff]
        %v3504 = vld [vmem:[%s10 + $0x30] sm:$0xff]
        %v3505 = vld [vmem:[%s10 + $0x38] sm:$0xff]
        %v3506 = vld [vmem:[%s11] sm:$0x1]
        %v3508 = vlaneseq
        %v3509 = vshrl.u32 %v3508, 7
        %v3510 = vsub.s32 0, %v3509
        %v3511 = vrot.slane %v3506, %v3510
        %v3514 = vsel %vm540, %v3490, 0
        %v3517 = vsel %vm540, %v3491, 0
        %v3520 = vsel %vm540, %v3492, 0
        %v3523 = vsel %vm540, %v3493, 0
        %v3526 = vsel %vm540, %v3494, 0
        %v3529 = vsel %vm540, %v3495, 0
        %v3532 = vsel %vm540, %v3496, 0
        %v3535 = vsel %vm540, %v3497, 0
        %3537 = vmatprep.subr.mxu0 0.0
        %3538 = vmatpush1.msra.mxu0 %v3498
        %3539 = vmatprep.subr.mxu0 0.0
        %3540 = vmatpush1.msra.mxu0 %v3499
        %3541 = vmatprep.subr.mxu0 0.0
        %3542 = vmatpush1.msra.mxu0 %v3500
        %3543 = vmatprep.subr.mxu0 0.0
        %3544 = vmatpush1.msra.mxu0 %v3501
        %3545 = vmatprep.subr.mxu0 0.0
        %3546 = vmatpush1.msra.mxu0 %v3502
        %3547 = vmatprep.subr.mxu0 0.0
        %3548 = vmatpush1.msra.mxu0 %v3503
        %3549 = vmatprep.subr.mxu0 0.0
        %3550 = vmatpush1.msra.mxu0 %v3504
        %3551 = vmatprep.subr.mxu0 0.0
        %3552 = vmatpush1.msra.mxu0 %v3505
        %3553 = vmatprep.subr.mxu0 0.0
        %3554 = vmatpush1.msra.mxu0 0.0
        %3555 = vmatprep.subr.mxu0 0.0
        %3556 = vmatpush1.msra.mxu0 0.0
        %3557 = vmatprep.subr.mxu0 0.0
        %3558 = vmatpush1.msra.mxu0 0.0
        %3559 = vmatprep.subr.mxu0 0.0
        %3560 = vmatpush1.msra.mxu0 0.0
        %3561 = vmatprep.subr.mxu0 0.0
        %3562 = vmatpush1.msra.mxu0 0.0
        %3563 = vmatprep.subr.mxu0 0.0
        %3564 = vmatpush1.msra.mxu0 0.0
        %3565 = vmatprep.subr.mxu0 0.0
        %3566 = vmatpush1.msra.mxu0 0.0
        %3567 = vmatprep.subr.mxu0 0.0
        %3568 = vmatpush1.msra.mxu0 0.0
        %3569 = vmatprep.subr.mxu0 0.0
        %3570 = vmatpush1.msra.mxu0 0.0
        %3571 = vmatprep.subr.mxu0 0.0
        %3572 = vmatpush1.msra.mxu0 0.0
        %3573 = vmatprep.subr.mxu0 0.0
        %3574 = vmatpush1.msra.mxu0 0.0
        %3575 = vmatprep.subr.mxu0 0.0
        %3576 = vmatpush1.msra.mxu0 0.0
        %3577 = vmatprep.subr.mxu0 0.0
        %3578 = vmatpush1.msra.mxu0 0.0
        %3579 = vmatprep.subr.mxu0 0.0
        %3580 = vmatpush1.msra.mxu0 0.0
        %3581 = vmatprep.subr.mxu0 0.0
        %3582 = vmatpush1.msra.mxu0 0.0
        %3583 = vmatprep.subr.mxu0 0.0
        %3584 = vmatpush1.msra.mxu0 0.0
        %3585 = vmatprep.subr.mxu0 0.0
        %3586 = vmatpush1.msra.mxu0 0.0
        %3587 = vmatprep.subr.mxu0 0.0
        %3588 = vmatpush1.msra.mxu0 0.0
        %3589 = vmatprep.subr.mxu0 0.0
        %3590 = vmatpush1.msra.mxu0 0.0
        %3591 = vmatprep.subr.mxu0 0.0
        %3592 = vmatpush1.msra.mxu0 0.0
        %3593 = vmatprep.subr.mxu0 0.0
        %3594 = vmatpush1.msra.mxu0 0.0
        %3595 = vmatprep.subr.mxu0 0.0
        %3596 = vmatpush1.msra.mxu0 0.0
        %3597 = vmatprep.subr.mxu0 0.0
        %3598 = vmatpush1.msra.mxu0 0.0
        %3599 = vmatprep.subr.mxu0 0.0
        %3600 = vmatpush1.msra.mxu0 0.0
        %3601 = vmatprep.mubr.f32.mxu0 0.0
        %3602 = vmatmul.mubr.f32.gmra.mrb[0].mxu0 %v3514
        %v3603 = vpop.f32.mrb[0].mxu0
        %v3604 = vadd.f32 %v3511, %v3603
        %v3605 = vpop.f32.mrb[0].mxu0
        %3606 = vmatprep.mubr.f32.mxu0 0.0
        %3607 = vmatmul.mubr.f32.gmra.mrb[0].mxu0 %v3517
        %v3608 = vpop.f32.mrb[0].mxu0
        %v3609 = vadd.f32 %v3511, %v3608
        %v3610 = vpop.f32.mrb[0].mxu0
        %3611 = vmatprep.mubr.f32.mxu0 0.0
        %3612 = vmatmul.mubr.f32.gmra.mrb[0].mxu0 %v3520
        %v3613 = vpop.f32.mrb[0].mxu0
        %v3614 = vadd.f32 %v3511, %v3613
        %v3615 = vpop.f32.mrb[0].mxu0
        %3616 = vmatprep.mubr.f32.mxu0 0.0
        %3617 = vmatmul.mubr.f32.gmra.mrb[0].mxu0 %v3523
        %v3618 = vpop.f32.mrb[0].mxu0
        %v3619 = vadd.f32 %v3511, %v3618
        %v3620 = vpop.f32.mrb[0].mxu0
        %3621 = vmatprep.mubr.f32.mxu0 0.0
        %3622 = vmatmul.mubr.f32.gmra.mrb[0].mxu0 %v3526
        %v3623 = vpop.f32.mrb[0].mxu0
        %v3624 = vadd.f32 %v3511, %v3623
        %v3625 = vpop.f32.mrb[0].mxu0
        %3626 = vmatprep.mubr.f32.mxu0 0.0
        %3627 = vmatmul.mubr.f32.gmra.mrb[0].mxu0 %v3529
        %v3628 = vpop.f32.mrb[0].mxu0
        %v3629 = vadd.f32 %v3511, %v3628
        %v3630 = vpop.f32.mrb[0].mxu0
        %3631 = vmatprep.mubr.f32.mxu0 0.0
        %3632 = vmatmul.mubr.f32.gmra.mrb[0].mxu0 %v3532
        %v3633 = vpop.f32.mrb[0].mxu0
        %v3634 = vadd.f32 %v3511, %v3633
        %v3635 = vpop.f32.mrb[0].mxu0
        %3636 = vmatprep.mubr.f32.mxu0 0.0
        %3637 = vmatmul.mubr.f32.gmra.mrb[0].mxu0 %v3535
        %v3638 = vpop.f32.mrb[0].mxu0
        %v3639 = vadd.f32 %v3511, %v3638
        %v3640 = vpop.f32.mrb[0].mxu0
        %3641 = vdwg.mxu0
        %3642 = vst.msk [vmem:[%s498] sm:$0xff] %vm540, %v3604
        %3643 = vst.msk [vmem:[%s498 + $0x8] sm:$0xff] %vm540, %v3609
        %3644 = vst.msk [vmem:[%s498 + $0x10] sm:$0xff] %vm540, %v3614
        %3645 = vst.msk [vmem:[%s498 + $0x18] sm:$0xff] %vm540, %v3619
        %3646 = vst.msk [vmem:[%s498 + $0x20] sm:$0xff] %vm540, %v3624
        %3647 = vst.msk [vmem:[%s498 + $0x28] sm:$0xff] %vm540, %v3629
        %3648 = vst.msk [vmem:[%s498 + $0x30] sm:$0xff] %vm540, %v3634
        %3649 = vst.msk [vmem:[%s498 + $0x38] sm:$0xff] %vm540, %v3639
        %s3650 = smul.u32 8, %s30
        %p3651 = scmp.lt.s32.totalorder %s29, 1
        %s3652 = scalar_select %p3651, %s29, 1
        %p3653 = scmp.lt.s32.totalorder %s3650, 15
        %s3654 = scalar_select %p3653, %s3650, 15
        %s3655 = smul.addr %s3652, 16
        %s3656 = sadd.s32 %s3654, %s3655
        %s3657 = smul.addr %s3656, 8
        %s3658 = scalar_lea.vmem %s12, %s3657
        // Predicated region
        $region105: #{custom_longformer_forward.5} parent=67 // pred_check
          %p3659 = pneg %p321
        $region106: #{custom_longformer_forward.5} parent=67 // pred_check_branch
          %3661 = sbr.rel (%p3659) target = $region108
        $region107: #{custom_longformer_forward.5} parent=67 // pred_region
          %s3662 = smul.u32 8, %s30
        $region108: #{custom_longformer_forward.5} parent=67 // pred_fallthru
          _
      $region68: #{custom_longformer_forward.5} parent=5 // pred_fallthru
        _
      %p3663 = scmp.le.s32.totalorder 2, %s20
      // Predicated region
      $region109: #{custom_longformer_forward.5} parent=5 // pred_check
        %p3664 = pneg %p3663
      $region110: #{custom_longformer_forward.5} parent=5 // pred_check_branch
        %3666 = sbr.rel (%p3664) target = $region112
      $region111: #{custom_longformer_forward.5} parent=5 // pred_region
        %s3667 = ssub.s32 %s20, 2
        // Predicated region
        $region113: #{custom_longformer_forward.5} parent=111 // pred_check
          %p3668 = pneg %p327
        $region114: #{custom_longformer_forward.5} parent=111 // pred_check_branch
          %3670 = sbr.rel (%p3668) target = $region116
        $region115: #{custom_longformer_forward.5} parent=111 // pred_region
          %s3671 = smul.u32 8, %s32
          %p3672 = scmp.lt.s32.totalorder %s31, 1
          %s3673 = scalar_select %p3672, %s31, 1
          %p3674 = scmp.lt.s32.totalorder %s3671, 15
          %s3675 = scalar_select %p3674, %s3671, 15
          %s3676 = smul.addr %s3673, 16
          %s3677 = sadd.s32 %s3675, %s3676
          %s3678 = smul.addr %s3677, 8
          %s3679 = scalar_lea.vmem %s12, %s3678
        $region116: #{custom_longformer_forward.5} parent=111 // pred_fallthru
          _
      $region112: #{custom_longformer_forward.5} parent=5 // pred_fallthru
        _
    $region6: #{custom_longformer_forward.5} parent=1 // loop_footer
      %s24 = sadd.s32 1, %s20
    $region7: #{custom_longformer_forward.5} parent=1 // loop_footer_branch
      %19 = sbr.rel target = $region3
    $region8: #{custom_longformer_forward.5} parent=1 // loop_exit
      _
    %3680 = vsyncpa [#allocation5], 1
    %s3681 = scalar_lea.sflag [#allocation5], 1
    %3682 = vsyncpa %s3681, 1
    %3683 = vsyncpa [#allocation7], 1

</llo_original>
